<compile_context>
chip_gen: v6e
topology: v6e:2x2x1
jax: 0.10.0
libtpu: 0.0.40
codegen_flags: <defaults>
</compile_context>

<pallas_src>
import jax
import jax.numpy as jnp
from jax.experimental import pallas as pl
from jax.experimental.pallas import tpu as pltpu


_LATENT = 2
_IN_FEATURES = 784
_IN_PAD = 896                                        # 7 * 128: lane-dense feature dim
_ENC_DIMS = [_IN_PAD, 512, 256, 128, 64]             # first-layer K zero-padded
_DEC_DIMS = [_LATENT, 64, 128, 256, 512, _IN_PAD]    # last-layer N zero-padded


def _round_up(x, m):
    return (x + m - 1) // m * m


# ---------------------------------------------------------------------------
# Fused kernel: entire VAE forward for one batch tile.
# ---------------------------------------------------------------------------

def _vae_fused_kernel(
    x_ref, eps_ref,
    ew1, eb1, ew2, eb2, ew3, eb3, ew4, eb4,               # encoder (4 layers)
    hw, hb,                                               # fused [mean|logvar] head
    dw1, db1, dw2, db2, dw3, db3, dw4, db4, dw5, db5,     # decoder (5 layers)
    recon_ref, lat_ref,
):
    def dense(h, w_ref, b_ref, act):
        # bf16 matmul on the MXU with f32 accumulation; bias + activation
        # epilogue on the f32 accumulator (VPU/EUP slots have slack under the
        # MXU-bound 784<->512 layers).
        y = jnp.dot(h.astype(w_ref.dtype), w_ref[...],
                    preferred_element_type=jnp.float32)
        y = y + b_ref[...]
        if act == "relu":
            y = jnp.maximum(y, 0.0)
        elif act == "sigmoid":
            y = jax.nn.sigmoid(y)
        return y

    # ---- encoder ----
    h = x_ref[...]
    h = dense(h, ew1, eb1, "relu")
    h = dense(h, ew2, eb2, "relu")
    h = dense(h, ew3, eb3, "relu")
    h = dense(h, ew4, eb4, "relu")

    # ---- fused mean|logvar head (one K=64, N=4 matmul) + reparameterization ----
    ml = dense(h, hw, hb, "none")                     # (TB, 4) = [mean | logvar]
    mean = ml[:, :_LATENT]
    logvar = ml[:, _LATENT:]
    # Matches the PyTorch module: z = 0.5 * logvar.exp() * eps + mean
    z = 0.5 * jnp.exp(logvar) * eps_ref[...] + mean   # (TB, 2) f32

    # ---- decoder ----
    # First layer has K=2: VPU broadcast-MACs instead of a near-empty MXU pass.
    w1 = dw1[...].astype(jnp.float32)                 # (2, 64)
    d = z[:, 0:1] * w1[0:1, :] + z[:, 1:2] * w1[1:2, :] + db1[...]
    d = jnp.maximum(d, 0.0)
    d = dense(d, dw2, db2, "relu")
    d = dense(d, dw3, db3, "relu")
    d = dense(d, dw4, db4, "relu")
    recon = dense(d, dw5, db5, "sigmoid")             # (TB, 896) — lane-dense store

    recon_ref[...] = recon.astype(recon_ref.dtype)
    # Single lane-contiguous latent output: [mean | logvar | z] -> one DMA/step.
    lat_ref[...] = jnp.concatenate([ml, z], axis=-1).astype(lat_ref.dtype)


# ---------------------------------------------------------------------------
# VMEM budgeting (scoped-VMEM limit scales with the batch tile).
# ---------------------------------------------------------------------------

def _weight_vmem_bytes():
    n = 0
    for a, b in zip(_ENC_DIMS[:-1], _ENC_DIMS[1:]):
        n += a * b * 2 + b * 4          # bf16 weight + f32 bias
    n += _ENC_DIMS[-1] * 2 * _LATENT * 2 + 2 * _LATENT * 4   # fused head
    for a, b in zip(_DEC_DIMS[:-1], _DEC_DIMS[1:]):
        n += a * b * 2 + b * 4
    return n


def _vmem_limit_bytes(tb):
    stream = 2 * 2 * tb * _IN_PAD * 4                 # x in + recon out, 2 buffers each
    latent = 2 * 2 * tb * (3 * _LATENT) * 4           # eps in + packed latent out
    interm = 2 * tb * (512 + 256 + 128 + 64) * 4      # f32 intermediates headroom
    est = stream + latent + interm + _weight_vmem_bytes()
    # Floor at the v6e/v7x scoped default (this also raises v5e's 16 MiB default
    # for large tiles); cap safely below v7x's 64 MiB physical per-TC VMEM.
    return int(min(60 * 2**20, max(32 * 2**20, int(1.5 * est))))


# ---------------------------------------------------------------------------
# Wrapper: single pallas_call, gridded over batch tiles.
# ---------------------------------------------------------------------------

def vae_forward(params, x, eps, *, block_b=256):
    """x: [B, 784] (f32 or bf16), eps: [B, 2] f32 -> (recon, mean, logvar, z)."""
    B, F = x.shape
    assert F in (_IN_FEATURES, _IN_PAD)
    assert eps.shape == (B, _LATENT)

    # Feature padding 784 -> 896 (weights were zero-padded once at init time).
    if F != _IN_PAD:
        x = jnp.pad(x, ((0, 0), (0, _IN_PAD - F)))

    # Batch tile: multiple of 16 so bf16 LHS vregs (16 sublanes) are full, and
    # as large as block_b allows to fill the MXU M-dim and amortize the
    # ~0.35 us per-grid-step overhead.
    TB = min(_round_up(block_b, 16), _round_up(B, 16))
    B_pad = _round_up(B, TB)
    # v7x: the two TensorCores split "parallel" grid steps; keep >= 2 steps
    # when that still leaves a full 256-row M tile per step.
    if B_pad // TB < 2 and TB >= 512 and (TB // 2) % 16 == 0:
        TB //= 2
    if B_pad != B:
        x = jnp.pad(x, ((0, B_pad - B), (0, 0)))
        eps = jnp.pad(eps, ((0, B_pad - B), (0, 0)))

    flat = []
    for w, b in params["encoder"]:
        flat += [w, b]
    flat += [params["head_w"], params["head_b"]]
    for w, b in params["decoder"]:
        flat += [w, b]

    in_specs = [
        pl.BlockSpec((TB, _IN_PAD), lambda i: (i, 0)),     # x: batch-tiled
        pl.BlockSpec((TB, _LATENT), lambda i: (i, 0)),     # eps: batch-tiled
    ]
    # Weights/biases: full-array blocks with a constant index_map (DMA'd once,
    # VMEM-resident across all batch tiles) and single-buffered — the second
    # pipeline buffer would be dead space since they are never revisited.
    for p in flat:
        in_specs.append(
            pl.BlockSpec(p.shape, lambda i: (0, 0),
                         pipeline_mode=pl.Buffered(1)))

    out_shapes = (
        jax.ShapeDtypeStruct((B_pad, _IN_PAD), jnp.float32),       # recon (padded)
        jax.ShapeDtypeStruct((B_pad, 3 * _LATENT), jnp.float32),   # [mean|logvar|z]
    )
    out_specs = (
        pl.BlockSpec((TB, _IN_PAD), lambda i: (i, 0)),
        pl.BlockSpec((TB, 3 * _LATENT), lambda i: (i, 0)),
    )

    recon_p, lat_p = pl.pallas_call(
        _vae_fused_kernel,
        grid=(B_pad // TB,),
        in_specs=in_specs,
        out_specs=out_specs,
        out_shape=out_shapes,
        compiler_params=pltpu.CompilerParams(
            dimension_semantics=("parallel",),    # batch tiles split across TCs
            vmem_limit_bytes=_vmem_limit_bytes(TB),
        ),
    )(x, eps, *flat)

    recon = recon_p[:B, :_IN_FEATURES]
    mean = lat_p[:B, 0:_LATENT]
    logvar = lat_p[:B, _LATENT:2 * _LATENT]
    z = lat_p[:B, 2 * _LATENT:]
    return recon, mean, logvar, z


# ---------------------------------------------------------------------------
# Parameter initialization (deterministic, PyTorch nn.Linear-style uniform).
# Weights stored [in, out] in bf16, biases as (1, out) f32.  The first encoder
# layer's K and the last decoder layer's N are zero-padded 784 -> 896 so every
# matmul / store is lane-dense; the zero padding does not change the math.
# ---------------------------------------------------------------------------

def _init_linear(key, fan_in, fan_out, *, pad_in=0, pad_out=0, w_dtype=jnp.bfloat16):
    kw, kb = jax.random.split(key)
    bound = 1.0 / (fan_in ** 0.5)
    w = jax.random.uniform(kw, (fan_in, fan_out), jnp.float32, -bound, bound)
    b = jax.random.uniform(kb, (1, fan_out), jnp.float32, -bound, bound)
    if pad_in:
        w = jnp.pad(w, ((0, pad_in), (0, 0)))        # zero rows: no effect
    if pad_out:
        w = jnp.pad(w, ((0, 0), (0, pad_out)))       # zero cols: sliced off later
        b = jnp.pad(b, ((0, 0), (0, pad_out)))
    return w.astype(w_dtype), b


def init_vae_params(key, w_dtype=jnp.bfloat16):
    keys = jax.random.split(key, 11)
    enc = [
        _init_linear(keys[0], _IN_FEATURES, 512,
                     pad_in=_IN_PAD - _IN_FEATURES, w_dtype=w_dtype),
        _init_linear(keys[1], 512, 256, w_dtype=w_dtype),
        _init_linear(keys[2], 256, 128, w_dtype=w_dtype),
        _init_linear(keys[3], 128, 64, w_dtype=w_dtype),
    ]
    wm, bm = _init_linear(keys[4], 64, _LATENT, w_dtype=w_dtype)
    wl, bl = _init_linear(keys[5], 64, _LATENT, w_dtype=w_dtype)
    dec = [
        _init_linear(keys[6], _LATENT, 64, w_dtype=w_dtype),
        _init_linear(keys[7], 64, 128, w_dtype=w_dtype),
        _init_linear(keys[8], 128, 256, w_dtype=w_dtype),
        _init_linear(keys[9], 256, 512, w_dtype=w_dtype),
        _init_linear(keys[10], 512, _IN_FEATURES,
                     pad_out=_IN_PAD - _IN_FEATURES, w_dtype=w_dtype),
    ]
    return {
        "encoder": enc,
        # mean / logvar heads fused into one (64, 2*LATENT) matmul.
        "head_w": jnp.concatenate([wm, wl], axis=1),
        "head_b": jnp.concatenate([bm, bl], axis=1),
        "decoder": dec,
    }


# ---------------------------------------------------------------------------
# Pure-JAX reference (mirrors the kernel's bf16 matmul / f32 accumulation).
# ---------------------------------------------------------------------------

def vae_reference(params, x, eps):
    def dense(h, w, b, act):
        y = jnp.dot(h.astype(w.dtype), w, preferred_element_type=jnp.float32) + b
        if act == "relu":
            return jnp.maximum(y, 0.0)
        if act == "sigmoid":
            return jax.nn.sigmoid(y)
        return y

    h = jnp.pad(x, ((0, 0), (0, _IN_PAD - x.shape[1])))
    for w, b in params["encoder"]:
        h = dense(h, w, b, "relu")
    ml = dense(h, params["head_w"], params["head_b"], "none")
    mean, logvar = ml[:, :_LATENT], ml[:, _LATENT:]
    z = 0.5 * jnp.exp(logvar) * eps + mean            # matches VAE.reparam
    w1, b1 = params["decoder"][0]
    d = jnp.maximum(z @ w1.astype(jnp.float32) + b1, 0.0)   # f32, like the kernel
    for w, b in params["decoder"][1:-1]:
        d = dense(d, w, b, "relu")
    w, b = params["decoder"][-1]
    recon = dense(d, w, b, "sigmoid")[:, :_IN_FEATURES]
    return recon, mean, logvar, z


# ---------------------------------------------------------------------------
# Main
# ---------------------------------------------------------------------------

if __name__ == "__main__":
    key = jax.random.PRNGKey(0)
    k_params, k_x, k_eps = jax.random.split(key, 3)

    B = 48
    params = init_vae_params(k_params)
    x = jax.random.uniform(k_x, (B, _IN_FEATURES), jnp.float32)   # flattened image
    eps = jax.random.normal(k_eps, (B, _LATENT), jnp.float32)     # reparam noise

    fwd = jax.jit(vae_forward, static_argnames=("block_b",))
    # Small demo batch: block_b=32 (multiple of 16) -> grid=(2,), exercising the
    # batch-tiling path with VMEM-resident, single-buffered weights.  Production
    # batches should keep the default block_b=256 (or larger) to fill the MXU.
    recon, mean, logvar, z = fwd(params, x, eps, block_b=32)
    jax.block_until_ready((recon, mean, logvar, z))

    assert recon.shape == (B, _IN_FEATURES)
    assert mean.shape == (B, _LATENT)
    assert logvar.shape == (B, _LATENT)
    assert z.shape == (B, _LATENT)
    assert bool(jnp.all((recon >= 0.0) & (recon <= 1.0)))   # sigmoid range check

    # Correctness check vs. pure-JAX reference using the same bf16 weights.
    r_ref, m_ref, lv_ref, z_ref = vae_reference(params, x, eps)
    assert bool(jnp.allclose(mean, m_ref, atol=1e-2, rtol=1e-2))
    assert bool(jnp.allclose(logvar, lv_ref, atol=1e-2, rtol=1e-2))
    assert bool(jnp.allclose(z, z_ref, atol=1e-2, rtol=1e-2))
    assert bool(jnp.allclose(recon, r_ref, atol=1e-2, rtol=1e-2))

    print("KERNEL_OK")
</pallas_src>

<mosaic_0001>
module attributes {stable_mosaic.version = 11 : i64} {
  func.func @_vae_fused_kernel(%arg0: i32, %arg1: memref<32x896xf32, #tpu.memory_space<vmem>>, %arg2: memref<32x2xf32, #tpu.memory_space<vmem>>, %arg3: memref<896x512xbf16, #tpu.memory_space<vmem>>, %arg4: memref<1x512xf32, #tpu.memory_space<vmem>>, %arg5: memref<512x256xbf16, #tpu.memory_space<vmem>>, %arg6: memref<1x256xf32, #tpu.memory_space<vmem>>, %arg7: memref<256x128xbf16, #tpu.memory_space<vmem>>, %arg8: memref<1x128xf32, #tpu.memory_space<vmem>>, %arg9: memref<128x64xbf16, #tpu.memory_space<vmem>>, %arg10: memref<1x64xf32, #tpu.memory_space<vmem>>, %arg11: memref<64x4xbf16, #tpu.memory_space<vmem>>, %arg12: memref<1x4xf32, #tpu.memory_space<vmem>>, %arg13: memref<2x64xbf16, #tpu.memory_space<vmem>>, %arg14: memref<1x64xf32, #tpu.memory_space<vmem>>, %arg15: memref<64x128xbf16, #tpu.memory_space<vmem>>, %arg16: memref<1x128xf32, #tpu.memory_space<vmem>>, %arg17: memref<128x256xbf16, #tpu.memory_space<vmem>>, %arg18: memref<1x256xf32, #tpu.memory_space<vmem>>, %arg19: memref<256x512xbf16, #tpu.memory_space<vmem>>, %arg20: memref<1x512xf32, #tpu.memory_space<vmem>>, %arg21: memref<512x896xbf16, #tpu.memory_space<vmem>>, %arg22: memref<1x896xf32, #tpu.memory_space<vmem>>, %arg23: memref<32x896xf32, #tpu.memory_space<vmem>>, %arg24: memref<32x6xf32, #tpu.memory_space<vmem>>) attributes {dimension_semantics = [#tpu.dimension_semantics<parallel>], iteration_bounds = array<i64: 2>, scalar_prefetch = 0 : i64, scratch_operands = 0 : i64, tpu.core_type = #tpu.core_type<tc>, window_params = [{transform_indices = @transform_0, window_bounds = array<i64: 32, 896>}, {transform_indices = @transform_1, window_bounds = array<i64: 32, 2>}, {pipeline_mode = #tpu.pipeline_mode<synchronous>, transform_indices = @transform_2, window_bounds = array<i64: 896, 512>}, {pipeline_mode = #tpu.pipeline_mode<synchronous>, transform_indices = @transform_3, window_bounds = array<i64: 1, 512>}, {pipeline_mode = #tpu.pipeline_mode<synchronous>, transform_indices = @transform_4, window_bounds = array<i64: 512, 256>}, {pipeline_mode = #tpu.pipeline_mode<synchronous>, transform_indices = @transform_5, window_bounds = array<i64: 1, 256>}, {pipeline_mode = #tpu.pipeline_mode<synchronous>, transform_indices = @transform_6, window_bounds = array<i64: 256, 128>}, {pipeline_mode = #tpu.pipeline_mode<synchronous>, transform_indices = @transform_7, window_bounds = array<i64: 1, 128>}, {pipeline_mode = #tpu.pipeline_mode<synchronous>, transform_indices = @transform_8, window_bounds = array<i64: 128, 64>}, {pipeline_mode = #tpu.pipeline_mode<synchronous>, transform_indices = @transform_9, window_bounds = array<i64: 1, 64>}, {pipeline_mode = #tpu.pipeline_mode<synchronous>, transform_indices = @transform_10, window_bounds = array<i64: 64, 4>}, {pipeline_mode = #tpu.pipeline_mode<synchronous>, transform_indices = @transform_11, window_bounds = array<i64: 1, 4>}, {pipeline_mode = #tpu.pipeline_mode<synchronous>, transform_indices = @transform_12, window_bounds = array<i64: 2, 64>}, {pipeline_mode = #tpu.pipeline_mode<synchronous>, transform_indices = @transform_13, window_bounds = array<i64: 1, 64>}, {pipeline_mode = #tpu.pipeline_mode<synchronous>, transform_indices = @transform_14, window_bounds = array<i64: 64, 128>}, {pipeline_mode = #tpu.pipeline_mode<synchronous>, transform_indices = @transform_15, window_bounds = array<i64: 1, 128>}, {pipeline_mode = #tpu.pipeline_mode<synchronous>, transform_indices = @transform_16, window_bounds = array<i64: 128, 256>}, {pipeline_mode = #tpu.pipeline_mode<synchronous>, transform_indices = @transform_17, window_bounds = array<i64: 1, 256>}, {pipeline_mode = #tpu.pipeline_mode<synchronous>, transform_indices = @transform_18, window_bounds = array<i64: 256, 512>}, {pipeline_mode = #tpu.pipeline_mode<synchronous>, transform_indices = @transform_19, window_bounds = array<i64: 1, 512>}, {pipeline_mode = #tpu.pipeline_mode<synchronous>, transform_indices = @transform_20, window_bounds = array<i64: 512, 896>}, {pipeline_mode = #tpu.pipeline_mode<synchronous>, transform_indices = @transform_21, window_bounds = array<i64: 1, 896>}, {transform_indices = @transform_22, window_bounds = array<i64: 32, 896>}, {transform_indices = @transform_23, window_bounds = array<i64: 32, 6>}]} {
    %c0 = arith.constant 0 : index
    %c0_0 = arith.constant 0 : index
    %0 = vector.load %arg1[%c0, %c0_0] : memref<32x896xf32, #tpu.memory_space<vmem>>, vector<32x896xf32>
    %1 = arith.truncf %0 : vector<32x896xf32> to vector<32x896xbf16>
    %c0_1 = arith.constant 0 : index
    %c0_2 = arith.constant 0 : index
    %2 = vector.load %arg3[%c0_1, %c0_2] : memref<896x512xbf16, #tpu.memory_space<vmem>>, vector<896x512xbf16>
    %cst = arith.constant dense<0.000000e+00> : vector<32x512xf32>
    %3 = tpu.matmul %1, %2, %cst {dimension_numbers = #tpu.dot_dimension_numbers<[1], [0], [0], [1], [0, 0, 1, 1], [], []>} : vector<32x896xbf16>, vector<896x512xbf16>, vector<32x512xf32> -> vector<32x512xf32>
    %c0_3 = arith.constant 0 : index
    %c0_4 = arith.constant 0 : index
    %4 = vector.load %arg4[%c0_3, %c0_4] : memref<1x512xf32, #tpu.memory_space<vmem>>, vector<1x512xf32>
    %5 = vector.broadcast %4 : vector<1x512xf32> to vector<32x512xf32>
    %6 = arith.addf %3, %5 : vector<32x512xf32>
    %cst_5 = arith.constant 0.000000e+00 : f32
    %7 = vector.broadcast %cst_5 : f32 to vector<32x512xf32>
    %8 = arith.maximumf %6, %7 : vector<32x512xf32>
    %9 = arith.truncf %8 : vector<32x512xf32> to vector<32x512xbf16>
    %c0_6 = arith.constant 0 : index
    %c0_7 = arith.constant 0 : index
    %10 = vector.load %arg5[%c0_6, %c0_7] : memref<512x256xbf16, #tpu.memory_space<vmem>>, vector<512x256xbf16>
    %cst_8 = arith.constant dense<0.000000e+00> : vector<32x256xf32>
    %11 = tpu.matmul %9, %10, %cst_8 {dimension_numbers = #tpu.dot_dimension_numbers<[1], [0], [0], [1], [0, 0, 1, 1], [], []>} : vector<32x512xbf16>, vector<512x256xbf16>, vector<32x256xf32> -> vector<32x256xf32>
    %c0_9 = arith.constant 0 : index
    %c0_10 = arith.constant 0 : index
    %12 = vector.load %arg6[%c0_9, %c0_10] : memref<1x256xf32, #tpu.memory_space<vmem>>, vector<1x256xf32>
    %13 = vector.broadcast %12 : vector<1x256xf32> to vector<32x256xf32>
    %14 = arith.addf %11, %13 : vector<32x256xf32>
    %cst_11 = arith.constant 0.000000e+00 : f32
    %15 = vector.broadcast %cst_11 : f32 to vector<32x256xf32>
    %16 = arith.maximumf %14, %15 : vector<32x256xf32>
    %17 = arith.truncf %16 : vector<32x256xf32> to vector<32x256xbf16>
    %c0_12 = arith.constant 0 : index
    %c0_13 = arith.constant 0 : index
    %18 = vector.load %arg7[%c0_12, %c0_13] : memref<256x128xbf16, #tpu.memory_space<vmem>>, vector<256x128xbf16>
    %cst_14 = arith.constant dense<0.000000e+00> : vector<32x128xf32>
    %19 = tpu.matmul %17, %18, %cst_14 {dimension_numbers = #tpu.dot_dimension_numbers<[1], [0], [0], [1], [0, 0, 1, 1], [], []>} : vector<32x256xbf16>, vector<256x128xbf16>, vector<32x128xf32> -> vector<32x128xf32>
    %c0_15 = arith.constant 0 : index
    %c0_16 = arith.constant 0 : index
    %20 = vector.load %arg8[%c0_15, %c0_16] : memref<1x128xf32, #tpu.memory_space<vmem>>, vector<1x128xf32>
    %21 = vector.broadcast %20 : vector<1x128xf32> to vector<32x128xf32>
    %22 = arith.addf %19, %21 : vector<32x128xf32>
    %cst_17 = arith.constant 0.000000e+00 : f32
    %23 = vector.broadcast %cst_17 : f32 to vector<32x128xf32>
    %24 = arith.maximumf %22, %23 : vector<32x128xf32>
    %25 = arith.truncf %24 : vector<32x128xf32> to vector<32x128xbf16>
    %c0_18 = arith.constant 0 : index
    %c0_19 = arith.constant 0 : index
    %26 = vector.load %arg9[%c0_18, %c0_19] : memref<128x64xbf16, #tpu.memory_space<vmem>>, vector<128x64xbf16>
    %cst_20 = arith.constant dense<0.000000e+00> : vector<32x64xf32>
    %27 = tpu.matmul %25, %26, %cst_20 {dimension_numbers = #tpu.dot_dimension_numbers<[1], [0], [0], [1], [0, 0, 1, 1], [], []>} : vector<32x128xbf16>, vector<128x64xbf16>, vector<32x64xf32> -> vector<32x64xf32>
    %c0_21 = arith.constant 0 : index
    %c0_22 = arith.constant 0 : index
    %28 = vector.load %arg10[%c0_21, %c0_22] : memref<1x64xf32, #tpu.memory_space<vmem>>, vector<1x64xf32>
    %29 = vector.broadcast %28 : vector<1x64xf32> to vector<32x64xf32>
    %30 = arith.addf %27, %29 : vector<32x64xf32>
    %cst_23 = arith.constant 0.000000e+00 : f32
    %31 = vector.broadcast %cst_23 : f32 to vector<32x64xf32>
    %32 = arith.maximumf %30, %31 : vector<32x64xf32>
    %33 = arith.truncf %32 : vector<32x64xf32> to vector<32x64xbf16>
    %c0_24 = arith.constant 0 : index
    %c0_25 = arith.constant 0 : index
    %34 = vector.load %arg11[%c0_24, %c0_25] : memref<64x4xbf16, #tpu.memory_space<vmem>>, vector<64x4xbf16>
    %cst_26 = arith.constant dense<0.000000e+00> : vector<32x4xf32>
    %35 = tpu.matmul %33, %34, %cst_26 {dimension_numbers = #tpu.dot_dimension_numbers<[1], [0], [0], [1], [0, 0, 1, 1], [], []>} : vector<32x64xbf16>, vector<64x4xbf16>, vector<32x4xf32> -> vector<32x4xf32>
    %c0_27 = arith.constant 0 : index
    %c0_28 = arith.constant 0 : index
    %36 = vector.load %arg12[%c0_27, %c0_28] : memref<1x4xf32, #tpu.memory_space<vmem>>, vector<1x4xf32>
    %37 = vector.broadcast %36 : vector<1x4xf32> to vector<32x4xf32>
    %38 = arith.addf %35, %37 : vector<32x4xf32>
    %39 = vector.extract_strided_slice %38 {offsets = [0, 0], sizes = [32, 2], strides = [1, 1]} : vector<32x4xf32> to vector<32x2xf32>
    %40 = vector.extract_strided_slice %38 {offsets = [0, 2], sizes = [32, 2], strides = [1, 1]} : vector<32x4xf32> to vector<32x2xf32>
    %41 = math.exp %40 : vector<32x2xf32>
    %cst_29 = arith.constant 5.000000e-01 : f32
    %42 = vector.broadcast %cst_29 : f32 to vector<32x2xf32>
    %43 = arith.mulf %42, %41 : vector<32x2xf32>
    %c0_30 = arith.constant 0 : index
    %c0_31 = arith.constant 0 : index
    %44 = vector.load %arg2[%c0_30, %c0_31] : memref<32x2xf32, #tpu.memory_space<vmem>>, vector<32x2xf32>
    %45 = arith.mulf %43, %44 : vector<32x2xf32>
    %46 = arith.addf %45, %39 : vector<32x2xf32>
    %c0_32 = arith.constant 0 : index
    %c0_33 = arith.constant 0 : index
    %47 = vector.load %arg13[%c0_32, %c0_33] : memref<2x64xbf16, #tpu.memory_space<vmem>>, vector<2x64xbf16>
    %48 = arith.extf %47 : vector<2x64xbf16> to vector<2x64xf32>
    %49 = vector.extract_strided_slice %46 {offsets = [0, 0], sizes = [32, 1], strides = [1, 1]} : vector<32x2xf32> to vector<32x1xf32>
    %50 = vector.extract_strided_slice %48 {offsets = [0, 0], sizes = [1, 64], strides = [1, 1]} : vector<2x64xf32> to vector<1x64xf32>
    %51 = vector.broadcast %49 : vector<32x1xf32> to vector<32x64xf32>
    %52 = vector.broadcast %50 : vector<1x64xf32> to vector<32x64xf32>
    %53 = arith.mulf %51, %52 : vector<32x64xf32>
    %54 = vector.extract_strided_slice %46 {offsets = [0, 1], sizes = [32, 1], strides = [1, 1]} : vector<32x2xf32> to vector<32x1xf32>
    %55 = vector.extract_strided_slice %48 {offsets = [1, 0], sizes = [1, 64], strides = [1, 1]} : vector<2x64xf32> to vector<1x64xf32>
    %56 = vector.broadcast %54 : vector<32x1xf32> to vector<32x64xf32>
    %57 = vector.broadcast %55 : vector<1x64xf32> to vector<32x64xf32>
    %58 = arith.mulf %56, %57 : vector<32x64xf32>
    %59 = arith.addf %53, %58 : vector<32x64xf32>
    %c0_34 = arith.constant 0 : index
    %c0_35 = arith.constant 0 : index
    %60 = vector.load %arg14[%c0_34, %c0_35] : memref<1x64xf32, #tpu.memory_space<vmem>>, vector<1x64xf32>
    %61 = vector.broadcast %60 : vector<1x64xf32> to vector<32x64xf32>
    %62 = arith.addf %59, %61 : vector<32x64xf32>
    %cst_36 = arith.constant 0.000000e+00 : f32
    %63 = vector.broadcast %cst_36 : f32 to vector<32x64xf32>
    %64 = arith.maximumf %62, %63 : vector<32x64xf32>
    %65 = arith.truncf %64 : vector<32x64xf32> to vector<32x64xbf16>
    %c0_37 = arith.constant 0 : index
    %c0_38 = arith.constant 0 : index
    %66 = vector.load %arg15[%c0_37, %c0_38] : memref<64x128xbf16, #tpu.memory_space<vmem>>, vector<64x128xbf16>
    %cst_39 = arith.constant dense<0.000000e+00> : vector<32x128xf32>
    %67 = tpu.matmul %65, %66, %cst_39 {dimension_numbers = #tpu.dot_dimension_numbers<[1], [0], [0], [1], [0, 0, 1, 1], [], []>} : vector<32x64xbf16>, vector<64x128xbf16>, vector<32x128xf32> -> vector<32x128xf32>
    %c0_40 = arith.constant 0 : index
    %c0_41 = arith.constant 0 : index
    %68 = vector.load %arg16[%c0_40, %c0_41] : memref<1x128xf32, #tpu.memory_space<vmem>>, vector<1x128xf32>
    %69 = vector.broadcast %68 : vector<1x128xf32> to vector<32x128xf32>
    %70 = arith.addf %67, %69 : vector<32x128xf32>
    %cst_42 = arith.constant 0.000000e+00 : f32
    %71 = vector.broadcast %cst_42 : f32 to vector<32x128xf32>
    %72 = arith.maximumf %70, %71 : vector<32x128xf32>
    %73 = arith.truncf %72 : vector<32x128xf32> to vector<32x128xbf16>
    %c0_43 = arith.constant 0 : index
    %c0_44 = arith.constant 0 : index
    %74 = vector.load %arg17[%c0_43, %c0_44] : memref<128x256xbf16, #tpu.memory_space<vmem>>, vector<128x256xbf16>
    %cst_45 = arith.constant dense<0.000000e+00> : vector<32x256xf32>
    %75 = tpu.matmul %73, %74, %cst_45 {dimension_numbers = #tpu.dot_dimension_numbers<[1], [0], [0], [1], [0, 0, 1, 1], [], []>} : vector<32x128xbf16>, vector<128x256xbf16>, vector<32x256xf32> -> vector<32x256xf32>
    %c0_46 = arith.constant 0 : index
    %c0_47 = arith.constant 0 : index
    %76 = vector.load %arg18[%c0_46, %c0_47] : memref<1x256xf32, #tpu.memory_space<vmem>>, vector<1x256xf32>
    %77 = vector.broadcast %76 : vector<1x256xf32> to vector<32x256xf32>
    %78 = arith.addf %75, %77 : vector<32x256xf32>
    %cst_48 = arith.constant 0.000000e+00 : f32
    %79 = vector.broadcast %cst_48 : f32 to vector<32x256xf32>
    %80 = arith.maximumf %78, %79 : vector<32x256xf32>
    %81 = arith.truncf %80 : vector<32x256xf32> to vector<32x256xbf16>
    %c0_49 = arith.constant 0 : index
    %c0_50 = arith.constant 0 : index
    %82 = vector.load %arg19[%c0_49, %c0_50] : memref<256x512xbf16, #tpu.memory_space<vmem>>, vector<256x512xbf16>
    %cst_51 = arith.constant dense<0.000000e+00> : vector<32x512xf32>
    %83 = tpu.matmul %81, %82, %cst_51 {dimension_numbers = #tpu.dot_dimension_numbers<[1], [0], [0], [1], [0, 0, 1, 1], [], []>} : vector<32x256xbf16>, vector<256x512xbf16>, vector<32x512xf32> -> vector<32x512xf32>
    %c0_52 = arith.constant 0 : index
    %c0_53 = arith.constant 0 : index
    %84 = vector.load %arg20[%c0_52, %c0_53] : memref<1x512xf32, #tpu.memory_space<vmem>>, vector<1x512xf32>
    %85 = vector.broadcast %84 : vector<1x512xf32> to vector<32x512xf32>
    %86 = arith.addf %83, %85 : vector<32x512xf32>
    %cst_54 = arith.constant 0.000000e+00 : f32
    %87 = vector.broadcast %cst_54 : f32 to vector<32x512xf32>
    %88 = arith.maximumf %86, %87 : vector<32x512xf32>
    %89 = arith.truncf %88 : vector<32x512xf32> to vector<32x512xbf16>
    %c0_55 = arith.constant 0 : index
    %c0_56 = arith.constant 0 : index
    %90 = vector.load %arg21[%c0_55, %c0_56] : memref<512x896xbf16, #tpu.memory_space<vmem>>, vector<512x896xbf16>
    %cst_57 = arith.constant dense<0.000000e+00> : vector<32x896xf32>
    %91 = tpu.matmul %89, %90, %cst_57 {dimension_numbers = #tpu.dot_dimension_numbers<[1], [0], [0], [1], [0, 0, 1, 1], [], []>} : vector<32x512xbf16>, vector<512x896xbf16>, vector<32x896xf32> -> vector<32x896xf32>
    %c0_58 = arith.constant 0 : index
    %c0_59 = arith.constant 0 : index
    %92 = vector.load %arg22[%c0_58, %c0_59] : memref<1x896xf32, #tpu.memory_space<vmem>>, vector<1x896xf32>
    %93 = vector.broadcast %92 : vector<1x896xf32> to vector<32x896xf32>
    %94 = arith.addf %91, %93 : vector<32x896xf32>
    %95 = arith.negf %94 : vector<32x896xf32>
    %96 = math.exp %95 : vector<32x896xf32>
    %cst_60 = arith.constant 1.000000e+00 : f32
    %97 = vector.broadcast %cst_60 : f32 to vector<32x896xf32>
    %98 = arith.addf %97, %96 : vector<32x896xf32>
    %99 = arith.divf %97, %98 : vector<32x896xf32>
    %c0_61 = arith.constant 0 : index
    %c0_62 = arith.constant 0 : index
    %100 = vector.load %arg23[%c0_61, %c0_62] : memref<32x896xf32, #tpu.memory_space<vmem>>, vector<32x896xf32>
    tpu.vector_store %arg23[%c0_61, %c0_62], %99 {strides = array<i32>} : memref<32x896xf32, #tpu.memory_space<vmem>>, vector<32x896xf32>,
    %101 = tpu.concatenate %38, %46 in 1 : vector<32x4xf32>, vector<32x2xf32> -> vector<32x6xf32>
    %c0_63 = arith.constant 0 : index
    %c0_64 = arith.constant 0 : index
    %102 = vector.load %arg24[%c0_63, %c0_64] : memref<32x6xf32, #tpu.memory_space<vmem>>, vector<32x6xf32>
    tpu.vector_store %arg24[%c0_63, %c0_64], %101 {strides = array<i32>} : memref<32x6xf32, #tpu.memory_space<vmem>>, vector<32x6xf32>,
    return
  }
  func.func @transform_0(%arg0: i32) -> (i32, i32) {
    %c0_i32 = arith.constant 0 : i32
    %c0_i32_0 = arith.constant 0 : i32
    return %arg0, %c0_i32 : i32, i32
  }
  func.func @transform_1(%arg0: i32) -> (i32, i32) {
    %c0_i32 = arith.constant 0 : i32
    %c0_i32_0 = arith.constant 0 : i32
    return %arg0, %c0_i32 : i32, i32
  }
  func.func @transform_2(%arg0: i32) -> (i32, i32) {
    %c0_i32 = arith.constant 0 : i32
    %c0_i32_0 = arith.constant 0 : i32
    %c0_i32_1 = arith.constant 0 : i32
    return %c0_i32, %c0_i32_0 : i32, i32
  }
  func.func @transform_3(%arg0: i32) -> (i32, i32) {
    %c0_i32 = arith.constant 0 : i32
    %c0_i32_0 = arith.constant 0 : i32
    %c0_i32_1 = arith.constant 0 : i32
    return %c0_i32, %c0_i32_0 : i32, i32
  }
  func.func @transform_4(%arg0: i32) -> (i32, i32) {
    %c0_i32 = arith.constant 0 : i32
    %c0_i32_0 = arith.constant 0 : i32
    %c0_i32_1 = arith.constant 0 : i32
    return %c0_i32, %c0_i32_0 : i32, i32
  }
  func.func @transform_5(%arg0: i32) -> (i32, i32) {
    %c0_i32 = arith.constant 0 : i32
    %c0_i32_0 = arith.constant 0 : i32
    %c0_i32_1 = arith.constant 0 : i32
    return %c0_i32, %c0_i32_0 : i32, i32
  }
  func.func @transform_6(%arg0: i32) -> (i32, i32) {
    %c0_i32 = arith.constant 0 : i32
    %c0_i32_0 = arith.constant 0 : i32
    %c0_i32_1 = arith.constant 0 : i32
    return %c0_i32, %c0_i32_0 : i32, i32
  }
  func.func @transform_7(%arg0: i32) -> (i32, i32) {
    %c0_i32 = arith.constant 0 : i32
    %c0_i32_0 = arith.constant 0 : i32
    %c0_i32_1 = arith.constant 0 : i32
    return %c0_i32, %c0_i32_0 : i32, i32
  }
  func.func @transform_8(%arg0: i32) -> (i32, i32) {
    %c0_i32 = arith.constant 0 : i32
    %c0_i32_0 = arith.constant 0 : i32
    %c0_i32_1 = arith.constant 0 : i32
    return %c0_i32, %c0_i32_0 : i32, i32
  }
  func.func @transform_9(%arg0: i32) -> (i32, i32) {
    %c0_i32 = arith.constant 0 : i32
    %c0_i32_0 = arith.constant 0 : i32
    %c0_i32_1 = arith.constant 0 : i32
    return %c0_i32, %c0_i32_0 : i32, i32
  }
  func.func @transform_10(%arg0: i32) -> (i32, i32) {
    %c0_i32 = arith.constant 0 : i32
    %c0_i32_0 = arith.constant 0 : i32
    %c0_i32_1 = arith.constant 0 : i32
    return %c0_i32, %c0_i32_0 : i32, i32
  }
  func.func @transform_11(%arg0: i32) -> (i32, i32) {
    %c0_i32 = arith.constant 0 : i32
    %c0_i32_0 = arith.constant 0 : i32
    %c0_i32_1 = arith.constant 0 : i32
    return %c0_i32, %c0_i32_0 : i32, i32
  }
  func.func @transform_12(%arg0: i32) -> (i32, i32) {
    %c0_i32 = arith.constant 0 : i32
    %c0_i32_0 = arith.constant 0 : i32
    %c0_i32_1 = arith.constant 0 : i32
    return %c0_i32, %c0_i32_0 : i32, i32
  }
  func.func @transform_13(%arg0: i32) -> (i32, i32) {
    %c0_i32 = arith.constant 0 : i32
    %c0_i32_0 = arith.constant 0 : i32
    %c0_i32_1 = arith.constant 0 : i32
    return %c0_i32, %c0_i32_0 : i32, i32
  }
  func.func @transform_14(%arg0: i32) -> (i32, i32) {
    %c0_i32 = arith.constant 0 : i32
    %c0_i32_0 = arith.constant 0 : i32
    %c0_i32_1 = arith.constant 0 : i32
    return %c0_i32, %c0_i32_0 : i32, i32
  }
  func.func @transform_15(%arg0: i32) -> (i32, i32) {
    %c0_i32 = arith.constant 0 : i32
    %c0_i32_0 = arith.constant 0 : i32
    %c0_i32_1 = arith.constant 0 : i32
    return %c0_i32, %c0_i32_0 : i32, i32
  }
  func.func @transform_16(%arg0: i32) -> (i32, i32) {
    %c0_i32 = arith.constant 0 : i32
    %c0_i32_0 = arith.constant 0 : i32
    %c0_i32_1 = arith.constant 0 : i32
    return %c0_i32, %c0_i32_0 : i32, i32
  }
  func.func @transform_17(%arg0: i32) -> (i32, i32) {
    %c0_i32 = arith.constant 0 : i32
    %c0_i32_0 = arith.constant 0 : i32
    %c0_i32_1 = arith.constant 0 : i32
    return %c0_i32, %c0_i32_0 : i32, i32
  }
  func.func @transform_18(%arg0: i32) -> (i32, i32) {
    %c0_i32 = arith.constant 0 : i32
    %c0_i32_0 = arith.constant 0 : i32
    %c0_i32_1 = arith.constant 0 : i32
    return %c0_i32, %c0_i32_0 : i32, i32
  }
  func.func @transform_19(%arg0: i32) -> (i32, i32) {
    %c0_i32 = arith.constant 0 : i32
    %c0_i32_0 = arith.constant 0 : i32
    %c0_i32_1 = arith.constant 0 : i32
    return %c0_i32, %c0_i32_0 : i32, i32
  }
  func.func @transform_20(%arg0: i32) -> (i32, i32) {
    %c0_i32 = arith.constant 0 : i32
    %c0_i32_0 = arith.constant 0 : i32
    %c0_i32_1 = arith.constant 0 : i32
    return %c0_i32, %c0_i32_0 : i32, i32
  }
  func.func @transform_21(%arg0: i32) -> (i32, i32) {
    %c0_i32 = arith.constant 0 : i32
    %c0_i32_0 = arith.constant 0 : i32
    %c0_i32_1 = arith.constant 0 : i32
    return %c0_i32, %c0_i32_0 : i32, i32
  }
  func.func @transform_22(%arg0: i32) -> (i32, i32) {
    %c0_i32 = arith.constant 0 : i32
    %c0_i32_0 = arith.constant 0 : i32
    return %arg0, %c0_i32 : i32, i32
  }
  func.func @transform_23(%arg0: i32) -> (i32, i32) {
    %c0_i32 = arith.constant 0 : i32
    %c0_i32_0 = arith.constant 0 : i32
    return %arg0, %c0_i32 : i32, i32
  }
}

</mosaic_0001>

<llo_original>
// kernel: vae_forward.1
$region0: #{vae_forward.1}
  #allocation0 [shape = 'u32[]', space=smem, size = 0x4, offset = 0x4, fixed_abs, tag = 'smem constant byte address 0x4 - core index']
  #allocation1 [shape = 'u32[144,128]{1,0:T(1,128)}', space=vmem, size = 0x12000, scoped, tag = 'internal scratch']
  %s0 = inlined_call_operand.vmem [shape: f32[64,896], index: 0, kind: input, shape index: {}]
  %s1 = inlined_call_operand.vmem [shape: f32[64,2], index: 1, kind: input, shape index: {}]
  %s2 = inlined_call_operand.hbm [shape: bf16[896,512], index: 2, kind: input, shape index: {}]
  %s3 = inlined_call_operand.hbm [shape: f32[1,512], index: 3, kind: input, shape index: {}]
  %s4 = inlined_call_operand.vmem [shape: bf16[512,256], index: 4, kind: input, shape index: {}]
  %s5 = inlined_call_operand.vmem [shape: f32[1,256], index: 5, kind: input, shape index: {}]
  %s6 = inlined_call_operand.hbm [shape: bf16[256,128], index: 6, kind: input, shape index: {}]
  %s7 = inlined_call_operand.vmem [shape: f32[1,128], index: 7, kind: input, shape index: {}]
  %s8 = inlined_call_operand.vmem [shape: bf16[128,64], index: 8, kind: input, shape index: {}]
  %s9 = inlined_call_operand.vmem [shape: f32[1,64], index: 9, kind: input, shape index: {}]
  %s10 = inlined_call_operand.vmem [shape: bf16[64,4], index: 10, kind: input, shape index: {}]
  %s11 = inlined_call_operand.vmem [shape: f32[1,4], index: 11, kind: input, shape index: {}]
  %s12 = inlined_call_operand.hbm [shape: bf16[2,64], index: 12, kind: input, shape index: {}]
  %s13 = inlined_call_operand.hbm [shape: f32[1,64], index: 13, kind: input, shape index: {}]
  %s14 = inlined_call_operand.vmem [shape: bf16[64,128], index: 14, kind: input, shape index: {}]
  %s15 = inlined_call_operand.hbm [shape: f32[1,128], index: 15, kind: input, shape index: {}]
  %s16 = inlined_call_operand.hbm [shape: bf16[128,256], index: 16, kind: input, shape index: {}]
  %s17 = inlined_call_operand.hbm [shape: f32[1,256], index: 17, kind: input, shape index: {}]
  %s18 = inlined_call_operand.vmem [shape: bf16[256,512], index: 18, kind: input, shape index: {}]
  %s19 = inlined_call_operand.hbm [shape: f32[1,512], index: 19, kind: input, shape index: {}]
  %s20 = inlined_call_operand.hbm [shape: bf16[512,896], index: 20, kind: input, shape index: {}]
  %s21 = inlined_call_operand.hbm [shape: f32[1,896], index: 21, kind: input, shape index: {}]
  %s22 = inlined_call_operand.vmem [shape: f32[64,896], index: 22, kind: output, shape index: {0}]
  %s23 = inlined_call_operand.vmem [shape: f32[64,6], index: 23, kind: output, shape index: {1}]
  %24 = xla_tuple %s22, %s23
  %s25 = sld [smem:[#allocation0]]
  $region173: #{vae_forward.1} parent=0
    _
  %s27 = ssub.s32 1, %s25
  %s28 = scalar_select 0, %s27, %s25
  $region1: #{vae_forward.1} parent=0
    #allocation2 [shape = 'u8[917504]{0}', space=vmem, size = 0xe0000, scoped, tag = 'input window, operand 2, single buffered']
    #allocation3 [shape = 's32[2]{0}', space=sflag, size = 0x8, scoped, tag = 'scoped memory for vae_forward.1']
    #allocation4 [shape = 'u8[2048]{0}', space=vmem, size = 0x800, scoped, tag = 'input window, operand 3, single buffered']
    #allocation5 [shape = 's32[1]{0}', space=sflag, size = 0x4, scoped, tag = 'scoped memory for vae_forward.1']
    #allocation6 [shape = 'u8[65536]{0}', space=vmem, size = 0x10000, scoped, tag = 'input window, operand 6, single buffered']
    #allocation7 [shape = 'u8[512]{0}', space=vmem, size = 0x400, scoped, tag = 'input window, operand 12, single buffered']
    #allocation8 [shape = 's32[1]{0}', space=sflag, size = 0x4, scoped, tag = 'scoped memory for vae_forward.1']
    #allocation9 [shape = 'u8[512]{0}', space=vmem, size = 0x400, scoped, tag = 'input window, operand 13, single buffered']
    #allocation10 [shape = 'u8[512]{0}', space=vmem, size = 0x400, scoped, tag = 'input window, operand 15, single buffered']
    #allocation11 [shape = 's32[1]{0}', space=sflag, size = 0x4, scoped, tag = 'scoped memory for vae_forward.1']
    #allocation12 [shape = 'u8[65536]{0}', space=vmem, size = 0x10000, scoped, tag = 'input window, operand 16, single buffered']
    #allocation13 [shape = 'u8[1024]{0}', space=vmem, size = 0x400, scoped, tag = 'input window, operand 17, single buffered']
    #allocation14 [shape = 's32[1]{0}', space=sflag, size = 0x4, scoped, tag = 'scoped memory for vae_forward.1']
    #allocation15 [shape = 'u8[2048]{0}', space=vmem, size = 0x800, scoped, tag = 'input window, operand 19, single buffered']
    #allocation16 [shape = 'u8[917504]{0}', space=vmem, size = 0xe0000, scoped, tag = 'input window, operand 20, single buffered']
    #allocation17 [shape = 's32[1]{0}', space=sflag, size = 0x4, scoped, tag = 'scoped memory for vae_forward.1']
    #allocation18 [shape = 'u8[3584]{0}', space=vmem, size = 0x1000, scoped, tag = 'input window, operand 21, single buffered']
    %29 = vsyncpa [#allocation3], 0
    %30 = vsyncpa [#allocation5], 0
    %31 = vsyncpa [#allocation8], 0
    %32 = vsyncpa [#allocation11], 0
    %33 = vsyncpa [#allocation14], 0
    %34 = vsyncpa [#allocation17], 0
    loop: start=0, step=1, limit=4
    $region2: #{vae_forward.1} parent=1 // loop_pre_header
      _
    $region3: #{vae_forward.1} parent=1 // loop_header
      %s36 = sphi 0, %s40
      %p37 = scmp.ge.s32.totalorder %s36, 4
      %s46 = sphi 0, %s48
      %s49 = sphi 0, %s46
      %s50 = sphi 0, %s49
      %s66 = sphi 0, %s50
      %s72 = sphi 0, %s74
      %s75 = sphi 0, %s72
      %s76 = sphi 0, %s75
      %s92 = sphi 0, %s76
      %s96 = sphi 0, %s96
      %s98 = sphi 0, %s96
      %s99 = sphi 0, %s98
      %s113 = sphi 0, %s99
      %s117 = sphi 0, %s117
      %s119 = sphi 0, %s117
      %s120 = sphi 0, %s119
      %s134 = sphi 0, %s120
      %s138 = sphi 0, %s138
      %s140 = sphi 0, %s138
      %s141 = sphi 0, %s140
      %s155 = sphi 0, %s141
      %s159 = sphi 0, %s159
      %s161 = sphi 0, %s159
      %s162 = sphi 0, %s161
      %s176 = sphi 0, %s162
      %s180 = sphi 0, %s180
      %s182 = sphi 0, %s180
      %s183 = sphi 0, %s182
      %s197 = sphi 0, %s183
      %s201 = sphi 0, %s201
      %s203 = sphi 0, %s201
      %s204 = sphi 0, %s203
      %s218 = sphi 0, %s204
      %s222 = sphi 0, %s222
      %s224 = sphi 0, %s222
      %s225 = sphi 0, %s224
      %s239 = sphi 0, %s225
      %s243 = sphi 0, %s243
      %s245 = sphi 0, %s243
      %s246 = sphi 0, %s245
      %s260 = sphi 0, %s246
      %s264 = sphi 0, %s264
      %s266 = sphi 0, %s264
      %s267 = sphi 0, %s266
      %s281 = sphi 0, %s267
      %s285 = sphi 0, %s285
      %s287 = sphi 0, %s285
      %s288 = sphi 0, %s287
      %s302 = sphi 0, %s288
      %s306 = sphi 0, %s306
      %s308 = sphi 0, %s306
      %s309 = sphi 0, %s308
      %s323 = sphi 0, %s309
      %s327 = sphi 0, %s327
      %s329 = sphi 0, %s327
      %s330 = sphi 0, %s329
      %s344 = sphi 0, %s330
      %s348 = sphi 0, %s348
      %s350 = sphi 0, %s348
      %s351 = sphi 0, %s350
      %s365 = sphi 0, %s351
      %s369 = sphi 0, %s369
      %s371 = sphi 0, %s369
      %s372 = sphi 0, %s371
      %s386 = sphi 0, %s372
      %s390 = sphi 0, %s390
      %s392 = sphi 0, %s390
      %s393 = sphi 0, %s392
      %s407 = sphi 0, %s393
      %s411 = sphi 0, %s411
      %s413 = sphi 0, %s411
      %s414 = sphi 0, %s413
      %s428 = sphi 0, %s414
      %s432 = sphi 0, %s432
      %s434 = sphi 0, %s432
      %s435 = sphi 0, %s434
      %s449 = sphi 0, %s435
      %s453 = sphi 0, %s453
      %s455 = sphi 0, %s453
      %s456 = sphi 0, %s455
      %s470 = sphi 0, %s456
      %s474 = sphi 0, %s474
      %s476 = sphi 0, %s474
      %s477 = sphi 0, %s476
      %s491 = sphi 0, %s477
      %s495 = sphi 0, %s495
      %s497 = sphi 0, %s495
      %s498 = sphi 0, %s497
      %s512 = sphi 0, %s498
      %s518 = sphi 0, %s520
      %s521 = sphi 0, %s518
      %s522 = sphi 0, %s521
      %s538 = sphi 0, %s522
      %s544 = sphi 0, %s546
      %s547 = sphi 0, %s544
      %s548 = sphi 0, %s547
      %s564 = sphi 0, %s548
    $region4: #{vae_forward.1} parent=1 // loop_header_branch
      %39 = sbr.rel (%p37) target = $region8
    $region5: #{vae_forward.1} parent=1 // loop_body
      %s41 = ssub.s32 %s36, 1
      %s42 = ssub.s32 %s36, 2
      %s43 = sadd.s32 %s36, 1
      %s44 = ssub.s32 %s36, %s43
      %p45 = scmp.eq.s32.totalorder %s44, 0
      %s47 = sadd.s32 %s46, 1
      %s48 = scalar_select %p45, %s46, %s47
      %p51 = pneg %p45
      %p52 = scmp.eq.s32.totalorder %s36, 1
      %p53 = por %p51, %p52
      %p54 = scmp.ne.s32.totalorder %s46, %s49
      %p55 = scmp.eq.s32.totalorder %s36, 0
      %p56 = por %p54, %p55
      %p57 = scmp.ne.s32.totalorder %s46, %s49
      %p58 = scmp.eq.s32.totalorder %s41, 1
      %p59 = por %p57, %p58
      %p60 = scmp.ne.s32.totalorder %s49, %s50
      %p61 = scmp.eq.s32.totalorder %s41, 0
      %p62 = por %p60, %p61
      %p63 = scmp.ne.s32.totalorder %s49, %s50
      %p64 = scmp.eq.s32.totalorder %s42, 1
      %p65 = por %p63, %p64
      %p67 = scmp.ne.s32.totalorder %s50, %s66
      %p68 = scmp.eq.s32.totalorder %s42, 0
      %p69 = por %p67, %p68
      %s70 = ssub.s32 %s36, %s43
      %p71 = scmp.eq.s32.totalorder %s70, 0
      %s73 = sadd.s32 %s72, 1
      %s74 = scalar_select %p71, %s72, %s73
      %p77 = pneg %p71
      %p78 = scmp.eq.s32.totalorder %s36, 1
      %p79 = por %p77, %p78
      %p80 = scmp.ne.s32.totalorder %s72, %s75
      %p81 = scmp.eq.s32.totalorder %s36, 0
      %p82 = por %p80, %p81
      %p83 = scmp.ne.s32.totalorder %s72, %s75
      %p84 = scmp.eq.s32.totalorder %s41, 1
      %p85 = por %p83, %p84
      %p86 = scmp.ne.s32.totalorder %s75, %s76
      %p87 = scmp.eq.s32.totalorder %s41, 0
      %p88 = por %p86, %p87
      %p89 = scmp.ne.s32.totalorder %s75, %s76
      %p90 = scmp.eq.s32.totalorder %s42, 1
      %p91 = por %p89, %p90
      %p93 = scmp.ne.s32.totalorder %s76, %s92
      %p94 = scmp.eq.s32.totalorder %s42, 0
      %p95 = por %p93, %p94
      %s97 = sadd.s32 %s96, 1
      %p100 = scmp.eq.s32.totalorder %s36, 1
      %p101 = scmp.ne.s32.totalorder %s96, %s98
      %p102 = scmp.eq.s32.totalorder %s36, 0
      %p103 = por %p101, %p102
      %p104 = scmp.ne.s32.totalorder %s96, %s98
      %p105 = scmp.eq.s32.totalorder %s41, 1
      %p106 = por %p104, %p105
      %p107 = scmp.ne.s32.totalorder %s98, %s99
      %p108 = scmp.eq.s32.totalorder %s41, 0
      %p109 = por %p107, %p108
      %p110 = scmp.ne.s32.totalorder %s98, %s99
      %p111 = scmp.eq.s32.totalorder %s42, 1
      %p112 = por %p110, %p111
      %p114 = scmp.ne.s32.totalorder %s99, %s113
      %p115 = scmp.eq.s32.totalorder %s42, 0
      %p116 = por %p114, %p115
      %s118 = sadd.s32 %s117, 1
      %p121 = scmp.eq.s32.totalorder %s36, 1
      %p122 = scmp.ne.s32.totalorder %s117, %s119
      %p123 = scmp.eq.s32.totalorder %s36, 0
      %p124 = por %p122, %p123
      %p125 = scmp.ne.s32.totalorder %s117, %s119
      %p126 = scmp.eq.s32.totalorder %s41, 1
      %p127 = por %p125, %p126
      %p128 = scmp.ne.s32.totalorder %s119, %s120
      %p129 = scmp.eq.s32.totalorder %s41, 0
      %p130 = por %p128, %p129
      %p131 = scmp.ne.s32.totalorder %s119, %s120
      %p132 = scmp.eq.s32.totalorder %s42, 1
      %p133 = por %p131, %p132
      %p135 = scmp.ne.s32.totalorder %s120, %s134
      %p136 = scmp.eq.s32.totalorder %s42, 0
      %p137 = por %p135, %p136
      %s139 = sadd.s32 %s138, 1
      %p142 = scmp.eq.s32.totalorder %s36, 1
      %p143 = scmp.ne.s32.totalorder %s138, %s140
      %p144 = scmp.eq.s32.totalorder %s36, 0
      %p145 = por %p143, %p144
      %p146 = scmp.ne.s32.totalorder %s138, %s140
      %p147 = scmp.eq.s32.totalorder %s41, 1
      %p148 = por %p146, %p147
      %p149 = scmp.ne.s32.totalorder %s140, %s141
      %p150 = scmp.eq.s32.totalorder %s41, 0
      %p151 = por %p149, %p150
      %p152 = scmp.ne.s32.totalorder %s140, %s141
      %p153 = scmp.eq.s32.totalorder %s42, 1
      %p154 = por %p152, %p153
      %p156 = scmp.ne.s32.totalorder %s141, %s155
      %p157 = scmp.eq.s32.totalorder %s42, 0
      %p158 = por %p156, %p157
      %s160 = sadd.s32 %s159, 1
      %p163 = scmp.eq.s32.totalorder %s36, 1
      %p164 = scmp.ne.s32.totalorder %s159, %s161
      %p165 = scmp.eq.s32.totalorder %s36, 0
      %p166 = por %p164, %p165
      %p167 = scmp.ne.s32.totalorder %s159, %s161
      %p168 = scmp.eq.s32.totalorder %s41, 1
      %p169 = por %p167, %p168
      %p170 = scmp.ne.s32.totalorder %s161, %s162
      %p171 = scmp.eq.s32.totalorder %s41, 0
      %p172 = por %p170, %p171
      %p173 = scmp.ne.s32.totalorder %s161, %s162
      %p174 = scmp.eq.s32.totalorder %s42, 1
      %p175 = por %p173, %p174
      %p177 = scmp.ne.s32.totalorder %s162, %s176
      %p178 = scmp.eq.s32.totalorder %s42, 0
      %p179 = por %p177, %p178
      %s181 = sadd.s32 %s180, 1
      %p184 = scmp.eq.s32.totalorder %s36, 1
      %p185 = scmp.ne.s32.totalorder %s180, %s182
      %p186 = scmp.eq.s32.totalorder %s36, 0
      %p187 = por %p185, %p186
      %p188 = scmp.ne.s32.totalorder %s180, %s182
      %p189 = scmp.eq.s32.totalorder %s41, 1
      %p190 = por %p188, %p189
      %p191 = scmp.ne.s32.totalorder %s182, %s183
      %p192 = scmp.eq.s32.totalorder %s41, 0
      %p193 = por %p191, %p192
      %p194 = scmp.ne.s32.totalorder %s182, %s183
      %p195 = scmp.eq.s32.totalorder %s42, 1
      %p196 = por %p194, %p195
      %p198 = scmp.ne.s32.totalorder %s183, %s197
      %p199 = scmp.eq.s32.totalorder %s42, 0
      %p200 = por %p198, %p199
      %s202 = sadd.s32 %s201, 1
      %p205 = scmp.eq.s32.totalorder %s36, 1
      %p206 = scmp.ne.s32.totalorder %s201, %s203
      %p207 = scmp.eq.s32.totalorder %s36, 0
      %p208 = por %p206, %p207
      %p209 = scmp.ne.s32.totalorder %s201, %s203
      %p210 = scmp.eq.s32.totalorder %s41, 1
      %p211 = por %p209, %p210
      %p212 = scmp.ne.s32.totalorder %s203, %s204
      %p213 = scmp.eq.s32.totalorder %s41, 0
      %p214 = por %p212, %p213
      %p215 = scmp.ne.s32.totalorder %s203, %s204
      %p216 = scmp.eq.s32.totalorder %s42, 1
      %p217 = por %p215, %p216
      %p219 = scmp.ne.s32.totalorder %s204, %s218
      %p220 = scmp.eq.s32.totalorder %s42, 0
      %p221 = por %p219, %p220
      %s223 = sadd.s32 %s222, 1
      %p226 = scmp.eq.s32.totalorder %s36, 1
      %p227 = scmp.ne.s32.totalorder %s222, %s224
      %p228 = scmp.eq.s32.totalorder %s36, 0
      %p229 = por %p227, %p228
      %p230 = scmp.ne.s32.totalorder %s222, %s224
      %p231 = scmp.eq.s32.totalorder %s41, 1
      %p232 = por %p230, %p231
      %p233 = scmp.ne.s32.totalorder %s224, %s225
      %p234 = scmp.eq.s32.totalorder %s41, 0
      %p235 = por %p233, %p234
      %p236 = scmp.ne.s32.totalorder %s224, %s225
      %p237 = scmp.eq.s32.totalorder %s42, 1
      %p238 = por %p236, %p237
      %p240 = scmp.ne.s32.totalorder %s225, %s239
      %p241 = scmp.eq.s32.totalorder %s42, 0
      %p242 = por %p240, %p241
      %s244 = sadd.s32 %s243, 1
      %p247 = scmp.eq.s32.totalorder %s36, 1
      %p248 = scmp.ne.s32.totalorder %s243, %s245
      %p249 = scmp.eq.s32.totalorder %s36, 0
      %p250 = por %p248, %p249
      %p251 = scmp.ne.s32.totalorder %s243, %s245
      %p252 = scmp.eq.s32.totalorder %s41, 1
      %p253 = por %p251, %p252
      %p254 = scmp.ne.s32.totalorder %s245, %s246
      %p255 = scmp.eq.s32.totalorder %s41, 0
      %p256 = por %p254, %p255
      %p257 = scmp.ne.s32.totalorder %s245, %s246
      %p258 = scmp.eq.s32.totalorder %s42, 1
      %p259 = por %p257, %p258
      %p261 = scmp.ne.s32.totalorder %s246, %s260
      %p262 = scmp.eq.s32.totalorder %s42, 0
      %p263 = por %p261, %p262
      %s265 = sadd.s32 %s264, 1
      %p268 = scmp.eq.s32.totalorder %s36, 1
      %p269 = scmp.ne.s32.totalorder %s264, %s266
      %p270 = scmp.eq.s32.totalorder %s36, 0
      %p271 = por %p269, %p270
      %p272 = scmp.ne.s32.totalorder %s264, %s266
      %p273 = scmp.eq.s32.totalorder %s41, 1
      %p274 = por %p272, %p273
      %p275 = scmp.ne.s32.totalorder %s266, %s267
      %p276 = scmp.eq.s32.totalorder %s41, 0
      %p277 = por %p275, %p276
      %p278 = scmp.ne.s32.totalorder %s266, %s267
      %p279 = scmp.eq.s32.totalorder %s42, 1
      %p280 = por %p278, %p279
      %p282 = scmp.ne.s32.totalorder %s267, %s281
      %p283 = scmp.eq.s32.totalorder %s42, 0
      %p284 = por %p282, %p283
      %s286 = sadd.s32 %s285, 1
      %p289 = scmp.eq.s32.totalorder %s36, 1
      %p290 = scmp.ne.s32.totalorder %s285, %s287
      %p291 = scmp.eq.s32.totalorder %s36, 0
      %p292 = por %p290, %p291
      %p293 = scmp.ne.s32.totalorder %s285, %s287
      %p294 = scmp.eq.s32.totalorder %s41, 1
      %p295 = por %p293, %p294
      %p296 = scmp.ne.s32.totalorder %s287, %s288
      %p297 = scmp.eq.s32.totalorder %s41, 0
      %p298 = por %p296, %p297
      %p299 = scmp.ne.s32.totalorder %s287, %s288
      %p300 = scmp.eq.s32.totalorder %s42, 1
      %p301 = por %p299, %p300
      %p303 = scmp.ne.s32.totalorder %s288, %s302
      %p304 = scmp.eq.s32.totalorder %s42, 0
      %p305 = por %p303, %p304
      %s307 = sadd.s32 %s306, 1
      %p310 = scmp.eq.s32.totalorder %s36, 1
      %p311 = scmp.ne.s32.totalorder %s306, %s308
      %p312 = scmp.eq.s32.totalorder %s36, 0
      %p313 = por %p311, %p312
      %p314 = scmp.ne.s32.totalorder %s306, %s308
      %p315 = scmp.eq.s32.totalorder %s41, 1
      %p316 = por %p314, %p315
      %p317 = scmp.ne.s32.totalorder %s308, %s309
      %p318 = scmp.eq.s32.totalorder %s41, 0
      %p319 = por %p317, %p318
      %p320 = scmp.ne.s32.totalorder %s308, %s309
      %p321 = scmp.eq.s32.totalorder %s42, 1
      %p322 = por %p320, %p321
      %p324 = scmp.ne.s32.totalorder %s309, %s323
      %p325 = scmp.eq.s32.totalorder %s42, 0
      %p326 = por %p324, %p325
      %s328 = sadd.s32 %s327, 1
      %p331 = scmp.eq.s32.totalorder %s36, 1
      %p332 = scmp.ne.s32.totalorder %s327, %s329
      %p333 = scmp.eq.s32.totalorder %s36, 0
      %p334 = por %p332, %p333
      %p335 = scmp.ne.s32.totalorder %s327, %s329
      %p336 = scmp.eq.s32.totalorder %s41, 1
      %p337 = por %p335, %p336
      %p338 = scmp.ne.s32.totalorder %s329, %s330
      %p339 = scmp.eq.s32.totalorder %s41, 0
      %p340 = por %p338, %p339
      %p341 = scmp.ne.s32.totalorder %s329, %s330
      %p342 = scmp.eq.s32.totalorder %s42, 1
      %p343 = por %p341, %p342
      %p345 = scmp.ne.s32.totalorder %s330, %s344
      %p346 = scmp.eq.s32.totalorder %s42, 0
      %p347 = por %p345, %p346
      %s349 = sadd.s32 %s348, 1
      %p352 = scmp.eq.s32.totalorder %s36, 1
      %p353 = scmp.ne.s32.totalorder %s348, %s350
      %p354 = scmp.eq.s32.totalorder %s36, 0
      %p355 = por %p353, %p354
      %p356 = scmp.ne.s32.totalorder %s348, %s350
      %p357 = scmp.eq.s32.totalorder %s41, 1
      %p358 = por %p356, %p357
      %p359 = scmp.ne.s32.totalorder %s350, %s351
      %p360 = scmp.eq.s32.totalorder %s41, 0
      %p361 = por %p359, %p360
      %p362 = scmp.ne.s32.totalorder %s350, %s351
      %p363 = scmp.eq.s32.totalorder %s42, 1
      %p364 = por %p362, %p363
      %p366 = scmp.ne.s32.totalorder %s351, %s365
      %p367 = scmp.eq.s32.totalorder %s42, 0
      %p368 = por %p366, %p367
      %s370 = sadd.s32 %s369, 1
      %p373 = scmp.eq.s32.totalorder %s36, 1
      %p374 = scmp.ne.s32.totalorder %s369, %s371
      %p375 = scmp.eq.s32.totalorder %s36, 0
      %p376 = por %p374, %p375
      %p377 = scmp.ne.s32.totalorder %s369, %s371
      %p378 = scmp.eq.s32.totalorder %s41, 1
      %p379 = por %p377, %p378
      %p380 = scmp.ne.s32.totalorder %s371, %s372
      %p381 = scmp.eq.s32.totalorder %s41, 0
      %p382 = por %p380, %p381
      %p383 = scmp.ne.s32.totalorder %s371, %s372
      %p384 = scmp.eq.s32.totalorder %s42, 1
      %p385 = por %p383, %p384
      %p387 = scmp.ne.s32.totalorder %s372, %s386
      %p388 = scmp.eq.s32.totalorder %s42, 0
      %p389 = por %p387, %p388
      %s391 = sadd.s32 %s390, 1
      %p394 = scmp.eq.s32.totalorder %s36, 1
      %p395 = scmp.ne.s32.totalorder %s390, %s392
      %p396 = scmp.eq.s32.totalorder %s36, 0
      %p397 = por %p395, %p396
      %p398 = scmp.ne.s32.totalorder %s390, %s392
      %p399 = scmp.eq.s32.totalorder %s41, 1
      %p400 = por %p398, %p399
      %p401 = scmp.ne.s32.totalorder %s392, %s393
      %p402 = scmp.eq.s32.totalorder %s41, 0
      %p403 = por %p401, %p402
      %p404 = scmp.ne.s32.totalorder %s392, %s393
      %p405 = scmp.eq.s32.totalorder %s42, 1
      %p406 = por %p404, %p405
      %p408 = scmp.ne.s32.totalorder %s393, %s407
      %p409 = scmp.eq.s32.totalorder %s42, 0
      %p410 = por %p408, %p409
      %s412 = sadd.s32 %s411, 1
      %p415 = scmp.eq.s32.totalorder %s36, 1
      %p416 = scmp.ne.s32.totalorder %s411, %s413
      %p417 = scmp.eq.s32.totalorder %s36, 0
      %p418 = por %p416, %p417
      %p419 = scmp.ne.s32.totalorder %s411, %s413
      %p420 = scmp.eq.s32.totalorder %s41, 1
      %p421 = por %p419, %p420
      %p422 = scmp.ne.s32.totalorder %s413, %s414
      %p423 = scmp.eq.s32.totalorder %s41, 0
      %p424 = por %p422, %p423
      %p425 = scmp.ne.s32.totalorder %s413, %s414
      %p426 = scmp.eq.s32.totalorder %s42, 1
      %p427 = por %p425, %p426
      %p429 = scmp.ne.s32.totalorder %s414, %s428
      %p430 = scmp.eq.s32.totalorder %s42, 0
      %p431 = por %p429, %p430
      %s433 = sadd.s32 %s432, 1
      %p436 = scmp.eq.s32.totalorder %s36, 1
      %p437 = scmp.ne.s32.totalorder %s432, %s434
      %p438 = scmp.eq.s32.totalorder %s36, 0
      %p439 = por %p437, %p438
      %p440 = scmp.ne.s32.totalorder %s432, %s434
      %p441 = scmp.eq.s32.totalorder %s41, 1
      %p442 = por %p440, %p441
      %p443 = scmp.ne.s32.totalorder %s434, %s435
      %p444 = scmp.eq.s32.totalorder %s41, 0
      %p445 = por %p443, %p444
      %p446 = scmp.ne.s32.totalorder %s434, %s435
      %p447 = scmp.eq.s32.totalorder %s42, 1
      %p448 = por %p446, %p447
      %p450 = scmp.ne.s32.totalorder %s435, %s449
      %p451 = scmp.eq.s32.totalorder %s42, 0
      %p452 = por %p450, %p451
      %s454 = sadd.s32 %s453, 1
      %p457 = scmp.eq.s32.totalorder %s36, 1
      %p458 = scmp.ne.s32.totalorder %s453, %s455
      %p459 = scmp.eq.s32.totalorder %s36, 0
      %p460 = por %p458, %p459
      %p461 = scmp.ne.s32.totalorder %s453, %s455
      %p462 = scmp.eq.s32.totalorder %s41, 1
      %p463 = por %p461, %p462
      %p464 = scmp.ne.s32.totalorder %s455, %s456
      %p465 = scmp.eq.s32.totalorder %s41, 0
      %p466 = por %p464, %p465
      %p467 = scmp.ne.s32.totalorder %s455, %s456
      %p468 = scmp.eq.s32.totalorder %s42, 1
      %p469 = por %p467, %p468
      %p471 = scmp.ne.s32.totalorder %s456, %s470
      %p472 = scmp.eq.s32.totalorder %s42, 0
      %p473 = por %p471, %p472
      %s475 = sadd.s32 %s474, 1
      %p478 = scmp.eq.s32.totalorder %s36, 1
      %p479 = scmp.ne.s32.totalorder %s474, %s476
      %p480 = scmp.eq.s32.totalorder %s36, 0
      %p481 = por %p479, %p480
      %p482 = scmp.ne.s32.totalorder %s474, %s476
      %p483 = scmp.eq.s32.totalorder %s41, 1
      %p484 = por %p482, %p483
      %p485 = scmp.ne.s32.totalorder %s476, %s477
      %p486 = scmp.eq.s32.totalorder %s41, 0
      %p487 = por %p485, %p486
      %p488 = scmp.ne.s32.totalorder %s476, %s477
      %p489 = scmp.eq.s32.totalorder %s42, 1
      %p490 = por %p488, %p489
      %p492 = scmp.ne.s32.totalorder %s477, %s491
      %p493 = scmp.eq.s32.totalorder %s42, 0
      %p494 = por %p492, %p493
      %s496 = sadd.s32 %s495, 1
      %p499 = scmp.eq.s32.totalorder %s36, 1
      %p500 = scmp.ne.s32.totalorder %s495, %s497
      %p501 = scmp.eq.s32.totalorder %s36, 0
      %p502 = por %p500, %p501
      %p503 = scmp.ne.s32.totalorder %s495, %s497
      %p504 = scmp.eq.s32.totalorder %s41, 1
      %p505 = por %p503, %p504
      %p506 = scmp.ne.s32.totalorder %s497, %s498
      %p507 = scmp.eq.s32.totalorder %s41, 0
      %p508 = por %p506, %p507
      %p509 = scmp.ne.s32.totalorder %s497, %s498
      %p510 = scmp.eq.s32.totalorder %s42, 1
      %p511 = por %p509, %p510
      %p513 = scmp.ne.s32.totalorder %s498, %s512
      %p514 = scmp.eq.s32.totalorder %s42, 0
      %p515 = por %p513, %p514
      %s516 = ssub.s32 %s36, %s43
      %p517 = scmp.eq.s32.totalorder %s516, 0
      %s519 = sadd.s32 %s518, 1
      %s520 = scalar_select %p517, %s518, %s519
      %p523 = pneg %p517
      %p524 = scmp.eq.s32.totalorder %s36, 1
      %p525 = por %p523, %p524
      %p526 = scmp.ne.s32.totalorder %s518, %s521
      %p527 = scmp.eq.s32.totalorder %s36, 0
      %p528 = por %p526, %p527
      %p529 = scmp.ne.s32.totalorder %s518, %s521
      %p530 = scmp.eq.s32.totalorder %s41, 1
      %p531 = por %p529, %p530
      %p532 = scmp.ne.s32.totalorder %s521, %s522
      %p533 = scmp.eq.s32.totalorder %s41, 0
      %p534 = por %p532, %p533
      %p535 = scmp.ne.s32.totalorder %s521, %s522
      %p536 = scmp.eq.s32.totalorder %s42, 1
      %p537 = por %p535, %p536
      %p539 = scmp.ne.s32.totalorder %s522, %s538
      %p540 = scmp.eq.s32.totalorder %s42, 0
      %p541 = por %p539, %p540
      %s542 = ssub.s32 %s36, %s43
      %p543 = scmp.eq.s32.totalorder %s542, 0
      %s545 = sadd.s32 %s544, 1
      %s546 = scalar_select %p543, %s544, %s545
      %p549 = pneg %p543
      %p550 = scmp.eq.s32.totalorder %s36, 1
      %p551 = por %p549, %p550
      %p552 = scmp.ne.s32.totalorder %s544, %s547
      %p553 = scmp.eq.s32.totalorder %s36, 0
      %p554 = por %p552, %p553
      %p555 = scmp.ne.s32.totalorder %s544, %s547
      %p556 = scmp.eq.s32.totalorder %s41, 1
      %p557 = por %p555, %p556
      %p558 = scmp.ne.s32.totalorder %s547, %s548
      %p559 = scmp.eq.s32.totalorder %s41, 0
      %p560 = por %p558, %p559
      %p561 = scmp.ne.s32.totalorder %s547, %s548
      %p562 = scmp.eq.s32.totalorder %s42, 1
      %p563 = por %p561, %p562
      %p565 = scmp.ne.s32.totalorder %s548, %s564
      %p566 = scmp.eq.s32.totalorder %s42, 0
      %p567 = por %p565, %p566
      %p568 = scmp.le.s32.totalorder 1, %s36
      %p569 = scmp.lt.s32.totalorder %s36, 3
      %p570 = pnand %p568, %p569
      %p571 = pneg %p570
      // Predicated region
      $region9: #{vae_forward.1} parent=5 // pred_check
        _
      $region10: #{vae_forward.1} parent=5 // pred_check_branch
        %573 = sbr.rel (%p570) target = $region12
      $region11: #{vae_forward.1} parent=5 // pred_region
        %s574 = ssub.s32 %s36, 1
        // Predicated region
        $region13: #{vae_forward.1} parent=11 // pred_check
          %p575 = pneg %p109
        $region14: #{vae_forward.1} parent=11 // pred_check_branch
          %577 = sbr.rel (%p575) target = $region16
        $region15: #{vae_forward.1} parent=11 // pred_region
          %s579 = ssub.s32 28672, 28672
          %580 = vsyncadd [#allocation3], %s579
          %s581 = sshll.u32 [#allocation2], 4
          %s582 = int_to_ptr.vmem [resolvable:$true] %s581
          %587 = dma.hbm_to_vmem [thread:$0]  %s2, 28672, %s582, [#allocation3], 256, 256, 16
        $region16: #{vae_forward.1} parent=11 // pred_fallthru
          _
        // Predicated region
        $region17: #{vae_forward.1} parent=11 // pred_check
          %p588 = pneg %p130
        $region18: #{vae_forward.1} parent=11 // pred_check_branch
          %590 = sbr.rel (%p588) target = $region20
        $region19: #{vae_forward.1} parent=11 // pred_region
          %s592 = ssub.s32 64, 64
          %593 = vsyncadd [#allocation5], %s592
          %s595 = sshll.u32 [#allocation4], 4
          %s596 = int_to_ptr.vmem [resolvable:$true] %s595
          %598 = dma.hbm_to_vmem [thread:$0]  %s3, 64, %s596, [#allocation5]
        $region20: #{vae_forward.1} parent=11 // pred_fallthru
          _
        // Predicated region
        $region21: #{vae_forward.1} parent=11 // pred_check
          %p599 = pneg %p151
        $region22: #{vae_forward.1} parent=11 // pred_check_branch
          %601 = sbr.rel (%p599) target = $region24
        $region23: #{vae_forward.1} parent=11 // pred_region
          _
        $region24: #{vae_forward.1} parent=11 // pred_fallthru
          _
        // Predicated region
        $region25: #{vae_forward.1} parent=11 // pred_check
          %p602 = pneg %p172
        $region26: #{vae_forward.1} parent=11 // pred_check_branch
          %604 = sbr.rel (%p602) target = $region28
        $region27: #{vae_forward.1} parent=11 // pred_region
          _
        $region28: #{vae_forward.1} parent=11 // pred_fallthru
          _
        // Predicated region
        $region29: #{vae_forward.1} parent=11 // pred_check
          %p605 = pneg %p193
        $region30: #{vae_forward.1} parent=11 // pred_check_branch
          %607 = sbr.rel (%p605) target = $region32
        $region31: #{vae_forward.1} parent=11 // pred_region
          %s609 = ssub.s32 2048, 2048
          %610 = vsyncadd [#allocation5], %s609
          %s611 = sshll.u32 [#allocation6], 4
          %s612 = int_to_ptr.vmem [resolvable:$true] %s611
          %617 = dma.hbm_to_vmem [thread:$0]  %s6, 2048, %s612, [#allocation5], 64, 64, 4
        $region32: #{vae_forward.1} parent=11 // pred_fallthru
          _
        // Predicated region
        $region33: #{vae_forward.1} parent=11 // pred_check
          %p618 = pneg %p214
        $region34: #{vae_forward.1} parent=11 // pred_check_branch
          %620 = sbr.rel (%p618) target = $region36
        $region35: #{vae_forward.1} parent=11 // pred_region
          _
        $region36: #{vae_forward.1} parent=11 // pred_fallthru
          _
        // Predicated region
        $region37: #{vae_forward.1} parent=11 // pred_check
          %p621 = pneg %p235
        $region38: #{vae_forward.1} parent=11 // pred_check_branch
          %623 = sbr.rel (%p621) target = $region40
        $region39: #{vae_forward.1} parent=11 // pred_region
          _
        $region40: #{vae_forward.1} parent=11 // pred_fallthru
          _
        // Predicated region
        $region41: #{vae_forward.1} parent=11 // pred_check
          %p624 = pneg %p256
        $region42: #{vae_forward.1} parent=11 // pred_check_branch
          %626 = sbr.rel (%p624) target = $region44
        $region43: #{vae_forward.1} parent=11 // pred_region
          _
        $region44: #{vae_forward.1} parent=11 // pred_fallthru
          _
        // Predicated region
        $region45: #{vae_forward.1} parent=11 // pred_check
          %p627 = pneg %p277
        $region46: #{vae_forward.1} parent=11 // pred_check_branch
          %629 = sbr.rel (%p627) target = $region48
        $region47: #{vae_forward.1} parent=11 // pred_region
          _
        $region48: #{vae_forward.1} parent=11 // pred_fallthru
          _
        // Predicated region
        $region49: #{vae_forward.1} parent=11 // pred_check
          %p630 = pneg %p298
        $region50: #{vae_forward.1} parent=11 // pred_check_branch
          %632 = sbr.rel (%p630) target = $region52
        $region51: #{vae_forward.1} parent=11 // pred_region
          _
        $region52: #{vae_forward.1} parent=11 // pred_fallthru
          _
        // Predicated region
        $region53: #{vae_forward.1} parent=11 // pred_check
          %p633 = pneg %p319
        $region54: #{vae_forward.1} parent=11 // pred_check_branch
          %635 = sbr.rel (%p633) target = $region56
        $region55: #{vae_forward.1} parent=11 // pred_region
          %s637 = ssub.s32 16, 16
          %638 = vsyncadd [#allocation8], %s637
          %s640 = sshll.u32 [#allocation7], 4
          %s641 = int_to_ptr.vmem [resolvable:$true] %s640
          %643 = dma.hbm_to_vmem [thread:$0]  %s12, 16, %s641, [#allocation8]
        $region56: #{vae_forward.1} parent=11 // pred_fallthru
          _
        // Predicated region
        $region57: #{vae_forward.1} parent=11 // pred_check
          %p644 = pneg %p340
        $region58: #{vae_forward.1} parent=11 // pred_check_branch
          %646 = sbr.rel (%p644) target = $region60
        $region59: #{vae_forward.1} parent=11 // pred_region
          %s648 = ssub.s32 16, 16
          %649 = vsyncadd [#allocation8], %s648
          %s651 = sshll.u32 [#allocation9], 4
          %s652 = int_to_ptr.vmem [resolvable:$true] %s651
          %654 = dma.hbm_to_vmem [thread:$0]  %s13, 16, %s652, [#allocation8]
        $region60: #{vae_forward.1} parent=11 // pred_fallthru
          _
        // Predicated region
        $region61: #{vae_forward.1} parent=11 // pred_check
          %p655 = pneg %p361
        $region62: #{vae_forward.1} parent=11 // pred_check_branch
          %657 = sbr.rel (%p655) target = $region64
        $region63: #{vae_forward.1} parent=11 // pred_region
          _
        $region64: #{vae_forward.1} parent=11 // pred_fallthru
          _
        // Predicated region
        $region65: #{vae_forward.1} parent=11 // pred_check
          %p658 = pneg %p382
        $region66: #{vae_forward.1} parent=11 // pred_check_branch
          %660 = sbr.rel (%p658) target = $region68
        $region67: #{vae_forward.1} parent=11 // pred_region
          %s662 = ssub.s32 16, 16
          %663 = vsyncadd [#allocation11], %s662
          %s665 = sshll.u32 [#allocation10], 4
          %s666 = int_to_ptr.vmem [resolvable:$true] %s665
          %668 = dma.hbm_to_vmem [thread:$0]  %s15, 16, %s666, [#allocation11]
        $region68: #{vae_forward.1} parent=11 // pred_fallthru
          _
        // Predicated region
        $region69: #{vae_forward.1} parent=11 // pred_check
          %p669 = pneg %p403
        $region70: #{vae_forward.1} parent=11 // pred_check_branch
          %671 = sbr.rel (%p669) target = $region72
        $region71: #{vae_forward.1} parent=11 // pred_region
          %s673 = ssub.s32 2048, 2048
          %674 = vsyncadd [#allocation11], %s673
          %s675 = sshll.u32 [#allocation12], 4
          %s676 = int_to_ptr.vmem [resolvable:$true] %s675
          %681 = dma.hbm_to_vmem [thread:$0]  %s16, 2048, %s676, [#allocation11], 128, 128, 8
        $region72: #{vae_forward.1} parent=11 // pred_fallthru
          _
        // Predicated region
        $region73: #{vae_forward.1} parent=11 // pred_check
          %p682 = pneg %p424
        $region74: #{vae_forward.1} parent=11 // pred_check_branch
          %684 = sbr.rel (%p682) target = $region76
        $region75: #{vae_forward.1} parent=11 // pred_region
          %s686 = ssub.s32 32, 32
          %687 = vsyncadd [#allocation14], %s686
          %s689 = sshll.u32 [#allocation13], 4
          %s690 = int_to_ptr.vmem [resolvable:$true] %s689
          %692 = dma.hbm_to_vmem [thread:$0]  %s17, 32, %s690, [#allocation14]
        $region76: #{vae_forward.1} parent=11 // pred_fallthru
          _
        // Predicated region
        $region77: #{vae_forward.1} parent=11 // pred_check
          %p693 = pneg %p445
        $region78: #{vae_forward.1} parent=11 // pred_check_branch
          %695 = sbr.rel (%p693) target = $region80
        $region79: #{vae_forward.1} parent=11 // pred_region
          _
        $region80: #{vae_forward.1} parent=11 // pred_fallthru
          _
        // Predicated region
        $region81: #{vae_forward.1} parent=11 // pred_check
          %p696 = pneg %p466
        $region82: #{vae_forward.1} parent=11 // pred_check_branch
          %698 = sbr.rel (%p696) target = $region84
        $region83: #{vae_forward.1} parent=11 // pred_region
          %s700 = ssub.s32 64, 64
          %701 = vsyncadd [#allocation14], %s700
          %s703 = sshll.u32 [#allocation15], 4
          %s704 = int_to_ptr.vmem [resolvable:$true] %s703
          %706 = dma.hbm_to_vmem [thread:$0]  %s19, 64, %s704, [#allocation14]
        $region84: #{vae_forward.1} parent=11 // pred_fallthru
          _
        // Predicated region
        $region85: #{vae_forward.1} parent=11 // pred_check
          %p707 = pneg %p487
        $region86: #{vae_forward.1} parent=11 // pred_check_branch
          %709 = sbr.rel (%p707) target = $region88
        $region87: #{vae_forward.1} parent=11 // pred_region
          %s711 = ssub.s32 28672, 28672
          %712 = vsyncadd [#allocation17], %s711
          %s713 = sshll.u32 [#allocation16], 4
          %s714 = int_to_ptr.vmem [resolvable:$true] %s713
          %719 = dma.hbm_to_vmem [thread:$0]  %s20, 28672, %s714, [#allocation17], 448, 448, 28
        $region88: #{vae_forward.1} parent=11 // pred_fallthru
          _
        // Predicated region
        $region89: #{vae_forward.1} parent=11 // pred_check
          %p720 = pneg %p508
        $region90: #{vae_forward.1} parent=11 // pred_check_branch
          %722 = sbr.rel (%p720) target = $region92
        $region91: #{vae_forward.1} parent=11 // pred_region
          %s724 = ssub.s32 112, 112
          %725 = vsyncadd [#allocation17], %s724
          %s727 = sshll.u32 [#allocation18], 4
          %s728 = int_to_ptr.vmem [resolvable:$true] %s727
          %730 = dma.hbm_to_vmem [thread:$0]  %s21, 112, %s728, [#allocation17]
        $region92: #{vae_forward.1} parent=11 // pred_fallthru
          _
      $region12: #{vae_forward.1} parent=5 // pred_fallthru
        _
      %p731 = scmp.lt.s32.totalorder %s36, 2
      // Predicated region
      $region93: #{vae_forward.1} parent=5 // pred_check
        %p732 = pneg %p731
      $region94: #{vae_forward.1} parent=5 // pred_check_branch
        %734 = sbr.rel (%p732) target = $region96
      $region95: #{vae_forward.1} parent=5 // pred_region
        // Predicated region
        $region97: #{vae_forward.1} parent=95 // pred_check
          %p735 = pneg %p56
        $region98: #{vae_forward.1} parent=95 // pred_check_branch
          %737 = sbr.rel (%p735) target = $region100
        $region99: #{vae_forward.1} parent=95 // pred_region
          %s738 = smul.u32 4, %s36
          %p739 = scmp.lt.s32.totalorder %s738, 7
          %s740 = scalar_select %p739, %s738, 7
          %s741 = smul.addr %s740, 7
          %s742 = smul.addr %s741, 8
          %s743 = scalar_lea.vmem %s0, %s742
          %s744 = smul.u32 4, %s36
        $region100: #{vae_forward.1} parent=95 // pred_fallthru
          _
        // Predicated region
        $region101: #{vae_forward.1} parent=95 // pred_check
          %p745 = pneg %p82
        $region102: #{vae_forward.1} parent=95 // pred_check_branch
          %747 = sbr.rel (%p745) target = $region104
        $region103: #{vae_forward.1} parent=95 // pred_region
          %s748 = smul.u32 4, %s36
          %p749 = scmp.lt.s32.totalorder %s748, 7
          %s750 = scalar_select %p749, %s748, 7
          %s751 = smul.addr %s750, 8
          %s752 = scalar_lea.vmem %s1, %s751
          %s753 = smul.u32 4, %s36
        $region104: #{vae_forward.1} parent=95 // pred_fallthru
          _
      $region96: #{vae_forward.1} parent=5 // pred_fallthru
        _
      %p754 = scmp.le.s32.totalorder 1, %s36
      %p755 = scmp.lt.s32.totalorder %s36, 3
      %p756 = pnand %p754, %p755
      %p757 = pneg %p756
      // Predicated region
      $region105: #{vae_forward.1} parent=5 // pred_check
        _
      $region106: #{vae_forward.1} parent=5 // pred_check_branch
        %759 = sbr.rel (%p756) target = $region108
      $region107: #{vae_forward.1} parent=5 // pred_region
        %s760 = ssub.s32 %s36, 1
        // Predicated region
        $region109: #{vae_forward.1} parent=107 // pred_check
          %p761 = pneg %p109
        $region110: #{vae_forward.1} parent=107 // pred_check_branch
          %763 = sbr.rel (%p761) target = $region112
        $region111: #{vae_forward.1} parent=107 // pred_region
          %764 = dma.done [#allocation3], 28672
        $region112: #{vae_forward.1} parent=107 // pred_fallthru
          _
        // Predicated region
        $region113: #{vae_forward.1} parent=107 // pred_check
          %p765 = pneg %p130
        $region114: #{vae_forward.1} parent=107 // pred_check_branch
          %767 = sbr.rel (%p765) target = $region116
        $region115: #{vae_forward.1} parent=107 // pred_region
          %768 = dma.done [#allocation5], 64
        $region116: #{vae_forward.1} parent=107 // pred_fallthru
          _
        // Predicated region
        $region117: #{vae_forward.1} parent=107 // pred_check
          %p769 = pneg %p193
        $region118: #{vae_forward.1} parent=107 // pred_check_branch
          %771 = sbr.rel (%p769) target = $region120
        $region119: #{vae_forward.1} parent=107 // pred_region
          %772 = dma.done [#allocation5], 2048
        $region120: #{vae_forward.1} parent=107 // pred_fallthru
          _
        // Predicated region
        $region121: #{vae_forward.1} parent=107 // pred_check
          %p773 = pneg %p319
        $region122: #{vae_forward.1} parent=107 // pred_check_branch
          %775 = sbr.rel (%p773) target = $region124
        $region123: #{vae_forward.1} parent=107 // pred_region
          %776 = dma.done [#allocation8], 16
        $region124: #{vae_forward.1} parent=107 // pred_fallthru
          _
        // Predicated region
        $region125: #{vae_forward.1} parent=107 // pred_check
          %p777 = pneg %p340
        $region126: #{vae_forward.1} parent=107 // pred_check_branch
          %779 = sbr.rel (%p777) target = $region128
        $region127: #{vae_forward.1} parent=107 // pred_region
          %780 = dma.done [#allocation8], 16
        $region128: #{vae_forward.1} parent=107 // pred_fallthru
          _
        // Predicated region
        $region129: #{vae_forward.1} parent=107 // pred_check
          %p781 = pneg %p382
        $region130: #{vae_forward.1} parent=107 // pred_check_branch
          %783 = sbr.rel (%p781) target = $region132
        $region131: #{vae_forward.1} parent=107 // pred_region
          %784 = dma.done [#allocation11], 16
        $region132: #{vae_forward.1} parent=107 // pred_fallthru
          _
        // Predicated region
        $region133: #{vae_forward.1} parent=107 // pred_check
          %p785 = pneg %p403
        $region134: #{vae_forward.1} parent=107 // pred_check_branch
          %787 = sbr.rel (%p785) target = $region136
        $region135: #{vae_forward.1} parent=107 // pred_region
          %788 = dma.done [#allocation11], 2048
        $region136: #{vae_forward.1} parent=107 // pred_fallthru
          _
        // Predicated region
        $region137: #{vae_forward.1} parent=107 // pred_check
          %p789 = pneg %p424
        $region138: #{vae_forward.1} parent=107 // pred_check_branch
          %791 = sbr.rel (%p789) target = $region140
        $region139: #{vae_forward.1} parent=107 // pred_region
          %792 = dma.done [#allocation14], 32
        $region140: #{vae_forward.1} parent=107 // pred_fallthru
          _
        // Predicated region
        $region141: #{vae_forward.1} parent=107 // pred_check
          %p793 = pneg %p466
        $region142: #{vae_forward.1} parent=107 // pred_check_branch
          %795 = sbr.rel (%p793) target = $region144
        $region143: #{vae_forward.1} parent=107 // pred_region
          %796 = dma.done [#allocation14], 64
        $region144: #{vae_forward.1} parent=107 // pred_fallthru
          _
        // Predicated region
        $region145: #{vae_forward.1} parent=107 // pred_check
          %p797 = pneg %p487
        $region146: #{vae_forward.1} parent=107 // pred_check_branch
          %799 = sbr.rel (%p797) target = $region148
        $region147: #{vae_forward.1} parent=107 // pred_region
          %800 = dma.done [#allocation17], 28672
        $region148: #{vae_forward.1} parent=107 // pred_fallthru
          _
        // Predicated region
        $region149: #{vae_forward.1} parent=107 // pred_check
          %p801 = pneg %p508
        $region150: #{vae_forward.1} parent=107 // pred_check_branch
          %803 = sbr.rel (%p801) target = $region152
        $region151: #{vae_forward.1} parent=107 // pred_region
          %804 = dma.done [#allocation17], 112
        $region152: #{vae_forward.1} parent=107 // pred_fallthru
          _
        %s805 = smul.u32 4, %s41
        %p806 = scmp.lt.s32.totalorder %s805, 7
        %s807 = scalar_select %p806, %s805, 7
        %s808 = smul.addr %s807, 7
        %s809 = smul.addr %s808, 8
        %s810 = scalar_lea.vmem %s0, %s809
        %p811 = pneg %p62
        %p812 = pneg %p59
        %s813 = smul.u32 4, %s41
        %p814 = scmp.lt.s32.totalorder %s813, 7
        %s815 = scalar_select %p814, %s813, 7
        %s816 = smul.addr %s815, 8
        %s817 = scalar_lea.vmem %s1, %s816
        %p818 = pneg %p88
        %p819 = pneg %p85
        %p820 = pneg %p109
        %p821 = pneg %p106
        %p822 = pneg %p130
        %p823 = pneg %p127
        %p824 = pneg %p151
        %p825 = pneg %p148
        %p826 = pneg %p172
        %p827 = pneg %p169
        %p828 = pneg %p193
        %p829 = pneg %p190
        %p830 = pneg %p214
        %p831 = pneg %p211
        %p832 = pneg %p235
        %p833 = pneg %p232
        %p834 = pneg %p256
        %p835 = pneg %p253
        %p836 = pneg %p277
        %p837 = pneg %p274
        %p838 = pneg %p298
        %p839 = pneg %p295
        %p840 = pneg %p319
        %p841 = pneg %p316
        %p842 = pneg %p340
        %p843 = pneg %p337
        %p844 = pneg %p361
        %p845 = pneg %p358
        %p846 = pneg %p382
        %p847 = pneg %p379
        %p848 = pneg %p403
        %p849 = pneg %p400
        %p850 = pneg %p424
        %p851 = pneg %p421
        %p852 = pneg %p445
        %p853 = pneg %p442
        %p854 = pneg %p466
        %p855 = pneg %p463
        %p856 = pneg %p487
        %p857 = pneg %p484
        %p858 = pneg %p508
        %p859 = pneg %p505
        %p860 = pneg %p534
        %p861 = pneg %p531
        %s862 = smul.u32 4, %s41
        %p863 = scmp.lt.s32.totalorder %s862, 7
        %s864 = scalar_select %p863, %s862, 7
        %s865 = smul.addr %s864, 7
        %s866 = smul.addr %s865, 8
        %s867 = scalar_lea.vmem %s22, %s866
        %p868 = pneg %p560
        %p869 = pneg %p557
        %s870 = smul.u32 4, %s41
        %p871 = scmp.lt.s32.totalorder %s870, 7
        %s872 = scalar_select %p871, %s870, 7
        %s873 = smul.addr %s872, 8
        %s874 = scalar_lea.vmem %s23, %s873
        %s875 = smul.u32 4, %s41
        %p876 = scmp.lt.s32.totalorder %s875, 7
        %s877 = scalar_select %p876, %s875, 7
        %s878 = smul.addr %s877, 7
        %s879 = smul.addr %s878, 8
        %s880 = scalar_lea.vmem %s0, %s879
        %s881 = smul.u32 4, %s41
        %s882 = smul.u32 4, %s41
        %p883 = scmp.lt.s32.totalorder %s882, 7
        %s884 = scalar_select %p883, %s882, 7
        %s885 = smul.addr %s884, 8
        %s886 = scalar_lea.vmem %s1, %s885
        %s887 = smul.u32 4, %s41
        %s888 = smul.u32 4, %s41
        %p889 = scmp.lt.s32.totalorder %s888, 7
        %s890 = scalar_select %p889, %s888, 7
        %s891 = smul.addr %s890, 7
        %s892 = smul.addr %s891, 8
        %s893 = scalar_lea.vmem %s22, %s892
        %s894 = smul.u32 4, %s41
        %s895 = smul.u32 4, %s41
        %p896 = scmp.lt.s32.totalorder %s895, 7
        %s897 = scalar_select %p896, %s895, 7
        %s898 = smul.addr %s897, 8
        %s899 = scalar_lea.vmem %s23, %s898
        %s900 = smul.u32 4, %s41
        %v902 = vld [vmem:[%s880] sm:$0xff]
        %v903 = vld [vmem:[%s880 + $0x8] sm:$0xff]
        %v904 = vld [vmem:[%s880 + $0x10] sm:$0xff]
        %v905 = vld [vmem:[%s880 + $0x18] sm:$0xff]
        %v906 = vld [vmem:[%s880 + $0x20] sm:$0xff]
        %v907 = vld [vmem:[%s880 + $0x28] sm:$0xff]
        %v908 = vld [vmem:[%s880 + $0x30] sm:$0xff]
        %v909 = vld [vmem:[%s880 + $0x38] sm:$0xff]
        %v910 = vld [vmem:[%s880 + $0x40] sm:$0xff]
        %v911 = vld [vmem:[%s880 + $0x48] sm:$0xff]
        %v912 = vld [vmem:[%s880 + $0x50] sm:$0xff]
        %v913 = vld [vmem:[%s880 + $0x58] sm:$0xff]
        %v914 = vld [vmem:[%s880 + $0x60] sm:$0xff]
        %v915 = vld [vmem:[%s880 + $0x68] sm:$0xff]
        %v916 = vld [vmem:[%s880 + $0x70] sm:$0xff]
        %v917 = vld [vmem:[%s880 + $0x78] sm:$0xff]
        %v918 = vld [vmem:[%s880 + $0x80] sm:$0xff]
        %v919 = vld [vmem:[%s880 + $0x88] sm:$0xff]
        %v920 = vld [vmem:[%s880 + $0x90] sm:$0xff]
        %v921 = vld [vmem:[%s880 + $0x98] sm:$0xff]
        %v922 = vld [vmem:[%s880 + $0xa0] sm:$0xff]
        %v923 = vld [vmem:[%s880 + $0xa8] sm:$0xff]
        %v924 = vld [vmem:[%s880 + $0xb0] sm:$0xff]
        %v925 = vld [vmem:[%s880 + $0xb8] sm:$0xff]
        %v926 = vld [vmem:[%s880 + $0xc0] sm:$0xff]
        %v927 = vld [vmem:[%s880 + $0xc8] sm:$0xff]
        %v928 = vld [vmem:[%s880 + $0xd0] sm:$0xff]
        %v929 = vld [vmem:[%s880 + $0xd8] sm:$0xff]
        %v930 = vpack.c.bf16 %v909, %v902
        %v931 = vpack.c.bf16 %v910, %v903
        %v932 = vpack.c.bf16 %v911, %v904
        %v933 = vpack.c.bf16 %v912, %v905
        %v934 = vpack.c.bf16 %v913, %v906
        %v935 = vpack.c.bf16 %v914, %v907
        %v936 = vpack.c.bf16 %v915, %v908
        %v937 = vpack.c.bf16 %v923, %v916
        %v938 = vpack.c.bf16 %v924, %v917
        %v939 = vpack.c.bf16 %v925, %v918
        %v940 = vpack.c.bf16 %v926, %v919
        %v941 = vpack.c.bf16 %v927, %v920
        %v942 = vpack.c.bf16 %v928, %v921
        %v943 = vpack.c.bf16 %v929, %v922
        %v944 = vld [vmem:[#allocation2] sm:$0xff]
        %v945 = vld [vmem:[#allocation2 + $0x8] sm:$0xff]
        %v946 = vld [vmem:[#allocation2 + $0x10] sm:$0xff]
        %v947 = vld [vmem:[#allocation2 + $0x18] sm:$0xff]
        %v948 = vld [vmem:[#allocation2 + $0x20] sm:$0xff]
        %v949 = vld [vmem:[#allocation2 + $0x28] sm:$0xff]
        %v950 = vld [vmem:[#allocation2 + $0x30] sm:$0xff]
        %v951 = vld [vmem:[#allocation2 + $0x38] sm:$0xff]
        %v952 = vld [vmem:[#allocation2 + $0x40] sm:$0xff]
        %v953 = vld [vmem:[#allocation2 + $0x48] sm:$0xff]
        %v954 = vld [vmem:[#allocation2 + $0x50] sm:$0xff]
        %v955 = vld [vmem:[#allocation2 + $0x58] sm:$0xff]
        %v956 = vld [vmem:[#allocation2 + $0x60] sm:$0xff]
        %v957 = vld [vmem:[#allocation2 + $0x68] sm:$0xff]
        %v958 = vld [vmem:[#allocation2 + $0x70] sm:$0xff]
        %v959 = vld [vmem:[#allocation2 + $0x78] sm:$0xff]
        %v960 = vld [vmem:[#allocation2 + $0x80] sm:$0xff]
        %v961 = vld [vmem:[#allocation2 + $0x88] sm:$0xff]
        %v962 = vld [vmem:[#allocation2 + $0x90] sm:$0xff]
        %v963 = vld [vmem:[#allocation2 + $0x98] sm:$0xff]
        %v964 = vld [vmem:[#allocation2 + $0xa0] sm:$0xff]
        %v965 = vld [vmem:[#allocation2 + $0xa8] sm:$0xff]
        %v966 = vld [vmem:[#allocation2 + $0xb0] sm:$0xff]
        %v967 = vld [vmem:[#allocation2 + $0xb8] sm:$0xff]
        %v968 = vld [vmem:[#allocation2 + $0xc0] sm:$0xff]
        %v969 = vld [vmem:[#allocation2 + $0xc8] sm:$0xff]
        %v970 = vld [vmem:[#allocation2 + $0xd0] sm:$0xff]
        %v971 = vld [vmem:[#allocation2 + $0xd8] sm:$0xff]
        %v972 = vld [vmem:[#allocation2 + $0xe0] sm:$0xff]
        %v973 = vld [vmem:[#allocation2 + $0xe8] sm:$0xff]
        %v974 = vld [vmem:[#allocation2 + $0xf0] sm:$0xff]
        %v975 = vld [vmem:[#allocation2 + $0xf8] sm:$0xff]
        %v976 = vld [vmem:[#allocation2 + $0x100] sm:$0xff]
        %v977 = vld [vmem:[#allocation2 + $0x108] sm:$0xff]
        %v978 = vld [vmem:[#allocation2 + $0x110] sm:$0xff]
        %v979 = vld [vmem:[#allocation2 + $0x118] sm:$0xff]
        %v980 = vld [vmem:[#allocation2 + $0x120] sm:$0xff]
        %v981 = vld [vmem:[#allocation2 + $0x128] sm:$0xff]
        %v982 = vld [vmem:[#allocation2 + $0x130] sm:$0xff]
        %v983 = vld [vmem:[#allocation2 + $0x138] sm:$0xff]
        %v984 = vld [vmem:[#allocation2 + $0x140] sm:$0xff]
        %v985 = vld [vmem:[#allocation2 + $0x148] sm:$0xff]
        %v986 = vld [vmem:[#allocation2 + $0x150] sm:$0xff]
        %v987 = vld [vmem:[#allocation2 + $0x158] sm:$0xff]
        %v988 = vld [vmem:[#allocation2 + $0x160] sm:$0xff]
        %v989 = vld [vmem:[#allocation2 + $0x168] sm:$0xff]
        %v990 = vld [vmem:[#allocation2 + $0x170] sm:$0xff]
        %v991 = vld [vmem:[#allocation2 + $0x178] sm:$0xff]
        %v992 = vld [vmem:[#allocation2 + $0x180] sm:$0xff]
        %v993 = vld [vmem:[#allocation2 + $0x188] sm:$0xff]
        %v994 = vld [vmem:[#allocation2 + $0x190] sm:$0xff]
        %v995 = vld [vmem:[#allocation2 + $0x198] sm:$0xff]
        %v996 = vld [vmem:[#allocation2 + $0x1a0] sm:$0xff]
        %v997 = vld [vmem:[#allocation2 + $0x1a8] sm:$0xff]
        %v998 = vld [vmem:[#allocation2 + $0x1b0] sm:$0xff]
        %v999 = vld [vmem:[#allocation2 + $0x1b8] sm:$0xff]
        %v1000 = vld [vmem:[#allocation2 + $0x1c0] sm:$0xff]
        %v1001 = vld [vmem:[#allocation2 + $0x1c8] sm:$0xff]
        %v1002 = vld [vmem:[#allocation2 + $0x1d0] sm:$0xff]
        %v1003 = vld [vmem:[#allocation2 + $0x1d8] sm:$0xff]
        %v1004 = vld [vmem:[#allocation2 + $0x1e0] sm:$0xff]
        %v1005 = vld [vmem:[#allocation2 + $0x1e8] sm:$0xff]
        %v1006 = vld [vmem:[#allocation2 + $0x1f0] sm:$0xff]
        %v1007 = vld [vmem:[#allocation2 + $0x1f8] sm:$0xff]
        %v1008 = vld [vmem:[#allocation2 + $0x200] sm:$0xff]
        %v1009 = vld [vmem:[#allocation2 + $0x208] sm:$0xff]
        %v1010 = vld [vmem:[#allocation2 + $0x210] sm:$0xff]
        %v1011 = vld [vmem:[#allocation2 + $0x218] sm:$0xff]
        %v1012 = vld [vmem:[#allocation2 + $0x220] sm:$0xff]
        %v1013 = vld [vmem:[#allocation2 + $0x228] sm:$0xff]
        %v1014 = vld [vmem:[#allocation2 + $0x230] sm:$0xff]
        %v1015 = vld [vmem:[#allocation2 + $0x238] sm:$0xff]
        %v1016 = vld [vmem:[#allocation2 + $0x240] sm:$0xff]
        %v1017 = vld [vmem:[#allocation2 + $0x248] sm:$0xff]
        %v1018 = vld [vmem:[#allocation2 + $0x250] sm:$0xff]
        %v1019 = vld [vmem:[#allocation2 + $0x258] sm:$0xff]
        %v1020 = vld [vmem:[#allocation2 + $0x260] sm:$0xff]
        %v1021 = vld [vmem:[#allocation2 + $0x268] sm:$0xff]
        %v1022 = vld [vmem:[#allocation2 + $0x270] sm:$0xff]
        %v1023 = vld [vmem:[#allocation2 + $0x278] sm:$0xff]
        %v1024 = vld [vmem:[#allocation2 + $0x280] sm:$0xff]
        %v1025 = vld [vmem:[#allocation2 + $0x288] sm:$0xff]
        %v1026 = vld [vmem:[#allocation2 + $0x290] sm:$0xff]
        %v1027 = vld [vmem:[#allocation2 + $0x298] sm:$0xff]
        %v1028 = vld [vmem:[#allocation2 + $0x2a0] sm:$0xff]
        %v1029 = vld [vmem:[#allocation2 + $0x2a8] sm:$0xff]
        %v1030 = vld [vmem:[#allocation2 + $0x2b0] sm:$0xff]
        %v1031 = vld [vmem:[#allocation2 + $0x2b8] sm:$0xff]
        %v1032 = vld [vmem:[#allocation2 + $0x2c0] sm:$0xff]
        %v1033 = vld [vmem:[#allocation2 + $0x2c8] sm:$0xff]
        %v1034 = vld [vmem:[#allocation2 + $0x2d0] sm:$0xff]
        %v1035 = vld [vmem:[#allocation2 + $0x2d8] sm:$0xff]
        %v1036 = vld [vmem:[#allocation2 + $0x2e0] sm:$0xff]
        %v1037 = vld [vmem:[#allocation2 + $0x2e8] sm:$0xff]
        %v1038 = vld [vmem:[#allocation2 + $0x2f0] sm:$0xff]
        %v1039 = vld [vmem:[#allocation2 + $0x2f8] sm:$0xff]
        %v1040 = vld [vmem:[#allocation2 + $0x300] sm:$0xff]
        %v1041 = vld [vmem:[#allocation2 + $0x308] sm:$0xff]
        %v1042 = vld [vmem:[#allocation2 + $0x310] sm:$0xff]
        %v1043 = vld [vmem:[#allocation2 + $0x318] sm:$0xff]
        %v1044 = vld [vmem:[#allocation2 + $0x320] sm:$0xff]
        %v1045 = vld [vmem:[#allocation2 + $0x328] sm:$0xff]
        %v1046 = vld [vmem:[#allocation2 + $0x330] sm:$0xff]
        %v1047 = vld [vmem:[#allocation2 + $0x338] sm:$0xff]
        %v1048 = vld [vmem:[#allocation2 + $0x340] sm:$0xff]
        %v1049 = vld [vmem:[#allocation2 + $0x348] sm:$0xff]
        %v1050 = vld [vmem:[#allocation2 + $0x350] sm:$0xff]
        %v1051 = vld [vmem:[#allocation2 + $0x358] sm:$0xff]
        %v1052 = vld [vmem:[#allocation2 + $0x360] sm:$0xff]
        %v1053 = vld [vmem:[#allocation2 + $0x368] sm:$0xff]
        %v1054 = vld [vmem:[#allocation2 + $0x370] sm:$0xff]
        %v1055 = vld [vmem:[#allocation2 + $0x378] sm:$0xff]
        %v1056 = vld [vmem:[#allocation2 + $0x380] sm:$0xff]
        %v1057 = vld [vmem:[#allocation2 + $0x388] sm:$0xff]
        %v1058 = vld [vmem:[#allocation2 + $0x390] sm:$0xff]
        %v1059 = vld [vmem:[#allocation2 + $0x398] sm:$0xff]
        %v1060 = vld [vmem:[#allocation2 + $0x3a0] sm:$0xff]
        %v1061 = vld [vmem:[#allocation2 + $0x3a8] sm:$0xff]
        %v1062 = vld [vmem:[#allocation2 + $0x3b0] sm:$0xff]
        %v1063 = vld [vmem:[#allocation2 + $0x3b8] sm:$0xff]
        %v1064 = vld [vmem:[#allocation2 + $0x3c0] sm:$0xff]
        %v1065 = vld [vmem:[#allocation2 + $0x3c8] sm:$0xff]
        %v1066 = vld [vmem:[#allocation2 + $0x3d0] sm:$0xff]
        %v1067 = vld [vmem:[#allocation2 + $0x3d8] sm:$0xff]
        %v1068 = vld [vmem:[#allocation2 + $0x3e0] sm:$0xff]
        %v1069 = vld [vmem:[#allocation2 + $0x3e8] sm:$0xff]
        %v1070 = vld [vmem:[#allocation2 + $0x3f0] sm:$0xff]
        %v1071 = vld [vmem:[#allocation2 + $0x3f8] sm:$0xff]
        %v1072 = vld [vmem:[#allocation2 + $0x400] sm:$0xff]
        %v1073 = vld [vmem:[#allocation2 + $0x408] sm:$0xff]
        %v1074 = vld [vmem:[#allocation2 + $0x410] sm:$0xff]
        %v1075 = vld [vmem:[#allocation2 + $0x418] sm:$0xff]
        %v1076 = vld [vmem:[#allocation2 + $0x420] sm:$0xff]
        %v1077 = vld [vmem:[#allocation2 + $0x428] sm:$0xff]
        %v1078 = vld [vmem:[#allocation2 + $0x430] sm:$0xff]
        %v1079 = vld [vmem:[#allocation2 + $0x438] sm:$0xff]
        %v1080 = vld [vmem:[#allocation2 + $0x440] sm:$0xff]
        %v1081 = vld [vmem:[#allocation2 + $0x448] sm:$0xff]
        %v1082 = vld [vmem:[#allocation2 + $0x450] sm:$0xff]
        %v1083 = vld [vmem:[#allocation2 + $0x458] sm:$0xff]
        %v1084 = vld [vmem:[#allocation2 + $0x460] sm:$0xff]
        %v1085 = vld [vmem:[#allocation2 + $0x468] sm:$0xff]
        %v1086 = vld [vmem:[#allocation2 + $0x470] sm:$0xff]
        %v1087 = vld [vmem:[#allocation2 + $0x478] sm:$0xff]
        %v1088 = vld [vmem:[#allocation2 + $0x480] sm:$0xff]
        %v1089 = vld [vmem:[#allocation2 + $0x488] sm:$0xff]
        %v1090 = vld [vmem:[#allocation2 + $0x490] sm:$0xff]
        %v1091 = vld [vmem:[#allocation2 + $0x498] sm:$0xff]
        %v1092 = vld [vmem:[#allocation2 + $0x4a0] sm:$0xff]
        %v1093 = vld [vmem:[#allocation2 + $0x4a8] sm:$0xff]
        %v1094 = vld [vmem:[#allocation2 + $0x4b0] sm:$0xff]
        %v1095 = vld [vmem:[#allocation2 + $0x4b8] sm:$0xff]
        %v1096 = vld [vmem:[#allocation2 + $0x4c0] sm:$0xff]
        %v1097 = vld [vmem:[#allocation2 + $0x4c8] sm:$0xff]
        %v1098 = vld [vmem:[#allocation2 + $0x4d0] sm:$0xff]
        %v1099 = vld [vmem:[#allocation2 + $0x4d8] sm:$0xff]
        %v1100 = vld [vmem:[#allocation2 + $0x4e0] sm:$0xff]
        %v1101 = vld [vmem:[#allocation2 + $0x4e8] sm:$0xff]
        %v1102 = vld [vmem:[#allocation2 + $0x4f0] sm:$0xff]
        %v1103 = vld [vmem:[#allocation2 + $0x4f8] sm:$0xff]
        %v1104 = vld [vmem:[#allocation2 + $0x500] sm:$0xff]
        %v1105 = vld [vmem:[#allocation2 + $0x508] sm:$0xff]
        %v1106 = vld [vmem:[#allocation2 + $0x510] sm:$0xff]
        %v1107 = vld [vmem:[#allocation2 + $0x518] sm:$0xff]
        %v1108 = vld [vmem:[#allocation2 + $0x520] sm:$0xff]
        %v1109 = vld [vmem:[#allocation2 + $0x528] sm:$0xff]
        %v1110 = vld [vmem:[#allocation2 + $0x530] sm:$0xff]
        %v1111 = vld [vmem:[#allocation2 + $0x538] sm:$0xff]
        %v1112 = vld [vmem:[#allocation2 + $0x540] sm:$0xff]
        %v1113 = vld [vmem:[#allocation2 + $0x548] sm:$0xff]
        %v1114 = vld [vmem:[#allocation2 + $0x550] sm:$0xff]
        %v1115 = vld [vmem:[#allocation2 + $0x558] sm:$0xff]
        %v1116 = vld [vmem:[#allocation2 + $0x560] sm:$0xff]
        %v1117 = vld [vmem:[#allocation2 + $0x568] sm:$0xff]
        %v1118 = vld [vmem:[#allocation2 + $0x570] sm:$0xff]
        %v1119 = vld [vmem:[#allocation2 + $0x578] sm:$0xff]
        %v1120 = vld [vmem:[#allocation2 + $0x580] sm:$0xff]
        %v1121 = vld [vmem:[#allocation2 + $0x588] sm:$0xff]
        %v1122 = vld [vmem:[#allocation2 + $0x590] sm:$0xff]
        %v1123 = vld [vmem:[#allocation2 + $0x598] sm:$0xff]
        %v1124 = vld [vmem:[#allocation2 + $0x5a0] sm:$0xff]
        %v1125 = vld [vmem:[#allocation2 + $0x5a8] sm:$0xff]
        %v1126 = vld [vmem:[#allocation2 + $0x5b0] sm:$0xff]
        %v1127 = vld [vmem:[#allocation2 + $0x5b8] sm:$0xff]
        %v1128 = vld [vmem:[#allocation2 + $0x5c0] sm:$0xff]
        %v1129 = vld [vmem:[#allocation2 + $0x5c8] sm:$0xff]
        %v1130 = vld [vmem:[#allocation2 + $0x5d0] sm:$0xff]
        %v1131 = vld [vmem:[#allocation2 + $0x5d8] sm:$0xff]
        %v1132 = vld [vmem:[#allocation2 + $0x5e0] sm:$0xff]
        %v1133 = vld [vmem:[#allocation2 + $0x5e8] sm:$0xff]
        %v1134 = vld [vmem:[#allocation2 + $0x5f0] sm:$0xff]
        %v1135 = vld [vmem:[#allocation2 + $0x5f8] sm:$0xff]
        %v1136 = vld [vmem:[#allocation2 + $0x600] sm:$0xff]
        %v1137 = vld [vmem:[#allocation2 + $0x608] sm:$0xff]
        %v1138 = vld [vmem:[#allocation2 + $0x610] sm:$0xff]
        %v1139 = vld [vmem:[#allocation2 + $0x618] sm:$0xff]
        %v1140 = vld [vmem:[#allocation2 + $0x620] sm:$0xff]
        %v1141 = vld [vmem:[#allocation2 + $0x628] sm:$0xff]
        %v1142 = vld [vmem:[#allocation2 + $0x630] sm:$0xff]
        %v1143 = vld [vmem:[#allocation2 + $0x638] sm:$0xff]
        %v1144 = vld [vmem:[#allocation2 + $0x640] sm:$0xff]
        %v1145 = vld [vmem:[#allocation2 + $0x648] sm:$0xff]
        %v1146 = vld [vmem:[#allocation2 + $0x650] sm:$0xff]
        %v1147 = vld [vmem:[#allocation2 + $0x658] sm:$0xff]
        %v1148 = vld [vmem:[#allocation2 + $0x660] sm:$0xff]
        %v1149 = vld [vmem:[#allocation2 + $0x668] sm:$0xff]
        %v1150 = vld [vmem:[#allocation2 + $0x670] sm:$0xff]
        %v1151 = vld [vmem:[#allocation2 + $0x678] sm:$0xff]
        %v1152 = vld [vmem:[#allocation2 + $0x680] sm:$0xff]
        %v1153 = vld [vmem:[#allocation2 + $0x688] sm:$0xff]
        %v1154 = vld [vmem:[#allocation2 + $0x690] sm:$0xff]
        %v1155 = vld [vmem:[#allocation2 + $0x698] sm:$0xff]
        %v1156 = vld [vmem:[#allocation2 + $0x6a0] sm:$0xff]
        %v1157 = vld [vmem:[#allocation2 + $0x6a8] sm:$0xff]
        %v1158 = vld [vmem:[#allocation2 + $0x6b0] sm:$0xff]
        %v1159 = vld [vmem:[#allocation2 + $0x6b8] sm:$0xff]
        %v1160 = vld [vmem:[#allocation2 + $0x6c0] sm:$0xff]
        %v1161 = vld [vmem:[#allocation2 + $0x6c8] sm:$0xff]
        %v1162 = vld [vmem:[#allocation2 + $0x6d0] sm:$0xff]
        %v1163 = vld [vmem:[#allocation2 + $0x6d8] sm:$0xff]
        %v1164 = vld [vmem:[#allocation2 + $0x6e0] sm:$0xff]
        %v1165 = vld [vmem:[#allocation2 + $0x6e8] sm:$0xff]
        %v1166 = vld [vmem:[#allocation2 + $0x6f0] sm:$0xff]
        %v1167 = vld [vmem:[#allocation2 + $0x6f8] sm:$0xff]
        %v1168 = vld [vmem:[#allocation4] sm:$0xf]
        %v1170 = vlaneseq
        %v1171 = vshrl.u32 %v1170, 7
        %v1172 = vsub.s32 0, %v1171
        %v1173 = vrot.slane %v1168, %v1172
        %v1174 = vlaneseq
        %v1175 = vshrl.u32 %v1174, 7
        %v1176 = vsub.s32 1, %v1175
        %v1177 = vrot.slane %v1168, %v1176
        %v1178 = vlaneseq
        %v1179 = vshrl.u32 %v1178, 7
        %v1180 = vsub.s32 2, %v1179
        %v1181 = vrot.slane %v1168, %v1180
        %v1182 = vlaneseq
        %v1183 = vshrl.u32 %v1182, 7
        %v1184 = vsub.s32 3, %v1183
        %v1185 = vrot.slane %v1168, %v1184
        %v1414 = vunpack.c.l.b16 %v944
        %v1415 = vunpack.c.h.b16 %v944
        %v1416 = vunpack.c.l.b16 %v945
        %v1417 = vunpack.c.h.b16 %v945
        %v1418 = vunpack.c.l.b16 %v946
        %v1419 = vunpack.c.h.b16 %v946
        %v1420 = vunpack.c.l.b16 %v947
        %v1421 = vunpack.c.h.b16 %v947
        %v1422 = vunpack.c.l.b16 %v948
        %v1423 = vunpack.c.h.b16 %v948
        %v1424 = vunpack.c.l.b16 %v949
        %v1425 = vunpack.c.h.b16 %v949
        %v1426 = vunpack.c.l.b16 %v950
        %v1427 = vunpack.c.h.b16 %v950
        %v1428 = vunpack.c.l.b16 %v951
        %v1429 = vunpack.c.h.b16 %v951
        %v1430 = vunpack.c.l.b16 %v952
        %v1431 = vunpack.c.h.b16 %v952
        %v1432 = vunpack.c.l.b16 %v953
        %v1433 = vunpack.c.h.b16 %v953
        %v1434 = vunpack.c.l.b16 %v954
        %v1435 = vunpack.c.h.b16 %v954
        %v1436 = vunpack.c.l.b16 %v955
        %v1437 = vunpack.c.h.b16 %v955
        %v1438 = vunpack.c.l.b16 %v956
        %v1439 = vunpack.c.h.b16 %v956
        %v1440 = vunpack.c.l.b16 %v957
        %v1441 = vunpack.c.h.b16 %v957
        %v1442 = vunpack.c.l.b16 %v958
        %v1443 = vunpack.c.h.b16 %v958
        %v1444 = vunpack.c.l.b16 %v959
        %v1445 = vunpack.c.h.b16 %v959
        %v1446 = vunpack.c.l.b16 %v960
        %v1447 = vunpack.c.h.b16 %v960
        %v1448 = vunpack.c.l.b16 %v961
        %v1449 = vunpack.c.h.b16 %v961
        %v1450 = vunpack.c.l.b16 %v962
        %v1451 = vunpack.c.h.b16 %v962
        %v1452 = vunpack.c.l.b16 %v963
        %v1453 = vunpack.c.h.b16 %v963
        %v1454 = vunpack.c.l.b16 %v964
        %v1455 = vunpack.c.h.b16 %v964
        %v1456 = vunpack.c.l.b16 %v965
        %v1457 = vunpack.c.h.b16 %v965
        %v1458 = vunpack.c.l.b16 %v966
        %v1459 = vunpack.c.h.b16 %v966
        %v1460 = vunpack.c.l.b16 %v967
        %v1461 = vunpack.c.h.b16 %v967
        %v1462 = vunpack.c.l.b16 %v968
        %v1463 = vunpack.c.h.b16 %v968
        %v1464 = vunpack.c.l.b16 %v969
        %v1465 = vunpack.c.h.b16 %v969
        %v1466 = vunpack.c.l.b16 %v970
        %v1467 = vunpack.c.h.b16 %v970
        %v1468 = vunpack.c.l.b16 %v971
        %v1469 = vunpack.c.h.b16 %v971
        %v1470 = vunpack.c.l.b16 %v972
        %v1471 = vunpack.c.h.b16 %v972
        %v1472 = vunpack.c.l.b16 %v973
        %v1473 = vunpack.c.h.b16 %v973
        %v1474 = vunpack.c.l.b16 %v974
        %v1475 = vunpack.c.h.b16 %v974
        %v1476 = vunpack.c.l.b16 %v975
        %v1477 = vunpack.c.h.b16 %v975
        %v1478 = vunpack.c.l.b16 %v976
        %v1479 = vunpack.c.h.b16 %v976
        %v1480 = vunpack.c.l.b16 %v977
        %v1481 = vunpack.c.h.b16 %v977
        %v1482 = vunpack.c.l.b16 %v978
        %v1483 = vunpack.c.h.b16 %v978
        %v1484 = vunpack.c.l.b16 %v979
        %v1485 = vunpack.c.h.b16 %v979
        %v1486 = vunpack.c.l.b16 %v980
        %v1487 = vunpack.c.h.b16 %v980
        %v1488 = vunpack.c.l.b16 %v981
        %v1489 = vunpack.c.h.b16 %v981
        %v1490 = vunpack.c.l.b16 %v982
        %v1491 = vunpack.c.h.b16 %v982
        %v1492 = vunpack.c.l.b16 %v983
        %v1493 = vunpack.c.h.b16 %v983
        %v1494 = vunpack.c.l.b16 %v984
        %v1495 = vunpack.c.h.b16 %v984
        %v1496 = vunpack.c.l.b16 %v985
        %v1497 = vunpack.c.h.b16 %v985
        %v1498 = vunpack.c.l.b16 %v986
        %v1499 = vunpack.c.h.b16 %v986
        %v1500 = vunpack.c.l.b16 %v987
        %v1501 = vunpack.c.h.b16 %v987
        %v1502 = vunpack.c.l.b16 %v988
        %v1503 = vunpack.c.h.b16 %v988
        %v1504 = vunpack.c.l.b16 %v989
        %v1505 = vunpack.c.h.b16 %v989
        %v1506 = vunpack.c.l.b16 %v990
        %v1507 = vunpack.c.h.b16 %v990
        %v1508 = vunpack.c.l.b16 %v991
        %v1509 = vunpack.c.h.b16 %v991
        %v1510 = vunpack.c.l.b16 %v992
        %v1511 = vunpack.c.h.b16 %v992
        %v1512 = vunpack.c.l.b16 %v993
        %v1513 = vunpack.c.h.b16 %v993
        %v1514 = vunpack.c.l.b16 %v994
        %v1515 = vunpack.c.h.b16 %v994
        %v1516 = vunpack.c.l.b16 %v995
        %v1517 = vunpack.c.h.b16 %v995
        %v1518 = vunpack.c.l.b16 %v996
        %v1519 = vunpack.c.h.b16 %v996
        %v1520 = vunpack.c.l.b16 %v997
        %v1521 = vunpack.c.h.b16 %v997
        %v1522 = vunpack.c.l.b16 %v998
        %v1523 = vunpack.c.h.b16 %v998
        %v1524 = vunpack.c.l.b16 %v999
        %v1525 = vunpack.c.h.b16 %v999
        %v1526 = vunpack.c.l.b16 %v1000
        %v1527 = vunpack.c.h.b16 %v1000
        %v1528 = vunpack.c.l.b16 %v1001
        %v1529 = vunpack.c.h.b16 %v1001
        %v1530 = vunpack.c.l.b16 %v1002
        %v1531 = vunpack.c.h.b16 %v1002
        %v1532 = vunpack.c.l.b16 %v1003
        %v1533 = vunpack.c.h.b16 %v1003
        %v1534 = vunpack.c.l.b16 %v1004
        %v1535 = vunpack.c.h.b16 %v1004
        %v1536 = vunpack.c.l.b16 %v1005
        %v1537 = vunpack.c.h.b16 %v1005
        %v1538 = vunpack.c.l.b16 %v1006
        %v1539 = vunpack.c.h.b16 %v1006
        %v1540 = vunpack.c.l.b16 %v1007
        %v1541 = vunpack.c.h.b16 %v1007
        %v1542 = vunpack.c.l.b16 %v1008
        %v1543 = vunpack.c.h.b16 %v1008
        %v1544 = vunpack.c.l.b16 %v1009
        %v1545 = vunpack.c.h.b16 %v1009
        %v1546 = vunpack.c.l.b16 %v1010
        %v1547 = vunpack.c.h.b16 %v1010
        %v1548 = vunpack.c.l.b16 %v1011
        %v1549 = vunpack.c.h.b16 %v1011
        %v1550 = vunpack.c.l.b16 %v1012
        %v1551 = vunpack.c.h.b16 %v1012
        %v1552 = vunpack.c.l.b16 %v1013
        %v1553 = vunpack.c.h.b16 %v1013
        %v1554 = vunpack.c.l.b16 %v1014
        %v1555 = vunpack.c.h.b16 %v1014
        %v1556 = vunpack.c.l.b16 %v1015
        %v1557 = vunpack.c.h.b16 %v1015
        %v1558 = vunpack.c.l.b16 %v1016
        %v1559 = vunpack.c.h.b16 %v1016
        %v1560 = vunpack.c.l.b16 %v1017
        %v1561 = vunpack.c.h.b16 %v1017
        %v1562 = vunpack.c.l.b16 %v1018
        %v1563 = vunpack.c.h.b16 %v1018
        %v1564 = vunpack.c.l.b16 %v1019
        %v1565 = vunpack.c.h.b16 %v1019
        %v1566 = vunpack.c.l.b16 %v1020
        %v1567 = vunpack.c.h.b16 %v1020
        %v1568 = vunpack.c.l.b16 %v1021
        %v1569 = vunpack.c.h.b16 %v1021
        %v1570 = vunpack.c.l.b16 %v1022
        %v1571 = vunpack.c.h.b16 %v1022
        %v1572 = vunpack.c.l.b16 %v1023
        %v1573 = vunpack.c.h.b16 %v1023
        %v1574 = vunpack.c.l.b16 %v1024
        %v1575 = vunpack.c.h.b16 %v1024
        %v1576 = vunpack.c.l.b16 %v1025
        %v1577 = vunpack.c.h.b16 %v1025
        %v1578 = vunpack.c.l.b16 %v1026
        %v1579 = vunpack.c.h.b16 %v1026
        %v1580 = vunpack.c.l.b16 %v1027
        %v1581 = vunpack.c.h.b16 %v1027
        %v1582 = vunpack.c.l.b16 %v1028
        %v1583 = vunpack.c.h.b16 %v1028
        %v1584 = vunpack.c.l.b16 %v1029
        %v1585 = vunpack.c.h.b16 %v1029
        %v1586 = vunpack.c.l.b16 %v1030
        %v1587 = vunpack.c.h.b16 %v1030
        %v1588 = vunpack.c.l.b16 %v1031
        %v1589 = vunpack.c.h.b16 %v1031
        %v1590 = vunpack.c.l.b16 %v1032
        %v1591 = vunpack.c.h.b16 %v1032
        %v1592 = vunpack.c.l.b16 %v1033
        %v1593 = vunpack.c.h.b16 %v1033
        %v1594 = vunpack.c.l.b16 %v1034
        %v1595 = vunpack.c.h.b16 %v1034
        %v1596 = vunpack.c.l.b16 %v1035
        %v1597 = vunpack.c.h.b16 %v1035
        %v1598 = vunpack.c.l.b16 %v1036
        %v1599 = vunpack.c.h.b16 %v1036
        %v1600 = vunpack.c.l.b16 %v1037
        %v1601 = vunpack.c.h.b16 %v1037
        %v1602 = vunpack.c.l.b16 %v1038
        %v1603 = vunpack.c.h.b16 %v1038
        %v1604 = vunpack.c.l.b16 %v1039
        %v1605 = vunpack.c.h.b16 %v1039
        %v1606 = vunpack.c.l.b16 %v1040
        %v1607 = vunpack.c.h.b16 %v1040
        %v1608 = vunpack.c.l.b16 %v1041
        %v1609 = vunpack.c.h.b16 %v1041
        %v1610 = vunpack.c.l.b16 %v1042
        %v1611 = vunpack.c.h.b16 %v1042
        %v1612 = vunpack.c.l.b16 %v1043
        %v1613 = vunpack.c.h.b16 %v1043
        %v1614 = vunpack.c.l.b16 %v1044
        %v1615 = vunpack.c.h.b16 %v1044
        %v1616 = vunpack.c.l.b16 %v1045
        %v1617 = vunpack.c.h.b16 %v1045
        %v1618 = vunpack.c.l.b16 %v1046
        %v1619 = vunpack.c.h.b16 %v1046
        %v1620 = vunpack.c.l.b16 %v1047
        %v1621 = vunpack.c.h.b16 %v1047
        %v1622 = vunpack.c.l.b16 %v1048
        %v1623 = vunpack.c.h.b16 %v1048
        %v1624 = vunpack.c.l.b16 %v1049
        %v1625 = vunpack.c.h.b16 %v1049
        %v1626 = vunpack.c.l.b16 %v1050
        %v1627 = vunpack.c.h.b16 %v1050
        %v1628 = vunpack.c.l.b16 %v1051
        %v1629 = vunpack.c.h.b16 %v1051
        %v1630 = vunpack.c.l.b16 %v1052
        %v1631 = vunpack.c.h.b16 %v1052
        %v1632 = vunpack.c.l.b16 %v1053
        %v1633 = vunpack.c.h.b16 %v1053
        %v1634 = vunpack.c.l.b16 %v1054
        %v1635 = vunpack.c.h.b16 %v1054
        %v1636 = vunpack.c.l.b16 %v1055
        %v1637 = vunpack.c.h.b16 %v1055
        %v1638 = vunpack.c.l.b16 %v1056
        %v1639 = vunpack.c.h.b16 %v1056
        %v1640 = vunpack.c.l.b16 %v1057
        %v1641 = vunpack.c.h.b16 %v1057
        %v1642 = vunpack.c.l.b16 %v1058
        %v1643 = vunpack.c.h.b16 %v1058
        %v1644 = vunpack.c.l.b16 %v1059
        %v1645 = vunpack.c.h.b16 %v1059
        %v1646 = vunpack.c.l.b16 %v1060
        %v1647 = vunpack.c.h.b16 %v1060
        %v1648 = vunpack.c.l.b16 %v1061
        %v1649 = vunpack.c.h.b16 %v1061
        %v1650 = vunpack.c.l.b16 %v1062
        %v1651 = vunpack.c.h.b16 %v1062
        %v1652 = vunpack.c.l.b16 %v1063
        %v1653 = vunpack.c.h.b16 %v1063
        %v1654 = vunpack.c.l.b16 %v1064
        %v1655 = vunpack.c.h.b16 %v1064
        %v1656 = vunpack.c.l.b16 %v1065
        %v1657 = vunpack.c.h.b16 %v1065
        %v1658 = vunpack.c.l.b16 %v1066
        %v1659 = vunpack.c.h.b16 %v1066
        %v1660 = vunpack.c.l.b16 %v1067
        %v1661 = vunpack.c.h.b16 %v1067
        %v1662 = vunpack.c.l.b16 %v1068
        %v1663 = vunpack.c.h.b16 %v1068
        %v1664 = vunpack.c.l.b16 %v1069
        %v1665 = vunpack.c.h.b16 %v1069
        %v1666 = vunpack.c.l.b16 %v1070
        %v1667 = vunpack.c.h.b16 %v1070
        %v1668 = vunpack.c.l.b16 %v1071
        %v1669 = vunpack.c.h.b16 %v1071
        %v1670 = vunpack.c.l.b16 %v1072
        %v1671 = vunpack.c.h.b16 %v1072
        %v1672 = vunpack.c.l.b16 %v1073
        %v1673 = vunpack.c.h.b16 %v1073
        %v1674 = vunpack.c.l.b16 %v1074
        %v1675 = vunpack.c.h.b16 %v1074
        %v1676 = vunpack.c.l.b16 %v1075
        %v1677 = vunpack.c.h.b16 %v1075
        %v1678 = vunpack.c.l.b16 %v1076
        %v1679 = vunpack.c.h.b16 %v1076
        %v1680 = vunpack.c.l.b16 %v1077
        %v1681 = vunpack.c.h.b16 %v1077
        %v1682 = vunpack.c.l.b16 %v1078
        %v1683 = vunpack.c.h.b16 %v1078
        %v1684 = vunpack.c.l.b16 %v1079
        %v1685 = vunpack.c.h.b16 %v1079
        %v1686 = vunpack.c.l.b16 %v1080
        %v1687 = vunpack.c.h.b16 %v1080
        %v1688 = vunpack.c.l.b16 %v1081
        %v1689 = vunpack.c.h.b16 %v1081
        %v1690 = vunpack.c.l.b16 %v1082
        %v1691 = vunpack.c.h.b16 %v1082
        %v1692 = vunpack.c.l.b16 %v1083
        %v1693 = vunpack.c.h.b16 %v1083
        %v1694 = vunpack.c.l.b16 %v1084
        %v1695 = vunpack.c.h.b16 %v1084
        %v1696 = vunpack.c.l.b16 %v1085
        %v1697 = vunpack.c.h.b16 %v1085
        %v1698 = vunpack.c.l.b16 %v1086
        %v1699 = vunpack.c.h.b16 %v1086
        %v1700 = vunpack.c.l.b16 %v1087
        %v1701 = vunpack.c.h.b16 %v1087
        %v1702 = vunpack.c.l.b16 %v1088
        %v1703 = vunpack.c.h.b16 %v1088
        %v1704 = vunpack.c.l.b16 %v1089
        %v1705 = vunpack.c.h.b16 %v1089
        %v1706 = vunpack.c.l.b16 %v1090
        %v1707 = vunpack.c.h.b16 %v1090
        %v1708 = vunpack.c.l.b16 %v1091
        %v1709 = vunpack.c.h.b16 %v1091
        %v1710 = vunpack.c.l.b16 %v1092
        %v1711 = vunpack.c.h.b16 %v1092
        %v1712 = vunpack.c.l.b16 %v1093
        %v1713 = vunpack.c.h.b16 %v1093
        %v1714 = vunpack.c.l.b16 %v1094
        %v1715 = vunpack.c.h.b16 %v1094
        %v1716 = vunpack.c.l.b16 %v1095
        %v1717 = vunpack.c.h.b16 %v1095
        %v1718 = vunpack.c.l.b16 %v1096
        %v1719 = vunpack.c.h.b16 %v1096
        %v1720 = vunpack.c.l.b16 %v1097
        %v1721 = vunpack.c.h.b16 %v1097
        %v1722 = vunpack.c.l.b16 %v1098
        %v1723 = vunpack.c.h.b16 %v1098
        %v1724 = vunpack.c.l.b16 %v1099
        %v1725 = vunpack.c.h.b16 %v1099
        %v1726 = vunpack.c.l.b16 %v1100
        %v1727 = vunpack.c.h.b16 %v1100
        %v1728 = vunpack.c.l.b16 %v1101
        %v1729 = vunpack.c.h.b16 %v1101
        %v1730 = vunpack.c.l.b16 %v1102
        %v1731 = vunpack.c.h.b16 %v1102
        %v1732 = vunpack.c.l.b16 %v1103
        %v1733 = vunpack.c.h.b16 %v1103
        %v1734 = vunpack.c.l.b16 %v1104
        %v1735 = vunpack.c.h.b16 %v1104
        %v1736 = vunpack.c.l.b16 %v1105
        %v1737 = vunpack.c.h.b16 %v1105
        %v1738 = vunpack.c.l.b16 %v1106
        %v1739 = vunpack.c.h.b16 %v1106
        %v1740 = vunpack.c.l.b16 %v1107
        %v1741 = vunpack.c.h.b16 %v1107
        %v1742 = vunpack.c.l.b16 %v1108
        %v1743 = vunpack.c.h.b16 %v1108
        %v1744 = vunpack.c.l.b16 %v1109
        %v1745 = vunpack.c.h.b16 %v1109
        %v1746 = vunpack.c.l.b16 %v1110
        %v1747 = vunpack.c.h.b16 %v1110
        %v1748 = vunpack.c.l.b16 %v1111
        %v1749 = vunpack.c.h.b16 %v1111
        %v1750 = vunpack.c.l.b16 %v1112
        %v1751 = vunpack.c.h.b16 %v1112
        %v1752 = vunpack.c.l.b16 %v1113
        %v1753 = vunpack.c.h.b16 %v1113
        %v1754 = vunpack.c.l.b16 %v1114
        %v1755 = vunpack.c.h.b16 %v1114
        %v1756 = vunpack.c.l.b16 %v1115
        %v1757 = vunpack.c.h.b16 %v1115
        %v1758 = vunpack.c.l.b16 %v1116
        %v1759 = vunpack.c.h.b16 %v1116
        %v1760 = vunpack.c.l.b16 %v1117
        %v1761 = vunpack.c.h.b16 %v1117
        %v1762 = vunpack.c.l.b16 %v1118
        %v1763 = vunpack.c.h.b16 %v1118
        %v1764 = vunpack.c.l.b16 %v1119
        %v1765 = vunpack.c.h.b16 %v1119
        %v1766 = vunpack.c.l.b16 %v1120
        %v1767 = vunpack.c.h.b16 %v1120
        %v1768 = vunpack.c.l.b16 %v1121
        %v1769 = vunpack.c.h.b16 %v1121
        %v1770 = vunpack.c.l.b16 %v1122
        %v1771 = vunpack.c.h.b16 %v1122
        %v1772 = vunpack.c.l.b16 %v1123
        %v1773 = vunpack.c.h.b16 %v1123
        %v1774 = vunpack.c.l.b16 %v1124
        %v1775 = vunpack.c.h.b16 %v1124
        %v1776 = vunpack.c.l.b16 %v1125
        %v1777 = vunpack.c.h.b16 %v1125
        %v1778 = vunpack.c.l.b16 %v1126
        %v1779 = vunpack.c.h.b16 %v1126
        %v1780 = vunpack.c.l.b16 %v1127
        %v1781 = vunpack.c.h.b16 %v1127
        %v1782 = vunpack.c.l.b16 %v1128
        %v1783 = vunpack.c.h.b16 %v1128
        %v1784 = vunpack.c.l.b16 %v1129
        %v1785 = vunpack.c.h.b16 %v1129
        %v1786 = vunpack.c.l.b16 %v1130
        %v1787 = vunpack.c.h.b16 %v1130
        %v1788 = vunpack.c.l.b16 %v1131
        %v1789 = vunpack.c.h.b16 %v1131
        %v1790 = vunpack.c.l.b16 %v1132
        %v1791 = vunpack.c.h.b16 %v1132
        %v1792 = vunpack.c.l.b16 %v1133
        %v1793 = vunpack.c.h.b16 %v1133
        %v1794 = vunpack.c.l.b16 %v1134
        %v1795 = vunpack.c.h.b16 %v1134
        %v1796 = vunpack.c.l.b16 %v1135
        %v1797 = vunpack.c.h.b16 %v1135
        %v1798 = vunpack.c.l.b16 %v1136
        %v1799 = vunpack.c.h.b16 %v1136
        %v1800 = vunpack.c.l.b16 %v1137
        %v1801 = vunpack.c.h.b16 %v1137
        %v1802 = vunpack.c.l.b16 %v1138
        %v1803 = vunpack.c.h.b16 %v1138
        %v1804 = vunpack.c.l.b16 %v1139
        %v1805 = vunpack.c.h.b16 %v1139
        %v1806 = vunpack.c.l.b16 %v1140
        %v1807 = vunpack.c.h.b16 %v1140
        %v1808 = vunpack.c.l.b16 %v1141
        %v1809 = vunpack.c.h.b16 %v1141
        %v1810 = vunpack.c.l.b16 %v1142
        %v1811 = vunpack.c.h.b16 %v1142
        %v1812 = vunpack.c.l.b16 %v1143
        %v1813 = vunpack.c.h.b16 %v1143
        %v1814 = vunpack.c.l.b16 %v1144
        %v1815 = vunpack.c.h.b16 %v1144
        %v1816 = vunpack.c.l.b16 %v1145
        %v1817 = vunpack.c.h.b16 %v1145
        %v1818 = vunpack.c.l.b16 %v1146
        %v1819 = vunpack.c.h.b16 %v1146
        %v1820 = vunpack.c.l.b16 %v1147
        %v1821 = vunpack.c.h.b16 %v1147
        %v1822 = vunpack.c.l.b16 %v1148
        %v1823 = vunpack.c.h.b16 %v1148
        %v1824 = vunpack.c.l.b16 %v1149
        %v1825 = vunpack.c.h.b16 %v1149
        %v1826 = vunpack.c.l.b16 %v1150
        %v1827 = vunpack.c.h.b16 %v1150
        %v1828 = vunpack.c.l.b16 %v1151
        %v1829 = vunpack.c.h.b16 %v1151
        %v1830 = vunpack.c.l.b16 %v1152
        %v1831 = vunpack.c.h.b16 %v1152
        %v1832 = vunpack.c.l.b16 %v1153
        %v1833 = vunpack.c.h.b16 %v1153
        %v1834 = vunpack.c.l.b16 %v1154
        %v1835 = vunpack.c.h.b16 %v1154
        %v1836 = vunpack.c.l.b16 %v1155
        %v1837 = vunpack.c.h.b16 %v1155
        %v1838 = vunpack.c.l.b16 %v1156
        %v1839 = vunpack.c.h.b16 %v1156
        %v1840 = vunpack.c.l.b16 %v1157
        %v1841 = vunpack.c.h.b16 %v1157
        %v1842 = vunpack.c.l.b16 %v1158
        %v1843 = vunpack.c.h.b16 %v1158
        %v1844 = vunpack.c.l.b16 %v1159
        %v1845 = vunpack.c.h.b16 %v1159
        %v1846 = vunpack.c.l.b16 %v1160
        %v1847 = vunpack.c.h.b16 %v1160
        %v1848 = vunpack.c.l.b16 %v1161
        %v1849 = vunpack.c.h.b16 %v1161
        %v1850 = vunpack.c.l.b16 %v1162
        %v1851 = vunpack.c.h.b16 %v1162
        %v1852 = vunpack.c.l.b16 %v1163
        %v1853 = vunpack.c.h.b16 %v1163
        %v1854 = vunpack.c.l.b16 %v1164
        %v1855 = vunpack.c.h.b16 %v1164
        %v1856 = vunpack.c.l.b16 %v1165
        %v1857 = vunpack.c.h.b16 %v1165
        %v1858 = vunpack.c.l.b16 %v1166
        %v1859 = vunpack.c.h.b16 %v1166
        %v1860 = vunpack.c.l.b16 %v1167
        %v1861 = vunpack.c.h.b16 %v1167
        %v1862 = vpack.c.b16 %v1418, %v1414
        %v1863 = vpack.c.b16 %v1419, %v1415
        %v1864 = vpack.c.b16 %v1420, %v1416
        %v1865 = vpack.c.b16 %v1421, %v1417
        %v1866 = vpack.c.b16 %v1426, %v1422
        %v1867 = vpack.c.b16 %v1427, %v1423
        %v1868 = vpack.c.b16 %v1428, %v1424
        %v1869 = vpack.c.b16 %v1429, %v1425
        %v1870 = vpack.c.b16 %v1434, %v1430
        %v1871 = vpack.c.b16 %v1435, %v1431
        %v1872 = vpack.c.b16 %v1436, %v1432
        %v1873 = vpack.c.b16 %v1437, %v1433
        %v1874 = vpack.c.b16 %v1442, %v1438
        %v1875 = vpack.c.b16 %v1443, %v1439
        %v1876 = vpack.c.b16 %v1444, %v1440
        %v1877 = vpack.c.b16 %v1445, %v1441
        %v1878 = vpack.c.b16 %v1450, %v1446
        %v1879 = vpack.c.b16 %v1451, %v1447
        %v1880 = vpack.c.b16 %v1452, %v1448
        %v1881 = vpack.c.b16 %v1453, %v1449
        %v1882 = vpack.c.b16 %v1458, %v1454
        %v1883 = vpack.c.b16 %v1459, %v1455
        %v1884 = vpack.c.b16 %v1460, %v1456
        %v1885 = vpack.c.b16 %v1461, %v1457
        %v1886 = vpack.c.b16 %v1466, %v1462
        %v1887 = vpack.c.b16 %v1467, %v1463
        %v1888 = vpack.c.b16 %v1468, %v1464
        %v1889 = vpack.c.b16 %v1469, %v1465
        %v1890 = vpack.c.b16 %v1474, %v1470
        %v1891 = vpack.c.b16 %v1475, %v1471
        %v1892 = vpack.c.b16 %v1476, %v1472
        %v1893 = vpack.c.b16 %v1477, %v1473
        %v1894 = vpack.c.b16 %v1482, %v1478
        %v1895 = vpack.c.b16 %v1483, %v1479
        %v1896 = vpack.c.b16 %v1484, %v1480
        %v1897 = vpack.c.b16 %v1485, %v1481
        %v1898 = vpack.c.b16 %v1490, %v1486
        %v1899 = vpack.c.b16 %v1491, %v1487
        %v1900 = vpack.c.b16 %v1492, %v1488
        %v1901 = vpack.c.b16 %v1493, %v1489
        %v1902 = vpack.c.b16 %v1498, %v1494
        %v1903 = vpack.c.b16 %v1499, %v1495
        %v1904 = vpack.c.b16 %v1500, %v1496
        %v1905 = vpack.c.b16 %v1501, %v1497
        %v1906 = vpack.c.b16 %v1506, %v1502
        %v1907 = vpack.c.b16 %v1507, %v1503
        %v1908 = vpack.c.b16 %v1508, %v1504
        %v1909 = vpack.c.b16 %v1509, %v1505
        %v1910 = vpack.c.b16 %v1514, %v1510
        %v1911 = vpack.c.b16 %v1515, %v1511
        %v1912 = vpack.c.b16 %v1516, %v1512
        %v1913 = vpack.c.b16 %v1517, %v1513
        %v1914 = vpack.c.b16 %v1522, %v1518
        %v1915 = vpack.c.b16 %v1523, %v1519
        %v1916 = vpack.c.b16 %v1524, %v1520
        %v1917 = vpack.c.b16 %v1525, %v1521
        %v1918 = vpack.c.b16 %v1530, %v1526
        %v1919 = vpack.c.b16 %v1531, %v1527
        %v1920 = vpack.c.b16 %v1532, %v1528
        %v1921 = vpack.c.b16 %v1533, %v1529
        %v1922 = vpack.c.b16 %v1538, %v1534
        %v1923 = vpack.c.b16 %v1539, %v1535
        %v1924 = vpack.c.b16 %v1540, %v1536
        %v1925 = vpack.c.b16 %v1541, %v1537
        %v1926 = vpack.c.b16 %v1546, %v1542
        %v1927 = vpack.c.b16 %v1547, %v1543
        %v1928 = vpack.c.b16 %v1548, %v1544
        %v1929 = vpack.c.b16 %v1549, %v1545
        %v1930 = vpack.c.b16 %v1554, %v1550
        %v1931 = vpack.c.b16 %v1555, %v1551
        %v1932 = vpack.c.b16 %v1556, %v1552
        %v1933 = vpack.c.b16 %v1557, %v1553
        %v1934 = vpack.c.b16 %v1562, %v1558
        %v1935 = vpack.c.b16 %v1563, %v1559
        %v1936 = vpack.c.b16 %v1564, %v1560
        %v1937 = vpack.c.b16 %v1565, %v1561
        %v1938 = vpack.c.b16 %v1570, %v1566
        %v1939 = vpack.c.b16 %v1571, %v1567
        %v1940 = vpack.c.b16 %v1572, %v1568
        %v1941 = vpack.c.b16 %v1573, %v1569
        %v1942 = vpack.c.b16 %v1578, %v1574
        %v1943 = vpack.c.b16 %v1579, %v1575
        %v1944 = vpack.c.b16 %v1580, %v1576
        %v1945 = vpack.c.b16 %v1581, %v1577
        %v1946 = vpack.c.b16 %v1586, %v1582
        %v1947 = vpack.c.b16 %v1587, %v1583
        %v1948 = vpack.c.b16 %v1588, %v1584
        %v1949 = vpack.c.b16 %v1589, %v1585
        %v1950 = vpack.c.b16 %v1594, %v1590
        %v1951 = vpack.c.b16 %v1595, %v1591
        %v1952 = vpack.c.b16 %v1596, %v1592
        %v1953 = vpack.c.b16 %v1597, %v1593
        %v1954 = vpack.c.b16 %v1602, %v1598
        %v1955 = vpack.c.b16 %v1603, %v1599
        %v1956 = vpack.c.b16 %v1604, %v1600
        %v1957 = vpack.c.b16 %v1605, %v1601
        %v1958 = vpack.c.b16 %v1610, %v1606
        %v1959 = vpack.c.b16 %v1611, %v1607
        %v1960 = vpack.c.b16 %v1612, %v1608
        %v1961 = vpack.c.b16 %v1613, %v1609
        %v1962 = vpack.c.b16 %v1618, %v1614
        %v1963 = vpack.c.b16 %v1619, %v1615
        %v1964 = vpack.c.b16 %v1620, %v1616
        %v1965 = vpack.c.b16 %v1621, %v1617
        %v1966 = vpack.c.b16 %v1626, %v1622
        %v1967 = vpack.c.b16 %v1627, %v1623
        %v1968 = vpack.c.b16 %v1628, %v1624
        %v1969 = vpack.c.b16 %v1629, %v1625
        %v1970 = vpack.c.b16 %v1634, %v1630
        %v1971 = vpack.c.b16 %v1635, %v1631
        %v1972 = vpack.c.b16 %v1636, %v1632
        %v1973 = vpack.c.b16 %v1637, %v1633
        %v1974 = vpack.c.b16 %v1642, %v1638
        %v1975 = vpack.c.b16 %v1643, %v1639
        %v1976 = vpack.c.b16 %v1644, %v1640
        %v1977 = vpack.c.b16 %v1645, %v1641
        %v1978 = vpack.c.b16 %v1650, %v1646
        %v1979 = vpack.c.b16 %v1651, %v1647
        %v1980 = vpack.c.b16 %v1652, %v1648
        %v1981 = vpack.c.b16 %v1653, %v1649
        %v1982 = vpack.c.b16 %v1658, %v1654
        %v1983 = vpack.c.b16 %v1659, %v1655
        %v1984 = vpack.c.b16 %v1660, %v1656
        %v1985 = vpack.c.b16 %v1661, %v1657
        %v1986 = vpack.c.b16 %v1666, %v1662
        %v1987 = vpack.c.b16 %v1667, %v1663
        %v1988 = vpack.c.b16 %v1668, %v1664
        %v1989 = vpack.c.b16 %v1669, %v1665
        %v1990 = vpack.c.b16 %v1674, %v1670
        %v1991 = vpack.c.b16 %v1675, %v1671
        %v1992 = vpack.c.b16 %v1676, %v1672
        %v1993 = vpack.c.b16 %v1677, %v1673
        %v1994 = vpack.c.b16 %v1682, %v1678
        %v1995 = vpack.c.b16 %v1683, %v1679
        %v1996 = vpack.c.b16 %v1684, %v1680
        %v1997 = vpack.c.b16 %v1685, %v1681
        %v1998 = vpack.c.b16 %v1690, %v1686
        %v1999 = vpack.c.b16 %v1691, %v1687
        %v2000 = vpack.c.b16 %v1692, %v1688
        %v2001 = vpack.c.b16 %v1693, %v1689
        %v2002 = vpack.c.b16 %v1698, %v1694
        %v2003 = vpack.c.b16 %v1699, %v1695
        %v2004 = vpack.c.b16 %v1700, %v1696
        %v2005 = vpack.c.b16 %v1701, %v1697
        %v2006 = vpack.c.b16 %v1706, %v1702
        %v2007 = vpack.c.b16 %v1707, %v1703
        %v2008 = vpack.c.b16 %v1708, %v1704
        %v2009 = vpack.c.b16 %v1709, %v1705
        %v2010 = vpack.c.b16 %v1714, %v1710
        %v2011 = vpack.c.b16 %v1715, %v1711
        %v2012 = vpack.c.b16 %v1716, %v1712
        %v2013 = vpack.c.b16 %v1717, %v1713
        %v2014 = vpack.c.b16 %v1722, %v1718
        %v2015 = vpack.c.b16 %v1723, %v1719
        %v2016 = vpack.c.b16 %v1724, %v1720
        %v2017 = vpack.c.b16 %v1725, %v1721
        %v2018 = vpack.c.b16 %v1730, %v1726
        %v2019 = vpack.c.b16 %v1731, %v1727
        %v2020 = vpack.c.b16 %v1732, %v1728
        %v2021 = vpack.c.b16 %v1733, %v1729
        %v2022 = vpack.c.b16 %v1738, %v1734
        %v2023 = vpack.c.b16 %v1739, %v1735
        %v2024 = vpack.c.b16 %v1740, %v1736
        %v2025 = vpack.c.b16 %v1741, %v1737
        %v2026 = vpack.c.b16 %v1746, %v1742
        %v2027 = vpack.c.b16 %v1747, %v1743
        %v2028 = vpack.c.b16 %v1748, %v1744
        %v2029 = vpack.c.b16 %v1749, %v1745
        %v2030 = vpack.c.b16 %v1754, %v1750
        %v2031 = vpack.c.b16 %v1755, %v1751
        %v2032 = vpack.c.b16 %v1756, %v1752
        %v2033 = vpack.c.b16 %v1757, %v1753
        %v2034 = vpack.c.b16 %v1762, %v1758
        %v2035 = vpack.c.b16 %v1763, %v1759
        %v2036 = vpack.c.b16 %v1764, %v1760
        %v2037 = vpack.c.b16 %v1765, %v1761
        %v2038 = vpack.c.b16 %v1770, %v1766
        %v2039 = vpack.c.b16 %v1771, %v1767
        %v2040 = vpack.c.b16 %v1772, %v1768
        %v2041 = vpack.c.b16 %v1773, %v1769
        %v2042 = vpack.c.b16 %v1778, %v1774
        %v2043 = vpack.c.b16 %v1779, %v1775
        %v2044 = vpack.c.b16 %v1780, %v1776
        %v2045 = vpack.c.b16 %v1781, %v1777
        %v2046 = vpack.c.b16 %v1786, %v1782
        %v2047 = vpack.c.b16 %v1787, %v1783
        %v2048 = vpack.c.b16 %v1788, %v1784
        %v2049 = vpack.c.b16 %v1789, %v1785
        %v2050 = vpack.c.b16 %v1794, %v1790
        %v2051 = vpack.c.b16 %v1795, %v1791
        %v2052 = vpack.c.b16 %v1796, %v1792
        %v2053 = vpack.c.b16 %v1797, %v1793
        %v2054 = vpack.c.b16 %v1802, %v1798
        %v2055 = vpack.c.b16 %v1803, %v1799
        %v2056 = vpack.c.b16 %v1804, %v1800
        %v2057 = vpack.c.b16 %v1805, %v1801
        %v2058 = vpack.c.b16 %v1810, %v1806
        %v2059 = vpack.c.b16 %v1811, %v1807
        %v2060 = vpack.c.b16 %v1812, %v1808
        %v2061 = vpack.c.b16 %v1813, %v1809
        %v2062 = vpack.c.b16 %v1818, %v1814
        %v2063 = vpack.c.b16 %v1819, %v1815
        %v2064 = vpack.c.b16 %v1820, %v1816
        %v2065 = vpack.c.b16 %v1821, %v1817
        %v2066 = vpack.c.b16 %v1826, %v1822
        %v2067 = vpack.c.b16 %v1827, %v1823
        %v2068 = vpack.c.b16 %v1828, %v1824
        %v2069 = vpack.c.b16 %v1829, %v1825
        %v2070 = vpack.c.b16 %v1834, %v1830
        %v2071 = vpack.c.b16 %v1835, %v1831
        %v2072 = vpack.c.b16 %v1836, %v1832
        %v2073 = vpack.c.b16 %v1837, %v1833
        %v2074 = vpack.c.b16 %v1842, %v1838
        %v2075 = vpack.c.b16 %v1843, %v1839
        %v2076 = vpack.c.b16 %v1844, %v1840
        %v2077 = vpack.c.b16 %v1845, %v1841
        %v2078 = vpack.c.b16 %v1850, %v1846
        %v2079 = vpack.c.b16 %v1851, %v1847
        %v2080 = vpack.c.b16 %v1852, %v1848
        %v2081 = vpack.c.b16 %v1853, %v1849
        %v2082 = vpack.c.b16 %v1858, %v1854
        %v2083 = vpack.c.b16 %v1859, %v1855
        %v2084 = vpack.c.b16 %v1860, %v1856
        %v2085 = vpack.c.b16 %v1861, %v1857
        %2310 = vmatprep.subr.bf16.mxu0 %v1891
        %2311 = vmatpush1.bf16.msra.mxu0 %v1890
        %2312 = vmatprep.subr.bf16.mxu0 %v1887
        %2313 = vmatpush1.bf16.msra.mxu0 %v1886
        %2314 = vmatprep.subr.bf16.mxu0 %v1883
        %2315 = vmatpush1.bf16.msra.mxu0 %v1882
        %2316 = vmatprep.subr.bf16.mxu0 %v1879
        %2317 = vmatpush1.bf16.msra.mxu0 %v1878
        %2318 = vmatprep.subr.bf16.mxu0 %v1875
        %2319 = vmatpush1.bf16.msra.mxu0 %v1874
        %2320 = vmatprep.subr.bf16.mxu0 %v1871
        %2321 = vmatpush1.bf16.msra.mxu0 %v1870
        %2322 = vmatprep.subr.bf16.mxu0 %v1867
        %2323 = vmatpush1.bf16.msra.mxu0 %v1866
        %2324 = vmatprep.subr.bf16.mxu0 %v1863
        %2325 = vmatpush1.bf16.msra.mxu0 %v1862
        %2326 = vmatprep.subr.bf16.mxu0 %v1923
        %2327 = vmatpush2.bf16.msra.mxu0 %v1922
        %2328 = vmatprep.subr.bf16.mxu0 %v1919
        %2329 = vmatpush2.bf16.msra.mxu0 %v1918
        %2330 = vmatprep.subr.bf16.mxu0 %v1915
        %2331 = vmatpush2.bf16.msra.mxu0 %v1914
        %2332 = vmatprep.subr.bf16.mxu0 %v1911
        %2333 = vmatpush2.bf16.msra.mxu0 %v1910
        %2334 = vmatprep.subr.bf16.mxu0 %v1907
        %2335 = vmatpush2.bf16.msra.mxu0 %v1906
        %2336 = vmatprep.subr.bf16.mxu0 %v1903
        %2337 = vmatpush2.bf16.msra.mxu0 %v1902
        %2338 = vmatprep.subr.bf16.mxu0 %v1899
        %2339 = vmatpush2.bf16.msra.mxu0 %v1898
        %2340 = vmatprep.subr.bf16.mxu0 %v1895
        %2341 = vmatpush2.bf16.msra.mxu0 %v1894
        %2342 = vmatprep.mubr.bf16.mxu0 %v931
        %2343 = vmatmul.mubr.bf16.gmra.mxu0 %v930
        %v2344 = vpop.f32.mrf.mxu0
        %v2345 = vadd.f32 %v1173, %v2344
        %v2346 = vpop.f32.mrf.mxu0
        %v2347 = vadd.f32 %v1177, %v2346
        %v2348 = vpop.f32.mrf.mxu0
        %v2349 = vadd.f32 %v1173, %v2348
        %v2350 = vpop.f32.mrf.mxu0
        %v2351 = vadd.f32 %v1177, %v2350
        %2352 = vmatprep.mubr.bf16.mxu0 %v938
        %2353 = vmatmul.mubr.bf16.gmra.mxu0 %v937
        %v2354 = vpop.f32.mrf.mxu0
        %v2355 = vadd.f32 %v1173, %v2354
        %v2356 = vpop.f32.mrf.mxu0
        %v2357 = vadd.f32 %v1177, %v2356
        %v2358 = vpop.f32.mrf.mxu0
        %v2359 = vadd.f32 %v1173, %v2358
        %v2360 = vpop.f32.mrf.mxu0
        %v2361 = vadd.f32 %v1177, %v2360
        %2362 = vdwg.mxu0
        %2363 = vmatprep.subr.bf16.mxu0 %v1955
        %2364 = vmatpush1.bf16.msra.mxu0 %v1954
        %2365 = vmatprep.subr.bf16.mxu0 %v1951
        %2366 = vmatpush1.bf16.msra.mxu0 %v1950
        %2367 = vmatprep.subr.bf16.mxu0 %v1947
        %2368 = vmatpush1.bf16.msra.mxu0 %v1946
        %2369 = vmatprep.subr.bf16.mxu0 %v1943
        %2370 = vmatpush1.bf16.msra.mxu0 %v1942
        %2371 = vmatprep.subr.bf16.mxu0 %v1939
        %2372 = vmatpush1.bf16.msra.mxu0 %v1938
        %2373 = vmatprep.subr.bf16.mxu0 %v1935
        %2374 = vmatpush1.bf16.msra.mxu0 %v1934
        %2375 = vmatprep.subr.bf16.mxu0 %v1931
        %2376 = vmatpush1.bf16.msra.mxu0 %v1930
        %2377 = vmatprep.subr.bf16.mxu0 %v1927
        %2378 = vmatpush1.bf16.msra.mxu0 %v1926
        %2379 = vmatprep.subr.bf16.mxu0 %v1987
        %2380 = vmatpush2.bf16.msra.mxu0 %v1986
        %2381 = vmatprep.subr.bf16.mxu0 %v1983
        %2382 = vmatpush2.bf16.msra.mxu0 %v1982
        %2383 = vmatprep.subr.bf16.mxu0 %v1979
        %2384 = vmatpush2.bf16.msra.mxu0 %v1978
        %2385 = vmatprep.subr.bf16.mxu0 %v1975
        %2386 = vmatpush2.bf16.msra.mxu0 %v1974
        %2387 = vmatprep.subr.bf16.mxu0 %v1971
        %2388 = vmatpush2.bf16.msra.mxu0 %v1970
        %2389 = vmatprep.subr.bf16.mxu0 %v1967
        %2390 = vmatpush2.bf16.msra.mxu0 %v1966
        %2391 = vmatprep.subr.bf16.mxu0 %v1963
        %2392 = vmatpush2.bf16.msra.mxu0 %v1962
        %2393 = vmatprep.subr.bf16.mxu0 %v1959
        %2394 = vmatpush2.bf16.msra.mxu0 %v1958
        %2395 = vmatprep.mubr.bf16.mxu0 %v933
        %2396 = vmatmul.mubr.bf16.gmra.mxu0 %v932
        %v2397 = vpop.f32.mrf.mxu0
        %v2398 = vadd.f32 %v2345, %v2397
        %v2399 = vpop.f32.mrf.mxu0
        %v2400 = vadd.f32 %v2347, %v2399
        %v2401 = vpop.f32.mrf.mxu0
        %v2402 = vadd.f32 %v2349, %v2401
        %v2403 = vpop.f32.mrf.mxu0
        %v2404 = vadd.f32 %v2351, %v2403
        %2405 = vmatprep.mubr.bf16.mxu0 %v940
        %2406 = vmatmul.mubr.bf16.gmra.mxu0 %v939
        %v2407 = vpop.f32.mrf.mxu0
        %v2408 = vadd.f32 %v2355, %v2407
        %v2409 = vpop.f32.mrf.mxu0
        %v2410 = vadd.f32 %v2357, %v2409
        %v2411 = vpop.f32.mrf.mxu0
        %v2412 = vadd.f32 %v2359, %v2411
        %v2413 = vpop.f32.mrf.mxu0
        %v2414 = vadd.f32 %v2361, %v2413
        %2415 = vdwg.mxu0
        %2416 = vmatprep.subr.bf16.mxu0 %v2019
        %2417 = vmatpush1.bf16.msra.mxu0 %v2018
        %2418 = vmatprep.subr.bf16.mxu0 %v2015
        %2419 = vmatpush1.bf16.msra.mxu0 %v2014
        %2420 = vmatprep.subr.bf16.mxu0 %v2011
        %2421 = vmatpush1.bf16.msra.mxu0 %v2010
        %2422 = vmatprep.subr.bf16.mxu0 %v2007
        %2423 = vmatpush1.bf16.msra.mxu0 %v2006
        %2424 = vmatprep.subr.bf16.mxu0 %v2003
        %2425 = vmatpush1.bf16.msra.mxu0 %v2002
        %2426 = vmatprep.subr.bf16.mxu0 %v1999
        %2427 = vmatpush1.bf16.msra.mxu0 %v1998
        %2428 = vmatprep.subr.bf16.mxu0 %v1995
        %2429 = vmatpush1.bf16.msra.mxu0 %v1994
        %2430 = vmatprep.subr.bf16.mxu0 %v1991
        %2431 = vmatpush1.bf16.msra.mxu0 %v1990
        %2432 = vmatprep.subr.bf16.mxu0 %v2051
        %2433 = vmatpush2.bf16.msra.mxu0 %v2050
        %2434 = vmatprep.subr.bf16.mxu0 %v2047
        %2435 = vmatpush2.bf16.msra.mxu0 %v2046
        %2436 = vmatprep.subr.bf16.mxu0 %v2043
        %2437 = vmatpush2.bf16.msra.mxu0 %v2042
        %2438 = vmatprep.subr.bf16.mxu0 %v2039
        %2439 = vmatpush2.bf16.msra.mxu0 %v2038
        %2440 = vmatprep.subr.bf16.mxu0 %v2035
        %2441 = vmatpush2.bf16.msra.mxu0 %v2034
        %2442 = vmatprep.subr.bf16.mxu0 %v2031
        %2443 = vmatpush2.bf16.msra.mxu0 %v2030
        %2444 = vmatprep.subr.bf16.mxu0 %v2027
        %2445 = vmatpush2.bf16.msra.mxu0 %v2026
        %2446 = vmatprep.subr.bf16.mxu0 %v2023
        %2447 = vmatpush2.bf16.msra.mxu0 %v2022
        %2448 = vmatprep.mubr.bf16.mxu0 %v935
        %2449 = vmatmul.mubr.bf16.gmra.mxu0 %v934
        %v2450 = vpop.f32.mrf.mxu0
        %v2451 = vadd.f32 %v2398, %v2450
        %v2452 = vpop.f32.mrf.mxu0
        %v2453 = vadd.f32 %v2400, %v2452
        %v2454 = vpop.f32.mrf.mxu0
        %v2455 = vadd.f32 %v2402, %v2454
        %v2456 = vpop.f32.mrf.mxu0
        %v2457 = vadd.f32 %v2404, %v2456
        %2458 = vmatprep.mubr.bf16.mxu0 %v942
        %2459 = vmatmul.mubr.bf16.gmra.mxu0 %v941
        %v2460 = vpop.f32.mrf.mxu0
        %v2461 = vadd.f32 %v2408, %v2460
        %v2462 = vpop.f32.mrf.mxu0
        %v2463 = vadd.f32 %v2410, %v2462
        %v2464 = vpop.f32.mrf.mxu0
        %v2465 = vadd.f32 %v2412, %v2464
        %v2466 = vpop.f32.mrf.mxu0
        %v2467 = vadd.f32 %v2414, %v2466
        %2468 = vdwg.mxu0
        %2469 = vmatprep.subr.bf16.mxu0 %v2083
        %2470 = vmatpush1.bf16.msra.mxu0 %v2082
        %2471 = vmatprep.subr.bf16.mxu0 %v2079
        %2472 = vmatpush1.bf16.msra.mxu0 %v2078
        %2473 = vmatprep.subr.bf16.mxu0 %v2075
        %2474 = vmatpush1.bf16.msra.mxu0 %v2074
        %2475 = vmatprep.subr.bf16.mxu0 %v2071
        %2476 = vmatpush1.bf16.msra.mxu0 %v2070
        %2477 = vmatprep.subr.bf16.mxu0 %v2067
        %2478 = vmatpush1.bf16.msra.mxu0 %v2066
        %2479 = vmatprep.subr.bf16.mxu0 %v2063
        %2480 = vmatpush1.bf16.msra.mxu0 %v2062
        %2481 = vmatprep.subr.bf16.mxu0 %v2059
        %2482 = vmatpush1.bf16.msra.mxu0 %v2058
        %2483 = vmatprep.subr.bf16.mxu0 %v2055
        %2484 = vmatpush1.bf16.msra.mxu0 %v2054
        %2485 = vmatprep.subr.bf16.mxu0 0
        %2486 = vmatpush2.bf16.msra.mxu0 0
        %2487 = vmatprep.subr.bf16.mxu0 0
        %2488 = vmatpush2.bf16.msra.mxu0 0
        %2489 = vmatprep.subr.bf16.mxu0 0
        %2490 = vmatpush2.bf16.msra.mxu0 0
        %2491 = vmatprep.subr.bf16.mxu0 0
        %2492 = vmatpush2.bf16.msra.mxu0 0
        %2493 = vmatprep.subr.bf16.mxu0 0
        %2494 = vmatpush2.bf16.msra.mxu0 0
        %2495 = vmatprep.subr.bf16.mxu0 0
        %2496 = vmatpush2.bf16.msra.mxu0 0
        %2497 = vmatprep.subr.bf16.mxu0 0
        %2498 = vmatpush2.bf16.msra.mxu0 0
        %2499 = vmatprep.subr.bf16.mxu0 0
        %2500 = vmatpush2.bf16.msra.mxu0 0
        %2501 = vmatprep.mubr.bf16.mxu0 0
        %2502 = vmatmul.mubr.bf16.gmra.mxu0 %v936
        %v2503 = vpop.f32.mrf.mxu0
        %v2504 = vadd.f32 %v2451, %v2503
        %v2505 = vpop.f32.mrf.mxu0
        %v2506 = vadd.f32 %v2453, %v2505
        %v2507 = vpop.f32.mrf.mxu0
        %v2508 = vadd.f32 %v2455, %v2507
        %v2509 = vpop.f32.mrf.mxu0
        %v2510 = vadd.f32 %v2457, %v2509
        %2511 = vmatprep.mubr.bf16.mxu0 0
        %2512 = vmatmul.mubr.bf16.gmra.mxu0 %v943
        %v2513 = vpop.f32.mrf.mxu0
        %v2514 = vadd.f32 %v2461, %v2513
        %v2515 = vpop.f32.mrf.mxu0
        %v2516 = vadd.f32 %v2463, %v2515
        %v2517 = vpop.f32.mrf.mxu0
        %v2518 = vadd.f32 %v2465, %v2517
        %v2519 = vpop.f32.mrf.mxu0
        %v2520 = vadd.f32 %v2467, %v2519
        %2521 = vdwg.mxu0
        %2522 = vmatprep.subr.bf16.mxu0 %v1893
        %2523 = vmatpush1.bf16.msra.mxu0 %v1892
        %2524 = vmatprep.subr.bf16.mxu0 %v1889
        %2525 = vmatpush1.bf16.msra.mxu0 %v1888
        %2526 = vmatprep.subr.bf16.mxu0 %v1885
        %2527 = vmatpush1.bf16.msra.mxu0 %v1884
        %2528 = vmatprep.subr.bf16.mxu0 %v1881
        %2529 = vmatpush1.bf16.msra.mxu0 %v1880
        %2530 = vmatprep.subr.bf16.mxu0 %v1877
        %2531 = vmatpush1.bf16.msra.mxu0 %v1876
        %2532 = vmatprep.subr.bf16.mxu0 %v1873
        %2533 = vmatpush1.bf16.msra.mxu0 %v1872
        %2534 = vmatprep.subr.bf16.mxu0 %v1869
        %2535 = vmatpush1.bf16.msra.mxu0 %v1868
        %2536 = vmatprep.subr.bf16.mxu0 %v1865
        %2537 = vmatpush1.bf16.msra.mxu0 %v1864
        %2538 = vmatprep.subr.bf16.mxu0 %v1925
        %2539 = vmatpush2.bf16.msra.mxu0 %v1924
        %2540 = vmatprep.subr.bf16.mxu0 %v1921
        %2541 = vmatpush2.bf16.msra.mxu0 %v1920
        %2542 = vmatprep.subr.bf16.mxu0 %v1917
        %2543 = vmatpush2.bf16.msra.mxu0 %v1916
        %2544 = vmatprep.subr.bf16.mxu0 %v1913
        %2545 = vmatpush2.bf16.msra.mxu0 %v1912
        %2546 = vmatprep.subr.bf16.mxu0 %v1909
        %2547 = vmatpush2.bf16.msra.mxu0 %v1908
        %2548 = vmatprep.subr.bf16.mxu0 %v1905
        %2549 = vmatpush2.bf16.msra.mxu0 %v1904
        %2550 = vmatprep.subr.bf16.mxu0 %v1901
        %2551 = vmatpush2.bf16.msra.mxu0 %v1900
        %2552 = vmatprep.subr.bf16.mxu0 %v1897
        %2553 = vmatpush2.bf16.msra.mxu0 %v1896
        %2554 = vmatprep.mubr.bf16.mxu0 %v931
        %2555 = vmatmul.mubr.bf16.gmra.mxu0 %v930
        %v2556 = vpop.f32.mrf.mxu0
        %v2557 = vadd.f32 %v1181, %v2556
        %v2558 = vpop.f32.mrf.mxu0
        %v2559 = vadd.f32 %v1185, %v2558
        %v2560 = vpop.f32.mrf.mxu0
        %v2561 = vadd.f32 %v1181, %v2560
        %v2562 = vpop.f32.mrf.mxu0
        %v2563 = vadd.f32 %v1185, %v2562
        %2564 = vmatprep.mubr.bf16.mxu0 %v938
        %2565 = vmatmul.mubr.bf16.gmra.mxu0 %v937
        %v2566 = vpop.f32.mrf.mxu0
        %v2567 = vadd.f32 %v1181, %v2566
        %v2568 = vpop.f32.mrf.mxu0
        %v2569 = vadd.f32 %v1185, %v2568
        %v2570 = vpop.f32.mrf.mxu0
        %v2571 = vadd.f32 %v1181, %v2570
        %v2572 = vpop.f32.mrf.mxu0
        %v2573 = vadd.f32 %v1185, %v2572
        %2574 = vdwg.mxu0
        %2575 = vmatprep.subr.bf16.mxu0 %v1957
        %2576 = vmatpush1.bf16.msra.mxu0 %v1956
        %2577 = vmatprep.subr.bf16.mxu0 %v1953
        %2578 = vmatpush1.bf16.msra.mxu0 %v1952
        %2579 = vmatprep.subr.bf16.mxu0 %v1949
        %2580 = vmatpush1.bf16.msra.mxu0 %v1948
        %2581 = vmatprep.subr.bf16.mxu0 %v1945
        %2582 = vmatpush1.bf16.msra.mxu0 %v1944
        %2583 = vmatprep.subr.bf16.mxu0 %v1941
        %2584 = vmatpush1.bf16.msra.mxu0 %v1940
        %2585 = vmatprep.subr.bf16.mxu0 %v1937
        %2586 = vmatpush1.bf16.msra.mxu0 %v1936
        %2587 = vmatprep.subr.bf16.mxu0 %v1933
        %2588 = vmatpush1.bf16.msra.mxu0 %v1932
        %2589 = vmatprep.subr.bf16.mxu0 %v1929
        %2590 = vmatpush1.bf16.msra.mxu0 %v1928
        %2591 = vmatprep.subr.bf16.mxu0 %v1989
        %2592 = vmatpush2.bf16.msra.mxu0 %v1988
        %2593 = vmatprep.subr.bf16.mxu0 %v1985
        %2594 = vmatpush2.bf16.msra.mxu0 %v1984
        %2595 = vmatprep.subr.bf16.mxu0 %v1981
        %2596 = vmatpush2.bf16.msra.mxu0 %v1980
        %2597 = vmatprep.subr.bf16.mxu0 %v1977
        %2598 = vmatpush2.bf16.msra.mxu0 %v1976
        %2599 = vmatprep.subr.bf16.mxu0 %v1973
        %2600 = vmatpush2.bf16.msra.mxu0 %v1972
        %2601 = vmatprep.subr.bf16.mxu0 %v1969
        %2602 = vmatpush2.bf16.msra.mxu0 %v1968
        %2603 = vmatprep.subr.bf16.mxu0 %v1965
        %2604 = vmatpush2.bf16.msra.mxu0 %v1964
        %2605 = vmatprep.subr.bf16.mxu0 %v1961
        %2606 = vmatpush2.bf16.msra.mxu0 %v1960
        %2607 = vmatprep.mubr.bf16.mxu0 %v933
        %2608 = vmatmul.mubr.bf16.gmra.mxu0 %v932
        %v2609 = vpop.f32.mrf.mxu0
        %v2610 = vadd.f32 %v2557, %v2609
        %v2611 = vpop.f32.mrf.mxu0
        %v2612 = vadd.f32 %v2559, %v2611
        %v2613 = vpop.f32.mrf.mxu0
        %v2614 = vadd.f32 %v2561, %v2613
        %v2615 = vpop.f32.mrf.mxu0
        %v2616 = vadd.f32 %v2563, %v2615
        %2617 = vmatprep.mubr.bf16.mxu0 %v940
        %2618 = vmatmul.mubr.bf16.gmra.mxu0 %v939
        %v2619 = vpop.f32.mrf.mxu0
        %v2620 = vadd.f32 %v2567, %v2619
        %v2621 = vpop.f32.mrf.mxu0
        %v2622 = vadd.f32 %v2569, %v2621
        %v2623 = vpop.f32.mrf.mxu0
        %v2624 = vadd.f32 %v2571, %v2623
        %v2625 = vpop.f32.mrf.mxu0
        %v2626 = vadd.f32 %v2573, %v2625
        %2627 = vdwg.mxu0
        %2628 = vmatprep.subr.bf16.mxu0 %v2021
        %2629 = vmatpush1.bf16.msra.mxu0 %v2020
        %2630 = vmatprep.subr.bf16.mxu0 %v2017
        %2631 = vmatpush1.bf16.msra.mxu0 %v2016
        %2632 = vmatprep.subr.bf16.mxu0 %v2013
        %2633 = vmatpush1.bf16.msra.mxu0 %v2012
        %2634 = vmatprep.subr.bf16.mxu0 %v2009
        %2635 = vmatpush1.bf16.msra.mxu0 %v2008
        %2636 = vmatprep.subr.bf16.mxu0 %v2005
        %2637 = vmatpush1.bf16.msra.mxu0 %v2004
        %2638 = vmatprep.subr.bf16.mxu0 %v2001
        %2639 = vmatpush1.bf16.msra.mxu0 %v2000
        %2640 = vmatprep.subr.bf16.mxu0 %v1997
        %2641 = vmatpush1.bf16.msra.mxu0 %v1996
        %2642 = vmatprep.subr.bf16.mxu0 %v1993
        %2643 = vmatpush1.bf16.msra.mxu0 %v1992
        %2644 = vmatprep.subr.bf16.mxu0 %v2053
        %2645 = vmatpush2.bf16.msra.mxu0 %v2052
        %2646 = vmatprep.subr.bf16.mxu0 %v2049
        %2647 = vmatpush2.bf16.msra.mxu0 %v2048
        %2648 = vmatprep.subr.bf16.mxu0 %v2045
        %2649 = vmatpush2.bf16.msra.mxu0 %v2044
        %2650 = vmatprep.subr.bf16.mxu0 %v2041
        %2651 = vmatpush2.bf16.msra.mxu0 %v2040
        %2652 = vmatprep.subr.bf16.mxu0 %v2037
        %2653 = vmatpush2.bf16.msra.mxu0 %v2036
        %2654 = vmatprep.subr.bf16.mxu0 %v2033
        %2655 = vmatpush2.bf16.msra.mxu0 %v2032
        %2656 = vmatprep.subr.bf16.mxu0 %v2029
        %2657 = vmatpush2.bf16.msra.mxu0 %v2028
        %2658 = vmatprep.subr.bf16.mxu0 %v2025
        %2659 = vmatpush2.bf16.msra.mxu0 %v2024
        %2660 = vmatprep.mubr.bf16.mxu0 %v935
        %2661 = vmatmul.mubr.bf16.gmra.mxu0 %v934
        %v2662 = vpop.f32.mrf.mxu0
        %v2663 = vadd.f32 %v2610, %v2662
        %v2664 = vpop.f32.mrf.mxu0
        %v2665 = vadd.f32 %v2612, %v2664
        %v2666 = vpop.f32.mrf.mxu0
        %v2667 = vadd.f32 %v2614, %v2666
        %v2668 = vpop.f32.mrf.mxu0
        %v2669 = vadd.f32 %v2616, %v2668
        %2670 = vmatprep.mubr.bf16.mxu0 %v942
        %2671 = vmatmul.mubr.bf16.gmra.mxu0 %v941
        %v2672 = vpop.f32.mrf.mxu0
        %v2673 = vadd.f32 %v2620, %v2672
        %v2674 = vpop.f32.mrf.mxu0
        %v2675 = vadd.f32 %v2622, %v2674
        %v2676 = vpop.f32.mrf.mxu0
        %v2677 = vadd.f32 %v2624, %v2676
        %v2678 = vpop.f32.mrf.mxu0
        %v2679 = vadd.f32 %v2626, %v2678
        %2680 = vdwg.mxu0
        %2681 = vmatprep.subr.bf16.mxu0 %v2085
        %2682 = vmatpush1.bf16.msra.mxu0 %v2084
        %2683 = vmatprep.subr.bf16.mxu0 %v2081
        %2684 = vmatpush1.bf16.msra.mxu0 %v2080
        %2685 = vmatprep.subr.bf16.mxu0 %v2077
        %2686 = vmatpush1.bf16.msra.mxu0 %v2076
        %2687 = vmatprep.subr.bf16.mxu0 %v2073
        %2688 = vmatpush1.bf16.msra.mxu0 %v2072
        %2689 = vmatprep.subr.bf16.mxu0 %v2069
        %2690 = vmatpush1.bf16.msra.mxu0 %v2068
        %2691 = vmatprep.subr.bf16.mxu0 %v2065
        %2692 = vmatpush1.bf16.msra.mxu0 %v2064
        %2693 = vmatprep.subr.bf16.mxu0 %v2061
        %2694 = vmatpush1.bf16.msra.mxu0 %v2060
        %2695 = vmatprep.subr.bf16.mxu0 %v2057
        %2696 = vmatpush1.bf16.msra.mxu0 %v2056
        %2697 = vmatprep.subr.bf16.mxu0 0
        %2698 = vmatpush2.bf16.msra.mxu0 0
        %2699 = vmatprep.subr.bf16.mxu0 0
        %2700 = vmatpush2.bf16.msra.mxu0 0
        %2701 = vmatprep.subr.bf16.mxu0 0
        %2702 = vmatpush2.bf16.msra.mxu0 0
        %2703 = vmatprep.subr.bf16.mxu0 0
        %2704 = vmatpush2.bf16.msra.mxu0 0
        %2705 = vmatprep.subr.bf16.mxu0 0
        %2706 = vmatpush2.bf16.msra.mxu0 0
        %2707 = vmatprep.subr.bf16.mxu0 0
        %2708 = vmatpush2.bf16.msra.mxu0 0
        %2709 = vmatprep.subr.bf16.mxu0 0
        %2710 = vmatpush2.bf16.msra.mxu0 0
        %2711 = vmatprep.subr.bf16.mxu0 0
        %2712 = vmatpush2.bf16.msra.mxu0 0
        %2713 = vmatprep.mubr.bf16.mxu0 0
        %2714 = vmatmul.mubr.bf16.gmra.mxu0 %v936
        %v2715 = vpop.f32.mrf.mxu0
        %v2716 = vadd.f32 %v2663, %v2715
        %v2717 = vpop.f32.mrf.mxu0
        %v2718 = vadd.f32 %v2665, %v2717
        %v2719 = vpop.f32.mrf.mxu0
        %v2720 = vadd.f32 %v2667, %v2719
        %v2721 = vpop.f32.mrf.mxu0
        %v2722 = vadd.f32 %v2669, %v2721
        %2723 = vmatprep.mubr.bf16.mxu0 0
        %2724 = vmatmul.mubr.bf16.gmra.mxu0 %v943
        %v2725 = vpop.f32.mrf.mxu0
        %v2726 = vadd.f32 %v2673, %v2725
        %v2727 = vpop.f32.mrf.mxu0
        %v2728 = vadd.f32 %v2675, %v2727
        %v2729 = vpop.f32.mrf.mxu0
        %v2730 = vadd.f32 %v2677, %v2729
        %v2731 = vpop.f32.mrf.mxu0
        %v2732 = vadd.f32 %v2679, %v2731
        %2733 = vdwg.mxu0
        %v2734 = vmax.f32 %v2504, 0.0
        %v2735 = vmax.f32 %v2506, 0.0
        %v2736 = vmax.f32 %v2716, 0.0
        %v2737 = vmax.f32 %v2718, 0.0
        %v2738 = vmax.f32 %v2508, 0.0
        %v2739 = vmax.f32 %v2510, 0.0
        %v2740 = vmax.f32 %v2720, 0.0
        %v2741 = vmax.f32 %v2722, 0.0
        %v2742 = vmax.f32 %v2514, 0.0
        %v2743 = vmax.f32 %v2516, 0.0
        %v2744 = vmax.f32 %v2726, 0.0
        %v2745 = vmax.f32 %v2728, 0.0
        %v2746 = vmax.f32 %v2518, 0.0
        %v2747 = vmax.f32 %v2520, 0.0
        %v2748 = vmax.f32 %v2730, 0.0
        %v2749 = vmax.f32 %v2732, 0.0
        %v2750 = vpack.c.bf16 %v2738, %v2734
        %v2751 = vpack.c.bf16 %v2739, %v2735
        %v2752 = vpack.c.bf16 %v2740, %v2736
        %v2753 = vpack.c.bf16 %v2741, %v2737
        %v2754 = vpack.c.bf16 %v2746, %v2742
        %v2755 = vpack.c.bf16 %v2747, %v2743
        %v2756 = vpack.c.bf16 %v2748, %v2744
        %v2757 = vpack.c.bf16 %v2749, %v2745
        %v2758 = vld [vmem:[%s4] sm:$0xff]
        %v2759 = vld [vmem:[%s4 + $0x8] sm:$0xff]
        %v2760 = vld [vmem:[%s4 + $0x10] sm:$0xff]
        %v2761 = vld [vmem:[%s4 + $0x18] sm:$0xff]
        %v2762 = vld [vmem:[%s4 + $0x20] sm:$0xff]
        %v2763 = vld [vmem:[%s4 + $0x28] sm:$0xff]
        %v2764 = vld [vmem:[%s4 + $0x30] sm:$0xff]
        %v2765 = vld [vmem:[%s4 + $0x38] sm:$0xff]
        %v2766 = vld [vmem:[%s4 + $0x40] sm:$0xff]
        %v2767 = vld [vmem:[%s4 + $0x48] sm:$0xff]
        %v2768 = vld [vmem:[%s4 + $0x50] sm:$0xff]
        %v2769 = vld [vmem:[%s4 + $0x58] sm:$0xff]
        %v2770 = vld [vmem:[%s4 + $0x60] sm:$0xff]
        %v2771 = vld [vmem:[%s4 + $0x68] sm:$0xff]
        %v2772 = vld [vmem:[%s4 + $0x70] sm:$0xff]
        %v2773 = vld [vmem:[%s4 + $0x78] sm:$0xff]
        %v2774 = vld [vmem:[%s4 + $0x80] sm:$0xff]
        %v2775 = vld [vmem:[%s4 + $0x88] sm:$0xff]
        %v2776 = vld [vmem:[%s4 + $0x90] sm:$0xff]
        %v2777 = vld [vmem:[%s4 + $0x98] sm:$0xff]
        %v2778 = vld [vmem:[%s4 + $0xa0] sm:$0xff]
        %v2779 = vld [vmem:[%s4 + $0xa8] sm:$0xff]
        %v2780 = vld [vmem:[%s4 + $0xb0] sm:$0xff]
        %v2781 = vld [vmem:[%s4 + $0xb8] sm:$0xff]
        %v2782 = vld [vmem:[%s4 + $0xc0] sm:$0xff]
        %v2783 = vld [vmem:[%s4 + $0xc8] sm:$0xff]
        %v2784 = vld [vmem:[%s4 + $0xd0] sm:$0xff]
        %v2785 = vld [vmem:[%s4 + $0xd8] sm:$0xff]
        %v2786 = vld [vmem:[%s4 + $0xe0] sm:$0xff]
        %v2787 = vld [vmem:[%s4 + $0xe8] sm:$0xff]
        %v2788 = vld [vmem:[%s4 + $0xf0] sm:$0xff]
        %v2789 = vld [vmem:[%s4 + $0xf8] sm:$0xff]
        %v2790 = vld [vmem:[%s4 + $0x100] sm:$0xff]
        %v2791 = vld [vmem:[%s4 + $0x108] sm:$0xff]
        %v2792 = vld [vmem:[%s4 + $0x110] sm:$0xff]
        %v2793 = vld [vmem:[%s4 + $0x118] sm:$0xff]
        %v2794 = vld [vmem:[%s4 + $0x120] sm:$0xff]
        %v2795 = vld [vmem:[%s4 + $0x128] sm:$0xff]
        %v2796 = vld [vmem:[%s4 + $0x130] sm:$0xff]
        %v2797 = vld [vmem:[%s4 + $0x138] sm:$0xff]
        %v2798 = vld [vmem:[%s4 + $0x140] sm:$0xff]
        %v2799 = vld [vmem:[%s4 + $0x148] sm:$0xff]
        %v2800 = vld [vmem:[%s4 + $0x150] sm:$0xff]
        %v2801 = vld [vmem:[%s4 + $0x158] sm:$0xff]
        %v2802 = vld [vmem:[%s4 + $0x160] sm:$0xff]
        %v2803 = vld [vmem:[%s4 + $0x168] sm:$0xff]
        %v2804 = vld [vmem:[%s4 + $0x170] sm:$0xff]
        %v2805 = vld [vmem:[%s4 + $0x178] sm:$0xff]
        %v2806 = vld [vmem:[%s4 + $0x180] sm:$0xff]
        %v2807 = vld [vmem:[%s4 + $0x188] sm:$0xff]
        %v2808 = vld [vmem:[%s4 + $0x190] sm:$0xff]
        %v2809 = vld [vmem:[%s4 + $0x198] sm:$0xff]
        %v2810 = vld [vmem:[%s4 + $0x1a0] sm:$0xff]
        %v2811 = vld [vmem:[%s4 + $0x1a8] sm:$0xff]
        %v2812 = vld [vmem:[%s4 + $0x1b0] sm:$0xff]
        %v2813 = vld [vmem:[%s4 + $0x1b8] sm:$0xff]
        %v2814 = vld [vmem:[%s4 + $0x1c0] sm:$0xff]
        %v2815 = vld [vmem:[%s4 + $0x1c8] sm:$0xff]
        %v2816 = vld [vmem:[%s4 + $0x1d0] sm:$0xff]
        %v2817 = vld [vmem:[%s4 + $0x1d8] sm:$0xff]
        %v2818 = vld [vmem:[%s4 + $0x1e0] sm:$0xff]
        %v2819 = vld [vmem:[%s4 + $0x1e8] sm:$0xff]
        %v2820 = vld [vmem:[%s4 + $0x1f0] sm:$0xff]
        %v2821 = vld [vmem:[%s4 + $0x1f8] sm:$0xff]
        %v2822 = vld [vmem:[%s5] sm:$0x3]
        %v2824 = vlaneseq
        %v2825 = vshrl.u32 %v2824, 7
        %v2826 = vsub.s32 0, %v2825
        %v2827 = vrot.slane %v2822, %v2826
        %v2828 = vlaneseq
        %v2829 = vshrl.u32 %v2828, 7
        %v2830 = vsub.s32 1, %v2829
        %v2831 = vrot.slane %v2822, %v2830
        %v2898 = vunpack.c.l.b16 %v2758
        %v2899 = vunpack.c.h.b16 %v2758
        %v2900 = vunpack.c.l.b16 %v2759
        %v2901 = vunpack.c.h.b16 %v2759
        %v2902 = vunpack.c.l.b16 %v2760
        %v2903 = vunpack.c.h.b16 %v2760
        %v2904 = vunpack.c.l.b16 %v2761
        %v2905 = vunpack.c.h.b16 %v2761
        %v2906 = vunpack.c.l.b16 %v2762
        %v2907 = vunpack.c.h.b16 %v2762
        %v2908 = vunpack.c.l.b16 %v2763
        %v2909 = vunpack.c.h.b16 %v2763
        %v2910 = vunpack.c.l.b16 %v2764
        %v2911 = vunpack.c.h.b16 %v2764
        %v2912 = vunpack.c.l.b16 %v2765
        %v2913 = vunpack.c.h.b16 %v2765
        %v2914 = vunpack.c.l.b16 %v2766
        %v2915 = vunpack.c.h.b16 %v2766
        %v2916 = vunpack.c.l.b16 %v2767
        %v2917 = vunpack.c.h.b16 %v2767
        %v2918 = vunpack.c.l.b16 %v2768
        %v2919 = vunpack.c.h.b16 %v2768
        %v2920 = vunpack.c.l.b16 %v2769
        %v2921 = vunpack.c.h.b16 %v2769
        %v2922 = vunpack.c.l.b16 %v2770
        %v2923 = vunpack.c.h.b16 %v2770
        %v2924 = vunpack.c.l.b16 %v2771
        %v2925 = vunpack.c.h.b16 %v2771
        %v2926 = vunpack.c.l.b16 %v2772
        %v2927 = vunpack.c.h.b16 %v2772
        %v2928 = vunpack.c.l.b16 %v2773
        %v2929 = vunpack.c.h.b16 %v2773
        %v2930 = vunpack.c.l.b16 %v2774
        %v2931 = vunpack.c.h.b16 %v2774
        %v2932 = vunpack.c.l.b16 %v2775
        %v2933 = vunpack.c.h.b16 %v2775
        %v2934 = vunpack.c.l.b16 %v2776
        %v2935 = vunpack.c.h.b16 %v2776
        %v2936 = vunpack.c.l.b16 %v2777
        %v2937 = vunpack.c.h.b16 %v2777
        %v2938 = vunpack.c.l.b16 %v2778
        %v2939 = vunpack.c.h.b16 %v2778
        %v2940 = vunpack.c.l.b16 %v2779
        %v2941 = vunpack.c.h.b16 %v2779
        %v2942 = vunpack.c.l.b16 %v2780
        %v2943 = vunpack.c.h.b16 %v2780
        %v2944 = vunpack.c.l.b16 %v2781
        %v2945 = vunpack.c.h.b16 %v2781
        %v2946 = vunpack.c.l.b16 %v2782
        %v2947 = vunpack.c.h.b16 %v2782
        %v2948 = vunpack.c.l.b16 %v2783
        %v2949 = vunpack.c.h.b16 %v2783
        %v2950 = vunpack.c.l.b16 %v2784
        %v2951 = vunpack.c.h.b16 %v2784
        %v2952 = vunpack.c.l.b16 %v2785
        %v2953 = vunpack.c.h.b16 %v2785
        %v2954 = vunpack.c.l.b16 %v2786
        %v2955 = vunpack.c.h.b16 %v2786
        %v2956 = vunpack.c.l.b16 %v2787
        %v2957 = vunpack.c.h.b16 %v2787
        %v2958 = vunpack.c.l.b16 %v2788
        %v2959 = vunpack.c.h.b16 %v2788
        %v2960 = vunpack.c.l.b16 %v2789
        %v2961 = vunpack.c.h.b16 %v2789
        %v2962 = vunpack.c.l.b16 %v2790
        %v2963 = vunpack.c.h.b16 %v2790
        %v2964 = vunpack.c.l.b16 %v2791
        %v2965 = vunpack.c.h.b16 %v2791
        %v2966 = vunpack.c.l.b16 %v2792
        %v2967 = vunpack.c.h.b16 %v2792
        %v2968 = vunpack.c.l.b16 %v2793
        %v2969 = vunpack.c.h.b16 %v2793
        %v2970 = vunpack.c.l.b16 %v2794
        %v2971 = vunpack.c.h.b16 %v2794
        %v2972 = vunpack.c.l.b16 %v2795
        %v2973 = vunpack.c.h.b16 %v2795
        %v2974 = vunpack.c.l.b16 %v2796
        %v2975 = vunpack.c.h.b16 %v2796
        %v2976 = vunpack.c.l.b16 %v2797
        %v2977 = vunpack.c.h.b16 %v2797
        %v2978 = vunpack.c.l.b16 %v2798
        %v2979 = vunpack.c.h.b16 %v2798
        %v2980 = vunpack.c.l.b16 %v2799
        %v2981 = vunpack.c.h.b16 %v2799
        %v2982 = vunpack.c.l.b16 %v2800
        %v2983 = vunpack.c.h.b16 %v2800
        %v2984 = vunpack.c.l.b16 %v2801
        %v2985 = vunpack.c.h.b16 %v2801
        %v2986 = vunpack.c.l.b16 %v2802
        %v2987 = vunpack.c.h.b16 %v2802
        %v2988 = vunpack.c.l.b16 %v2803
        %v2989 = vunpack.c.h.b16 %v2803
        %v2990 = vunpack.c.l.b16 %v2804
        %v2991 = vunpack.c.h.b16 %v2804
        %v2992 = vunpack.c.l.b16 %v2805
        %v2993 = vunpack.c.h.b16 %v2805
        %v2994 = vunpack.c.l.b16 %v2806
        %v2995 = vunpack.c.h.b16 %v2806
        %v2996 = vunpack.c.l.b16 %v2807
        %v2997 = vunpack.c.h.b16 %v2807
        %v2998 = vunpack.c.l.b16 %v2808
        %v2999 = vunpack.c.h.b16 %v2808
        %v3000 = vunpack.c.l.b16 %v2809
        %v3001 = vunpack.c.h.b16 %v2809
        %v3002 = vunpack.c.l.b16 %v2810
        %v3003 = vunpack.c.h.b16 %v2810
        %v3004 = vunpack.c.l.b16 %v2811
        %v3005 = vunpack.c.h.b16 %v2811
        %v3006 = vunpack.c.l.b16 %v2812
        %v3007 = vunpack.c.h.b16 %v2812
        %v3008 = vunpack.c.l.b16 %v2813
        %v3009 = vunpack.c.h.b16 %v2813
        %v3010 = vunpack.c.l.b16 %v2814
        %v3011 = vunpack.c.h.b16 %v2814
        %v3012 = vunpack.c.l.b16 %v2815
        %v3013 = vunpack.c.h.b16 %v2815
        %v3014 = vunpack.c.l.b16 %v2816
        %v3015 = vunpack.c.h.b16 %v2816
        %v3016 = vunpack.c.l.b16 %v2817
        %v3017 = vunpack.c.h.b16 %v2817
        %v3018 = vunpack.c.l.b16 %v2818
        %v3019 = vunpack.c.h.b16 %v2818
        %v3020 = vunpack.c.l.b16 %v2819
        %v3021 = vunpack.c.h.b16 %v2819
        %v3022 = vunpack.c.l.b16 %v2820
        %v3023 = vunpack.c.h.b16 %v2820
        %v3024 = vunpack.c.l.b16 %v2821
        %v3025 = vunpack.c.h.b16 %v2821
        %v3026 = vpack.c.b16 %v2900, %v2898
        %v3027 = vpack.c.b16 %v2901, %v2899
        %v3028 = vpack.c.b16 %v2904, %v2902
        %v3029 = vpack.c.b16 %v2905, %v2903
        %v3030 = vpack.c.b16 %v2908, %v2906
        %v3031 = vpack.c.b16 %v2909, %v2907
        %v3032 = vpack.c.b16 %v2912, %v2910
        %v3033 = vpack.c.b16 %v2913, %v2911
        %v3034 = vpack.c.b16 %v2916, %v2914
        %v3035 = vpack.c.b16 %v2917, %v2915
        %v3036 = vpack.c.b16 %v2920, %v2918
        %v3037 = vpack.c.b16 %v2921, %v2919
        %v3038 = vpack.c.b16 %v2924, %v2922
        %v3039 = vpack.c.b16 %v2925, %v2923
        %v3040 = vpack.c.b16 %v2928, %v2926
        %v3041 = vpack.c.b16 %v2929, %v2927
        %v3042 = vpack.c.b16 %v2932, %v2930
        %v3043 = vpack.c.b16 %v2933, %v2931
        %v3044 = vpack.c.b16 %v2936, %v2934
        %v3045 = vpack.c.b16 %v2937, %v2935
        %v3046 = vpack.c.b16 %v2940, %v2938
        %v3047 = vpack.c.b16 %v2941, %v2939
        %v3048 = vpack.c.b16 %v2944, %v2942
        %v3049 = vpack.c.b16 %v2945, %v2943
        %v3050 = vpack.c.b16 %v2948, %v2946
        %v3051 = vpack.c.b16 %v2949, %v2947
        %v3052 = vpack.c.b16 %v2952, %v2950
        %v3053 = vpack.c.b16 %v2953, %v2951
        %v3054 = vpack.c.b16 %v2956, %v2954
        %v3055 = vpack.c.b16 %v2957, %v2955
        %v3056 = vpack.c.b16 %v2960, %v2958
        %v3057 = vpack.c.b16 %v2961, %v2959
        %v3058 = vpack.c.b16 %v2964, %v2962
        %v3059 = vpack.c.b16 %v2965, %v2963
        %v3060 = vpack.c.b16 %v2968, %v2966
        %v3061 = vpack.c.b16 %v2969, %v2967
        %v3062 = vpack.c.b16 %v2972, %v2970
        %v3063 = vpack.c.b16 %v2973, %v2971
        %v3064 = vpack.c.b16 %v2976, %v2974
        %v3065 = vpack.c.b16 %v2977, %v2975
        %v3066 = vpack.c.b16 %v2980, %v2978
        %v3067 = vpack.c.b16 %v2981, %v2979
        %v3068 = vpack.c.b16 %v2984, %v2982
        %v3069 = vpack.c.b16 %v2985, %v2983
        %v3070 = vpack.c.b16 %v2988, %v2986
        %v3071 = vpack.c.b16 %v2989, %v2987
        %v3072 = vpack.c.b16 %v2992, %v2990
        %v3073 = vpack.c.b16 %v2993, %v2991
        %v3074 = vpack.c.b16 %v2996, %v2994
        %v3075 = vpack.c.b16 %v2997, %v2995
        %v3076 = vpack.c.b16 %v3000, %v2998
        %v3077 = vpack.c.b16 %v3001, %v2999
        %v3078 = vpack.c.b16 %v3004, %v3002
        %v3079 = vpack.c.b16 %v3005, %v3003
        %v3080 = vpack.c.b16 %v3008, %v3006
        %v3081 = vpack.c.b16 %v3009, %v3007
        %v3082 = vpack.c.b16 %v3012, %v3010
        %v3083 = vpack.c.b16 %v3013, %v3011
        %v3084 = vpack.c.b16 %v3016, %v3014
        %v3085 = vpack.c.b16 %v3017, %v3015
        %v3086 = vpack.c.b16 %v3020, %v3018
        %v3087 = vpack.c.b16 %v3021, %v3019
        %v3088 = vpack.c.b16 %v3024, %v3022
        %v3089 = vpack.c.b16 %v3025, %v3023
        %3154 = vmatprep.subr.bf16.mxu0 %v3041
        %3155 = vmatpush1.bf16.msra.mxu0 %v3040
        %3156 = vmatprep.subr.bf16.mxu0 %v3039
        %3157 = vmatpush1.bf16.msra.mxu0 %v3038
        %3158 = vmatprep.subr.bf16.mxu0 %v3037
        %3159 = vmatpush1.bf16.msra.mxu0 %v3036
        %3160 = vmatprep.subr.bf16.mxu0 %v3035
        %3161 = vmatpush1.bf16.msra.mxu0 %v3034
        %3162 = vmatprep.subr.bf16.mxu0 %v3033
        %3163 = vmatpush1.bf16.msra.mxu0 %v3032
        %3164 = vmatprep.subr.bf16.mxu0 %v3031
        %3165 = vmatpush1.bf16.msra.mxu0 %v3030
        %3166 = vmatprep.subr.bf16.mxu0 %v3029
        %3167 = vmatpush1.bf16.msra.mxu0 %v3028
        %3168 = vmatprep.subr.bf16.mxu0 %v3027
        %3169 = vmatpush1.bf16.msra.mxu0 %v3026
        %3170 = vmatprep.subr.bf16.mxu0 %v3057
        %3171 = vmatpush2.bf16.msra.mxu0 %v3056
        %3172 = vmatprep.subr.bf16.mxu0 %v3055
        %3173 = vmatpush2.bf16.msra.mxu0 %v3054
        %3174 = vmatprep.subr.bf16.mxu0 %v3053
        %3175 = vmatpush2.bf16.msra.mxu0 %v3052
        %3176 = vmatprep.subr.bf16.mxu0 %v3051
        %3177 = vmatpush2.bf16.msra.mxu0 %v3050
        %3178 = vmatprep.subr.bf16.mxu0 %v3049
        %3179 = vmatpush2.bf16.msra.mxu0 %v3048
        %3180 = vmatprep.subr.bf16.mxu0 %v3047
        %3181 = vmatpush2.bf16.msra.mxu0 %v3046
        %3182 = vmatprep.subr.bf16.mxu0 %v3045
        %3183 = vmatpush2.bf16.msra.mxu0 %v3044
        %3184 = vmatprep.subr.bf16.mxu0 %v3043
        %3185 = vmatpush2.bf16.msra.mxu0 %v3042
        %3186 = vmatprep.mubr.bf16.mxu0 %v2751
        %3187 = vmatmul.mubr.bf16.gmra.mxu0 %v2750
        %v3188 = vpop.f32.mrf.mxu0
        %v3189 = vadd.f32 %v2827, %v3188
        %v3190 = vpop.f32.mrf.mxu0
        %v3191 = vadd.f32 %v2831, %v3190
        %v3192 = vpop.f32.mrf.mxu0
        %v3193 = vadd.f32 %v2827, %v3192
        %v3194 = vpop.f32.mrf.mxu0
        %v3195 = vadd.f32 %v2831, %v3194
        %3196 = vmatprep.mubr.bf16.mxu0 %v2755
        %3197 = vmatmul.mubr.bf16.gmra.mxu0 %v2754
        %v3198 = vpop.f32.mrf.mxu0
        %v3199 = vadd.f32 %v2827, %v3198
        %v3200 = vpop.f32.mrf.mxu0
        %v3201 = vadd.f32 %v2831, %v3200
        %v3202 = vpop.f32.mrf.mxu0
        %v3203 = vadd.f32 %v2827, %v3202
        %v3204 = vpop.f32.mrf.mxu0
        %v3205 = vadd.f32 %v2831, %v3204
        %3206 = vdwg.mxu0
        %3207 = vmatprep.subr.bf16.mxu0 %v3073
        %3208 = vmatpush1.bf16.msra.mxu0 %v3072
        %3209 = vmatprep.subr.bf16.mxu0 %v3071
        %3210 = vmatpush1.bf16.msra.mxu0 %v3070
        %3211 = vmatprep.subr.bf16.mxu0 %v3069
        %3212 = vmatpush1.bf16.msra.mxu0 %v3068
        %3213 = vmatprep.subr.bf16.mxu0 %v3067
        %3214 = vmatpush1.bf16.msra.mxu0 %v3066
        %3215 = vmatprep.subr.bf16.mxu0 %v3065
        %3216 = vmatpush1.bf16.msra.mxu0 %v3064
        %3217 = vmatprep.subr.bf16.mxu0 %v3063
        %3218 = vmatpush1.bf16.msra.mxu0 %v3062
        %3219 = vmatprep.subr.bf16.mxu0 %v3061
        %3220 = vmatpush1.bf16.msra.mxu0 %v3060
        %3221 = vmatprep.subr.bf16.mxu0 %v3059
        %3222 = vmatpush1.bf16.msra.mxu0 %v3058
        %3223 = vmatprep.subr.bf16.mxu0 %v3089
        %3224 = vmatpush2.bf16.msra.mxu0 %v3088
        %3225 = vmatprep.subr.bf16.mxu0 %v3087
        %3226 = vmatpush2.bf16.msra.mxu0 %v3086
        %3227 = vmatprep.subr.bf16.mxu0 %v3085
        %3228 = vmatpush2.bf16.msra.mxu0 %v3084
        %3229 = vmatprep.subr.bf16.mxu0 %v3083
        %3230 = vmatpush2.bf16.msra.mxu0 %v3082
        %3231 = vmatprep.subr.bf16.mxu0 %v3081
        %3232 = vmatpush2.bf16.msra.mxu0 %v3080
        %3233 = vmatprep.subr.bf16.mxu0 %v3079
        %3234 = vmatpush2.bf16.msra.mxu0 %v3078
        %3235 = vmatprep.subr.bf16.mxu0 %v3077
        %3236 = vmatpush2.bf16.msra.mxu0 %v3076
        %3237 = vmatprep.subr.bf16.mxu0 %v3075
        %3238 = vmatpush2.bf16.msra.mxu0 %v3074
        %3239 = vmatprep.mubr.bf16.mxu0 %v2753
        %3240 = vmatmul.mubr.bf16.gmra.mxu0 %v2752
        %v3241 = vpop.f32.mrf.mxu0
        %v3242 = vadd.f32 %v3189, %v3241
        %v3243 = vpop.f32.mrf.mxu0
        %v3244 = vadd.f32 %v3191, %v3243
        %v3245 = vpop.f32.mrf.mxu0
        %v3246 = vadd.f32 %v3193, %v3245
        %v3247 = vpop.f32.mrf.mxu0
        %v3248 = vadd.f32 %v3195, %v3247
        %3249 = vmatprep.mubr.bf16.mxu0 %v2757
        %3250 = vmatmul.mubr.bf16.gmra.mxu0 %v2756
        %v3251 = vpop.f32.mrf.mxu0
        %v3252 = vadd.f32 %v3199, %v3251
        %v3253 = vpop.f32.mrf.mxu0
        %v3254 = vadd.f32 %v3201, %v3253
        %v3255 = vpop.f32.mrf.mxu0
        %v3256 = vadd.f32 %v3203, %v3255
        %v3257 = vpop.f32.mrf.mxu0
        %v3258 = vadd.f32 %v3205, %v3257
        %3259 = vdwg.mxu0
        %v3260 = vmax.f32 %v3242, 0.0
        %v3261 = vmax.f32 %v3244, 0.0
        %v3262 = vmax.f32 %v3246, 0.0
        %v3263 = vmax.f32 %v3248, 0.0
        %v3264 = vmax.f32 %v3252, 0.0
        %v3265 = vmax.f32 %v3254, 0.0
        %v3266 = vmax.f32 %v3256, 0.0
        %v3267 = vmax.f32 %v3258, 0.0
        %v3268 = vpack.c.bf16 %v3262, %v3260
        %v3269 = vpack.c.bf16 %v3263, %v3261
        %v3270 = vpack.c.bf16 %v3266, %v3264
        %v3271 = vpack.c.bf16 %v3267, %v3265
        %v3272 = vld [vmem:[#allocation6] sm:$0xf]
        %v3273 = vld [vmem:[#allocation6 + $0x4] sm:$0xf]
        %v3274 = vld [vmem:[#allocation6 + $0x8] sm:$0xf]
        %v3275 = vld [vmem:[#allocation6 + $0xc] sm:$0xf]
        %v3276 = vld [vmem:[#allocation6 + $0x10] sm:$0xf]
        %v3277 = vld [vmem:[#allocation6 + $0x14] sm:$0xf]
        %v3278 = vld [vmem:[#allocation6 + $0x18] sm:$0xf]
        %v3279 = vld [vmem:[#allocation6 + $0x1c] sm:$0xf]
        %v3280 = vld [vmem:[#allocation6 + $0x20] sm:$0xf]
        %v3281 = vld [vmem:[#allocation6 + $0x24] sm:$0xf]
        %v3282 = vld [vmem:[#allocation6 + $0x28] sm:$0xf]
        %v3283 = vld [vmem:[#allocation6 + $0x2c] sm:$0xf]
        %v3284 = vld [vmem:[#allocation6 + $0x30] sm:$0xf]
        %v3285 = vld [vmem:[#allocation6 + $0x34] sm:$0xf]
        %v3286 = vld [vmem:[#allocation6 + $0x38] sm:$0xf]
        %v3287 = vld [vmem:[#allocation6 + $0x3c] sm:$0xf]
        %v3288 = vld [vmem:[#allocation6 + $0x40] sm:$0xf]
        %v3289 = vld [vmem:[#allocation6 + $0x44] sm:$0xf]
        %v3290 = vld [vmem:[#allocation6 + $0x48] sm:$0xf]
        %v3291 = vld [vmem:[#allocation6 + $0x4c] sm:$0xf]
        %v3292 = vld [vmem:[#allocation6 + $0x50] sm:$0xf]
        %v3293 = vld [vmem:[#allocation6 + $0x54] sm:$0xf]
        %v3294 = vld [vmem:[#allocation6 + $0x58] sm:$0xf]
        %v3295 = vld [vmem:[#allocation6 + $0x5c] sm:$0xf]
        %v3296 = vld [vmem:[#allocation6 + $0x60] sm:$0xf]
        %v3297 = vld [vmem:[#allocation6 + $0x64] sm:$0xf]
        %v3298 = vld [vmem:[#allocation6 + $0x68] sm:$0xf]
        %v3299 = vld [vmem:[#allocation6 + $0x6c] sm:$0xf]
        %v3300 = vld [vmem:[#allocation6 + $0x70] sm:$0xf]
        %v3301 = vld [vmem:[#allocation6 + $0x74] sm:$0xf]
        %v3302 = vld [vmem:[#allocation6 + $0x78] sm:$0xf]
        %v3303 = vld [vmem:[#allocation6 + $0x7c] sm:$0xf]
        %v3304 = vld [vmem:[%s7] sm:$0x1]
        %v3306 = vlaneseq
        %v3307 = vshrl.u32 %v3306, 7
        %v3308 = vsub.s32 0, %v3307
        %v3309 = vrot.slane %v3304, %v3308
        %v3343 = vunpack.c.l.b16 %v3272
        %v3344 = vunpack.c.l.b16 %v3273
        %v3345 = vunpack.c.l.b16 %v3274
        %v3346 = vunpack.c.l.b16 %v3275
        %v3347 = vunpack.c.l.b16 %v3276
        %v3348 = vunpack.c.l.b16 %v3277
        %v3349 = vunpack.c.l.b16 %v3278
        %v3350 = vunpack.c.l.b16 %v3279
        %v3351 = vunpack.c.l.b16 %v3280
        %v3352 = vunpack.c.l.b16 %v3281
        %v3353 = vunpack.c.l.b16 %v3282
        %v3354 = vunpack.c.l.b16 %v3283
        %v3355 = vunpack.c.l.b16 %v3284
        %v3356 = vunpack.c.l.b16 %v3285
        %v3357 = vunpack.c.l.b16 %v3286
        %v3358 = vunpack.c.l.b16 %v3287
        %v3359 = vunpack.c.l.b16 %v3288
        %v3360 = vunpack.c.l.b16 %v3289
        %v3361 = vunpack.c.l.b16 %v3290
        %v3362 = vunpack.c.l.b16 %v3291
        %v3363 = vunpack.c.l.b16 %v3292
        %v3364 = vunpack.c.l.b16 %v3293
        %v3365 = vunpack.c.l.b16 %v3294
        %v3366 = vunpack.c.l.b16 %v3295
        %v3367 = vunpack.c.l.b16 %v3296
        %v3368 = vunpack.c.l.b16 %v3297
        %v3369 = vunpack.c.l.b16 %v3298
        %v3370 = vunpack.c.l.b16 %v3299
        %v3371 = vunpack.c.l.b16 %v3300
        %v3372 = vunpack.c.l.b16 %v3301
        %v3373 = vunpack.c.l.b16 %v3302
        %v3374 = vunpack.c.l.b16 %v3303
        %v3375 = vpack.c.b16 %v3344, %v3343
        %v3376 = vpack.c.b16 %v3346, %v3345
        %v3377 = vpack.c.b16 %v3348, %v3347
        %v3378 = vpack.c.b16 %v3350, %v3349
        %v3379 = vpack.c.b16 %v3352, %v3351
        %v3380 = vpack.c.b16 %v3354, %v3353
        %v3381 = vpack.c.b16 %v3356, %v3355
        %v3382 = vpack.c.b16 %v3358, %v3357
        %v3383 = vpack.c.b16 %v3360, %v3359
        %v3384 = vpack.c.b16 %v3362, %v3361
        %v3385 = vpack.c.b16 %v3364, %v3363
        %v3386 = vpack.c.b16 %v3366, %v3365
        %v3387 = vpack.c.b16 %v3368, %v3367
        %v3388 = vpack.c.b16 %v3370, %v3369
        %v3389 = vpack.c.b16 %v3372, %v3371
        %v3390 = vpack.c.b16 %v3374, %v3373
        %3407 = vmatprep.subr.bf16.mxu0 0
        %3408 = vmatpush1.bf16.msra.mxu0 %v3382
        %3409 = vmatprep.subr.bf16.mxu0 0
        %3410 = vmatpush1.bf16.msra.mxu0 %v3381
        %3411 = vmatprep.subr.bf16.mxu0 0
        %3412 = vmatpush1.bf16.msra.mxu0 %v3380
        %3413 = vmatprep.subr.bf16.mxu0 0
        %3414 = vmatpush1.bf16.msra.mxu0 %v3379
        %3415 = vmatprep.subr.bf16.mxu0 0
        %3416 = vmatpush1.bf16.msra.mxu0 %v3378
        %3417 = vmatprep.subr.bf16.mxu0 0
        %3418 = vmatpush1.bf16.msra.mxu0 %v3377
        %3419 = vmatprep.subr.bf16.mxu0 0
        %3420 = vmatpush1.bf16.msra.mxu0 %v3376
        %3421 = vmatprep.subr.bf16.mxu0 0
        %3422 = vmatpush1.bf16.msra.mxu0 %v3375
        %3423 = vmatprep.subr.bf16.mxu0 0
        %3424 = vmatpush2.bf16.msra.mxu0 %v3390
        %3425 = vmatprep.subr.bf16.mxu0 0
        %3426 = vmatpush2.bf16.msra.mxu0 %v3389
        %3427 = vmatprep.subr.bf16.mxu0 0
        %3428 = vmatpush2.bf16.msra.mxu0 %v3388
        %3429 = vmatprep.subr.bf16.mxu0 0
        %3430 = vmatpush2.bf16.msra.mxu0 %v3387
        %3431 = vmatprep.subr.bf16.mxu0 0
        %3432 = vmatpush2.bf16.msra.mxu0 %v3386
        %3433 = vmatprep.subr.bf16.mxu0 0
        %3434 = vmatpush2.bf16.msra.mxu0 %v3385
        %3435 = vmatprep.subr.bf16.mxu0 0
        %3436 = vmatpush2.bf16.msra.mxu0 %v3384
        %3437 = vmatprep.subr.bf16.mxu0 0
        %3438 = vmatpush2.bf16.msra.mxu0 %v3383
        %3439 = vmatprep.mubr.bf16.mxu0 %v3269
        %3440 = vmatmul.mubr.bf16.gmra.mxu0 %v3268
        %v3441 = vpop.f32.mrf.mxu0
        %v3442 = vadd.f32 %v3309, %v3441
        %v3443 = vpop.f32.mrf.mxu0
        %v3444 = vpop.f32.mrf.mxu0
        %v3445 = vadd.f32 %v3309, %v3444
        %v3446 = vpop.f32.mrf.mxu0
        %3447 = vmatprep.mubr.bf16.mxu0 %v3271
        %3448 = vmatmul.mubr.bf16.gmra.mxu0 %v3270
        %v3449 = vpop.f32.mrf.mxu0
        %v3450 = vadd.f32 %v3309, %v3449
        %v3451 = vpop.f32.mrf.mxu0
        %v3452 = vpop.f32.mrf.mxu0
        %v3453 = vadd.f32 %v3309, %v3452
        %v3454 = vpop.f32.mrf.mxu0
        %3455 = vdwg.mxu0
        %v3456 = vmax.f32 %v3442, 0.0
        %v3457 = vmax.f32 %v3445, 0.0
        %v3458 = vmax.f32 %v3450, 0.0
        %v3459 = vmax.f32 %v3453, 0.0
        %v3460 = vpack.c.bf16 %v3457, %v3456
        %v3461 = vpack.c.bf16 %v3459, %v3458
        %v3462 = vld [vmem:[%s8] sm:$0xf]
        %v3463 = vld [vmem:[%s8 + $0x4] sm:$0xf]
        %v3464 = vld [vmem:[%s8 + $0x8] sm:$0xf]
        %v3465 = vld [vmem:[%s8 + $0xc] sm:$0xf]
        %v3466 = vld [vmem:[%s8 + $0x10] sm:$0xf]
        %v3467 = vld [vmem:[%s8 + $0x14] sm:$0xf]
        %v3468 = vld [vmem:[%s8 + $0x18] sm:$0xf]
        %v3469 = vld [vmem:[%s8 + $0x1c] sm:$0xf]
        %v3470 = vld [vmem:[%s8 + $0x20] sm:$0xf]
        %v3471 = vld [vmem:[%s8 + $0x24] sm:$0xf]
        %v3472 = vld [vmem:[%s8 + $0x28] sm:$0xf]
        %v3473 = vld [vmem:[%s8 + $0x2c] sm:$0xf]
        %v3474 = vld [vmem:[%s8 + $0x30] sm:$0xf]
        %v3475 = vld [vmem:[%s8 + $0x34] sm:$0xf]
        %v3476 = vld [vmem:[%s8 + $0x38] sm:$0xf]
        %v3477 = vld [vmem:[%s8 + $0x3c] sm:$0xf]
        %v3478 = vld [vmem:[%s9] sm:$0x1]
        %v3480 = vlaneseq
        %v3481 = vshrl.u32 %v3480, 7
        %v3482 = vsub.s32 0, %v3481
        %v3483 = vrot.slane %v3478, %v3482
        %v3501 = vunpack.c.l.b16 %v3462
        %v3502 = vunpack.c.l.b16 %v3463
        %v3503 = vunpack.c.l.b16 %v3464
        %v3504 = vunpack.c.l.b16 %v3465
        %v3505 = vunpack.c.l.b16 %v3466
        %v3506 = vunpack.c.l.b16 %v3467
        %v3507 = vunpack.c.l.b16 %v3468
        %v3508 = vunpack.c.l.b16 %v3469
        %v3509 = vunpack.c.l.b16 %v3470
        %v3510 = vunpack.c.l.b16 %v3471
        %v3511 = vunpack.c.l.b16 %v3472
        %v3512 = vunpack.c.l.b16 %v3473
        %v3513 = vunpack.c.l.b16 %v3474
        %v3514 = vunpack.c.l.b16 %v3475
        %v3515 = vunpack.c.l.b16 %v3476
        %v3516 = vunpack.c.l.b16 %v3477
        %v3517 = vpack.c.b16 %v3502, %v3501
        %v3518 = vpack.c.b16 %v3504, %v3503
        %v3519 = vpack.c.b16 %v3506, %v3505
        %v3520 = vpack.c.b16 %v3508, %v3507
        %v3521 = vpack.c.b16 %v3510, %v3509
        %v3522 = vpack.c.b16 %v3512, %v3511
        %v3523 = vpack.c.b16 %v3514, %v3513
        %v3524 = vpack.c.b16 %v3516, %v3515
        %3533 = vmatprep.subr.bf16.mxu0 0
        %3534 = vmatpush1.bf16.msra.mxu0 %v3524
        %3535 = vmatprep.subr.bf16.mxu0 0
        %3536 = vmatpush1.bf16.msra.mxu0 %v3523
        %3537 = vmatprep.subr.bf16.mxu0 0
        %3538 = vmatpush1.bf16.msra.mxu0 %v3522
        %3539 = vmatprep.subr.bf16.mxu0 0
        %3540 = vmatpush1.bf16.msra.mxu0 %v3521
        %3541 = vmatprep.subr.bf16.mxu0 0
        %3542 = vmatpush1.bf16.msra.mxu0 %v3520
        %3543 = vmatprep.subr.bf16.mxu0 0
        %3544 = vmatpush1.bf16.msra.mxu0 %v3519
        %3545 = vmatprep.subr.bf16.mxu0 0
        %3546 = vmatpush1.bf16.msra.mxu0 %v3518
        %3547 = vmatprep.subr.bf16.mxu0 0
        %3548 = vmatpush1.bf16.msra.mxu0 %v3517
        %3549 = vmatprep.subr.bf16.mxu0 0
        %3550 = vmatpush2.bf16.msra.mxu0 0
        %3551 = vmatprep.subr.bf16.mxu0 0
        %3552 = vmatpush2.bf16.msra.mxu0 0
        %3553 = vmatprep.subr.bf16.mxu0 0
        %3554 = vmatpush2.bf16.msra.mxu0 0
        %3555 = vmatprep.subr.bf16.mxu0 0
        %3556 = vmatpush2.bf16.msra.mxu0 0
        %3557 = vmatprep.subr.bf16.mxu0 0
        %3558 = vmatpush2.bf16.msra.mxu0 0
        %3559 = vmatprep.subr.bf16.mxu0 0
        %3560 = vmatpush2.bf16.msra.mxu0 0
        %3561 = vmatprep.subr.bf16.mxu0 0
        %3562 = vmatpush2.bf16.msra.mxu0 0
        %3563 = vmatprep.subr.bf16.mxu0 0
        %3564 = vmatpush2.bf16.msra.mxu0 0
        %3565 = vmatprep.mubr.bf16.mxu0 0
        %3566 = vmatmul.mubr.bf16.gmra.mxu0 %v3460
        %v3567 = vpop.f32.mrf.mxu0
        %v3568 = vadd.f32 %v3483, %v3567
        %v3569 = vpop.f32.mrf.mxu0
        %v3570 = vpop.f32.mrf.mxu0
        %v3571 = vadd.f32 %v3483, %v3570
        %v3572 = vpop.f32.mrf.mxu0
        %3573 = vmatprep.mubr.bf16.mxu0 0
        %3574 = vmatmul.mubr.bf16.gmra.mxu0 %v3461
        %v3575 = vpop.f32.mrf.mxu0
        %v3576 = vadd.f32 %v3483, %v3575
        %v3577 = vpop.f32.mrf.mxu0
        %v3578 = vpop.f32.mrf.mxu0
        %v3579 = vadd.f32 %v3483, %v3578
        %v3580 = vpop.f32.mrf.mxu0
        %3581 = vdwg.mxu0
        %v3582 = vmax.f32 %v3568, 0.0
        %v3583 = vmax.f32 %v3571, 0.0
        %v3584 = vmax.f32 %v3576, 0.0
        %v3585 = vmax.f32 %v3579, 0.0
        %v3586 = vpack.c.bf16 %v3583, %v3582
        %v3587 = vpack.c.bf16 %v3585, %v3584
        %v3588 = vld [vmem:[%s10] sm:$0xf]
        %v3589 = vld [vmem:[%s10 + $0x4] sm:$0xf]
        %v3590 = vld [vmem:[%s10 + $0x8] sm:$0xf]
        %v3591 = vld [vmem:[%s10 + $0xc] sm:$0xf]
        %v3592 = vld [vmem:[%s10 + $0x10] sm:$0xf]
        %v3593 = vld [vmem:[%s10 + $0x14] sm:$0xf]
        %v3594 = vld [vmem:[%s10 + $0x18] sm:$0xf]
        %v3595 = vld [vmem:[%s10 + $0x1c] sm:$0xf]
        %v3596 = vld [vmem:[%s11] sm:$0x1]
        %v3598 = vlaneseq
        %v3599 = vshrl.u32 %v3598, 7
        %v3600 = vsub.s32 0, %v3599
        %v3601 = vrot.slane %v3596, %v3600
        %v3611 = vunpack.c.l.b16 %v3588
        %v3612 = vunpack.c.l.b16 %v3589
        %v3613 = vunpack.c.l.b16 %v3590
        %v3614 = vunpack.c.l.b16 %v3591
        %v3615 = vunpack.c.l.b16 %v3592
        %v3616 = vunpack.c.l.b16 %v3593
        %v3617 = vunpack.c.l.b16 %v3594
        %v3618 = vunpack.c.l.b16 %v3595
        %v3619 = vpack.c.b16 %v3612, %v3611
        %v3620 = vpack.c.b16 %v3614, %v3613
        %v3621 = vpack.c.b16 %v3616, %v3615
        %v3622 = vpack.c.b16 %v3618, %v3617
        %vm3627 = vcmask 523264
        %v3629 = vsel %vm3627, %v3586, 0
        %v3632 = vsel %vm3627, %v3587, 0
        %3634 = vmatprep.subr.bf16.mxu0 0
        %3635 = vmatpush1.bf16.msra.mxu0 0
        %3636 = vmatprep.subr.bf16.mxu0 0
        %3637 = vmatpush1.bf16.msra.mxu0 0
        %3638 = vmatprep.subr.bf16.mxu0 0
        %3639 = vmatpush1.bf16.msra.mxu0 0
        %3640 = vmatprep.subr.bf16.mxu0 0
        %3641 = vmatpush1.bf16.msra.mxu0 0
        %3642 = vmatprep.subr.bf16.mxu0 0
        %3643 = vmatpush1.bf16.msra.mxu0 %v3622
        %3644 = vmatprep.subr.bf16.mxu0 0
        %3645 = vmatpush1.bf16.msra.mxu0 %v3621
        %3646 = vmatprep.subr.bf16.mxu0 0
        %3647 = vmatpush1.bf16.msra.mxu0 %v3620
        %3648 = vmatprep.subr.bf16.mxu0 0
        %3649 = vmatpush1.bf16.msra.mxu0 %v3619
        %3650 = vmatprep.subr.bf16.mxu0 0
        %3651 = vmatpush2.bf16.msra.mxu0 0
        %3652 = vmatprep.subr.bf16.mxu0 0
        %3653 = vmatpush2.bf16.msra.mxu0 0
        %3654 = vmatprep.subr.bf16.mxu0 0
        %3655 = vmatpush2.bf16.msra.mxu0 0
        %3656 = vmatprep.subr.bf16.mxu0 0
        %3657 = vmatpush2.bf16.msra.mxu0 0
        %3658 = vmatprep.subr.bf16.mxu0 0
        %3659 = vmatpush2.bf16.msra.mxu0 0
        %3660 = vmatprep.subr.bf16.mxu0 0
        %3661 = vmatpush2.bf16.msra.mxu0 0
        %3662 = vmatprep.subr.bf16.mxu0 0
        %3663 = vmatpush2.bf16.msra.mxu0 0
        %3664 = vmatprep.subr.bf16.mxu0 0
        %3665 = vmatpush2.bf16.msra.mxu0 0
        %3666 = vmatprep.mubr.bf16.mxu0 0
        %3667 = vmatmul.mubr.bf16.gmra.mxu0 %v3629
        %v3668 = vpop.f32.mrf.mxu0
        %v3669 = vadd.f32 %v3601, %v3668
        %v3670 = vpop.f32.mrf.mxu0
        %v3671 = vpop.f32.mrf.mxu0
        %v3672 = vadd.f32 %v3601, %v3671
        %v3673 = vpop.f32.mrf.mxu0
        %3674 = vmatprep.mubr.bf16.mxu0 0
        %3675 = vmatmul.mubr.bf16.gmra.mxu0 %v3632
        %v3676 = vpop.f32.mrf.mxu0
        %v3677 = vadd.f32 %v3601, %v3676
        %v3678 = vpop.f32.mrf.mxu0
        %v3679 = vpop.f32.mrf.mxu0
        %v3680 = vadd.f32 %v3601, %v3679
        %v3681 = vpop.f32.mrf.mxu0
        %3682 = vdwg.mxu0
        %v3683 = vmul.f32 %v3669, 1.442695
        %v3684 = vpow.pop %v3683
        %v3685 = vmul.f32 %v3672, 1.442695
        %v3686 = vpow.pop %v3685
        %v3687 = vmul.f32 %v3677, 1.442695
        %v3688 = vpow.pop %v3687
        %v3689 = vmul.f32 %v3680, 1.442695
        %v3690 = vpow.pop %v3689
        %v3691 = vmul.f32 %v3684, 0.5
        %v3692 = vmul.f32 %v3686, 0.5
        %v3693 = vmul.f32 %v3688, 0.5
        %v3694 = vmul.f32 %v3690, 0.5
        %v3695 = vld [vmem:[%s886] sm:$0xff]
        %v3696 = vld [vmem:[%s886 + $0x8] sm:$0xff]
        %v3697 = vld [vmem:[%s886 + $0x10] sm:$0xff]
        %v3698 = vld [vmem:[%s886 + $0x18] sm:$0xff]
        %3703 = vrot.lane.b32.xlu0 %v3695, 2
        %v3704 = vpop.permute.xlu0 %3703
        %3705 = vrot.lane.b32.xlu0 %v3696, 2
        %v3706 = vpop.permute.xlu0 %3705
        %3707 = vrot.lane.b32.xlu0 %v3697, 2
        %v3708 = vpop.permute.xlu0 %3707
        %3709 = vrot.lane.b32.xlu0 %v3698, 2
        %v3710 = vpop.permute.xlu0 %3709
        %v3715 = vmul.f32 %v3691, %v3704
        %v3716 = vmul.f32 %v3692, %v3706
        %v3717 = vmul.f32 %v3693, %v3708
        %v3718 = vmul.f32 %v3694, %v3710
        %3723 = vrot.lane.b32.xlu0 %v3669, 2
        %v3724 = vpop.permute.xlu0 %3723
        %3725 = vrot.lane.b32.xlu0 %v3672, 2
        %v3726 = vpop.permute.xlu0 %3725
        %3727 = vrot.lane.b32.xlu0 %v3677, 2
        %v3728 = vpop.permute.xlu0 %3727
        %3729 = vrot.lane.b32.xlu0 %v3680, 2
        %v3730 = vpop.permute.xlu0 %3729
        %v3735 = vadd.f32 %v3715, %v3724
        %v3736 = vadd.f32 %v3716, %v3726
        %v3737 = vadd.f32 %v3717, %v3728
        %v3738 = vadd.f32 %v3718, %v3730
        %v3739 = vld [vmem:[#allocation7] sm:$0x1]
        %v3740 = vunpack.c.l.bf16 %v3739
        %3742 = vset.pattern.permute.xlu0 2
        %3743 = vperm.xlu0 %3742, %v3735
        %v3744 = vpop.permute.xlu0 %3743
        %3747 = vset.pattern.permute.xlu0 2
        %3748 = vperm.xlu0 %3747, %v3736
        %v3749 = vpop.permute.xlu0 %3748
        %3752 = vset.pattern.permute.xlu0 2
        %3753 = vperm.xlu0 %3752, %v3737
        %v3754 = vpop.permute.xlu0 %3753
        %3757 = vset.pattern.permute.xlu0 2
        %3758 = vperm.xlu0 %3757, %v3738
        %v3759 = vpop.permute.xlu0 %3758
        %v3761 = vlaneseq
        %v3762 = vshrl.u32 %v3761, 7
        %v3763 = vsub.s32 0, %v3762
        %v3764 = vrot.slane %v3740, %v3763
        %v3765 = vmul.f32 %v3744, %v3764
        %v3766 = vmul.f32 %v3749, %v3764
        %v3767 = vmul.f32 %v3754, %v3764
        %v3768 = vmul.f32 %v3759, %v3764
        %3769 = vset.pattern.permute.xlu0 3
        %3770 = vperm.xlu0 %3769, %v3735
        %v3771 = vpop.permute.xlu0 %3770
        %3773 = vset.pattern.permute.xlu0 3
        %3774 = vperm.xlu0 %3773, %v3736
        %v3775 = vpop.permute.xlu0 %3774
        %3777 = vset.pattern.permute.xlu0 3
        %3778 = vperm.xlu0 %3777, %v3737
        %v3779 = vpop.permute.xlu0 %3778
        %3781 = vset.pattern.permute.xlu0 3
        %3782 = vperm.xlu0 %3781, %v3738
        %v3783 = vpop.permute.xlu0 %3782
        %v3785 = vlaneseq
        %v3786 = vshrl.u32 %v3785, 7
        %v3787 = vsub.s32 1, %v3786
        %v3788 = vrot.slane %v3740, %v3787
        %v3789 = vmul.f32 %v3771, %v3788
        %v3790 = vmul.f32 %v3775, %v3788
        %v3791 = vmul.f32 %v3779, %v3788
        %v3792 = vmul.f32 %v3783, %v3788
        %v3793 = vadd.f32 %v3765, %v3789
        %v3794 = vadd.f32 %v3766, %v3790
        %v3795 = vadd.f32 %v3767, %v3791
        %v3796 = vadd.f32 %v3768, %v3792
        %v3797 = vld [vmem:[#allocation9] sm:$0x1]
        %v3799 = vlaneseq
        %v3800 = vshrl.u32 %v3799, 7
        %v3801 = vsub.s32 0, %v3800
        %v3802 = vrot.slane %v3797, %v3801
        %v3804 = vadd.f32 %v3793, %v3802
        %v3805 = vadd.f32 %v3794, %v3802
        %v3806 = vadd.f32 %v3795, %v3802
        %v3807 = vadd.f32 %v3796, %v3802
        %v3808 = vmax.f32 %v3804, 0.0
        %v3809 = vmax.f32 %v3805, 0.0
        %v3810 = vmax.f32 %v3806, 0.0
        %v3811 = vmax.f32 %v3807, 0.0
        %v3812 = vpack.c.bf16 %v3809, %v3808
        %v3813 = vpack.c.bf16 %v3811, %v3810
        %v3814 = vld [vmem:[%s14] sm:$0xf]
        %v3815 = vld [vmem:[%s14 + $0x4] sm:$0xf]
        %v3816 = vld [vmem:[%s14 + $0x8] sm:$0xf]
        %v3817 = vld [vmem:[%s14 + $0xc] sm:$0xf]
        %v3818 = vld [vmem:[%s14 + $0x10] sm:$0xf]
        %v3819 = vld [vmem:[%s14 + $0x14] sm:$0xf]
        %v3820 = vld [vmem:[%s14 + $0x18] sm:$0xf]
        %v3821 = vld [vmem:[%s14 + $0x1c] sm:$0xf]
        %v3822 = vld [vmem:[#allocation10] sm:$0x1]
        %v3824 = vlaneseq
        %v3825 = vshrl.u32 %v3824, 7
        %v3826 = vsub.s32 0, %v3825
        %v3827 = vrot.slane %v3822, %v3826
        %v3837 = vunpack.c.l.b16 %v3814
        %v3838 = vunpack.c.l.b16 %v3815
        %v3839 = vunpack.c.l.b16 %v3816
        %v3840 = vunpack.c.l.b16 %v3817
        %v3841 = vunpack.c.l.b16 %v3818
        %v3842 = vunpack.c.l.b16 %v3819
        %v3843 = vunpack.c.l.b16 %v3820
        %v3844 = vunpack.c.l.b16 %v3821
        %v3845 = vpack.c.b16 %v3838, %v3837
        %v3846 = vpack.c.b16 %v3840, %v3839
        %v3847 = vpack.c.b16 %v3842, %v3841
        %v3848 = vpack.c.b16 %v3844, %v3843
        %v3854 = vsel %vm3627, %v3812, 0
        %v3857 = vsel %vm3627, %v3813, 0
        %3859 = vmatprep.subr.bf16.mxu0 0
        %3860 = vmatpush1.bf16.msra.mxu0 0
        %3861 = vmatprep.subr.bf16.mxu0 0
        %3862 = vmatpush1.bf16.msra.mxu0 0
        %3863 = vmatprep.subr.bf16.mxu0 0
        %3864 = vmatpush1.bf16.msra.mxu0 0
        %3865 = vmatprep.subr.bf16.mxu0 0
        %3866 = vmatpush1.bf16.msra.mxu0 0
        %3867 = vmatprep.subr.bf16.mxu0 0
        %3868 = vmatpush1.bf16.msra.mxu0 %v3848
        %3869 = vmatprep.subr.bf16.mxu0 0
        %3870 = vmatpush1.bf16.msra.mxu0 %v3847
        %3871 = vmatprep.subr.bf16.mxu0 0
        %3872 = vmatpush1.bf16.msra.mxu0 %v3846
        %3873 = vmatprep.subr.bf16.mxu0 0
        %3874 = vmatpush1.bf16.msra.mxu0 %v3845
        %3875 = vmatprep.subr.bf16.mxu0 0
        %3876 = vmatpush2.bf16.msra.mxu0 0
        %3877 = vmatprep.subr.bf16.mxu0 0
        %3878 = vmatpush2.bf16.msra.mxu0 0
        %3879 = vmatprep.subr.bf16.mxu0 0
        %3880 = vmatpush2.bf16.msra.mxu0 0
        %3881 = vmatprep.subr.bf16.mxu0 0
        %3882 = vmatpush2.bf16.msra.mxu0 0
        %3883 = vmatprep.subr.bf16.mxu0 0
        %3884 = vmatpush2.bf16.msra.mxu0 0
        %3885 = vmatprep.subr.bf16.mxu0 0
        %3886 = vmatpush2.bf16.msra.mxu0 0
        %3887 = vmatprep.subr.bf16.mxu0 0
        %3888 = vmatpush2.bf16.msra.mxu0 0
        %3889 = vmatprep.subr.bf16.mxu0 0
        %3890 = vmatpush2.bf16.msra.mxu0 0
        %3891 = vmatprep.mubr.bf16.mxu0 0
        %3892 = vmatmul.mubr.bf16.gmra.mxu0 %v3854
        %v3893 = vpop.f32.mrf.mxu0
        %v3894 = vadd.f32 %v3827, %v3893
        %v3895 = vpop.f32.mrf.mxu0
        %v3896 = vpop.f32.mrf.mxu0
        %v3897 = vadd.f32 %v3827, %v3896
        %v3898 = vpop.f32.mrf.mxu0
        %3899 = vmatprep.mubr.bf16.mxu0 0
        %3900 = vmatmul.mubr.bf16.gmra.mxu0 %v3857
        %v3901 = vpop.f32.mrf.mxu0
        %v3902 = vadd.f32 %v3827, %v3901
        %v3903 = vpop.f32.mrf.mxu0
        %v3904 = vpop.f32.mrf.mxu0
        %v3905 = vadd.f32 %v3827, %v3904
        %v3906 = vpop.f32.mrf.mxu0
        %3907 = vdwg.mxu0
        %v3908 = vmax.f32 %v3894, 0.0
        %v3909 = vmax.f32 %v3897, 0.0
        %v3910 = vmax.f32 %v3902, 0.0
        %v3911 = vmax.f32 %v3905, 0.0
        %v3912 = vpack.c.bf16 %v3909, %v3908
        %v3913 = vpack.c.bf16 %v3911, %v3910
        %v3914 = vld [vmem:[#allocation12] sm:$0xff]
        %v3915 = vld [vmem:[#allocation12 + $0x8] sm:$0xff]
        %v3916 = vld [vmem:[#allocation12 + $0x10] sm:$0xff]
        %v3917 = vld [vmem:[#allocation12 + $0x18] sm:$0xff]
        %v3918 = vld [vmem:[#allocation12 + $0x20] sm:$0xff]
        %v3919 = vld [vmem:[#allocation12 + $0x28] sm:$0xff]
        %v3920 = vld [vmem:[#allocation12 + $0x30] sm:$0xff]
        %v3921 = vld [vmem:[#allocation12 + $0x38] sm:$0xff]
        %v3922 = vld [vmem:[#allocation12 + $0x40] sm:$0xff]
        %v3923 = vld [vmem:[#allocation12 + $0x48] sm:$0xff]
        %v3924 = vld [vmem:[#allocation12 + $0x50] sm:$0xff]
        %v3925 = vld [vmem:[#allocation12 + $0x58] sm:$0xff]
        %v3926 = vld [vmem:[#allocation12 + $0x60] sm:$0xff]
        %v3927 = vld [vmem:[#allocation12 + $0x68] sm:$0xff]
        %v3928 = vld [vmem:[#allocation12 + $0x70] sm:$0xff]
        %v3929 = vld [vmem:[#allocation12 + $0x78] sm:$0xff]
        %v3930 = vld [vmem:[#allocation13] sm:$0x3]
        %v3932 = vlaneseq
        %v3933 = vshrl.u32 %v3932, 7
        %v3934 = vsub.s32 0, %v3933
        %v3935 = vrot.slane %v3930, %v3934
        %v3936 = vlaneseq
        %v3937 = vshrl.u32 %v3936, 7
        %v3938 = vsub.s32 1, %v3937
        %v3939 = vrot.slane %v3930, %v3938
        %v3958 = vunpack.c.l.b16 %v3914
        %v3959 = vunpack.c.h.b16 %v3914
        %v3960 = vunpack.c.l.b16 %v3915
        %v3961 = vunpack.c.h.b16 %v3915
        %v3962 = vunpack.c.l.b16 %v3916
        %v3963 = vunpack.c.h.b16 %v3916
        %v3964 = vunpack.c.l.b16 %v3917
        %v3965 = vunpack.c.h.b16 %v3917
        %v3966 = vunpack.c.l.b16 %v3918
        %v3967 = vunpack.c.h.b16 %v3918
        %v3968 = vunpack.c.l.b16 %v3919
        %v3969 = vunpack.c.h.b16 %v3919
        %v3970 = vunpack.c.l.b16 %v3920
        %v3971 = vunpack.c.h.b16 %v3920
        %v3972 = vunpack.c.l.b16 %v3921
        %v3973 = vunpack.c.h.b16 %v3921
        %v3974 = vunpack.c.l.b16 %v3922
        %v3975 = vunpack.c.h.b16 %v3922
        %v3976 = vunpack.c.l.b16 %v3923
        %v3977 = vunpack.c.h.b16 %v3923
        %v3978 = vunpack.c.l.b16 %v3924
        %v3979 = vunpack.c.h.b16 %v3924
        %v3980 = vunpack.c.l.b16 %v3925
        %v3981 = vunpack.c.h.b16 %v3925
        %v3982 = vunpack.c.l.b16 %v3926
        %v3983 = vunpack.c.h.b16 %v3926
        %v3984 = vunpack.c.l.b16 %v3927
        %v3985 = vunpack.c.h.b16 %v3927
        %v3986 = vunpack.c.l.b16 %v3928
        %v3987 = vunpack.c.h.b16 %v3928
        %v3988 = vunpack.c.l.b16 %v3929
        %v3989 = vunpack.c.h.b16 %v3929
        %v3990 = vpack.c.b16 %v3960, %v3958
        %v3991 = vpack.c.b16 %v3961, %v3959
        %v3992 = vpack.c.b16 %v3964, %v3962
        %v3993 = vpack.c.b16 %v3965, %v3963
        %v3994 = vpack.c.b16 %v3968, %v3966
        %v3995 = vpack.c.b16 %v3969, %v3967
        %v3996 = vpack.c.b16 %v3972, %v3970
        %v3997 = vpack.c.b16 %v3973, %v3971
        %v3998 = vpack.c.b16 %v3976, %v3974
        %v3999 = vpack.c.b16 %v3977, %v3975
        %v4000 = vpack.c.b16 %v3980, %v3978
        %v4001 = vpack.c.b16 %v3981, %v3979
        %v4002 = vpack.c.b16 %v3984, %v3982
        %v4003 = vpack.c.b16 %v3985, %v3983
        %v4004 = vpack.c.b16 %v3988, %v3986
        %v4005 = vpack.c.b16 %v3989, %v3987
        %4022 = vmatprep.subr.bf16.mxu0 %v4005
        %4023 = vmatpush1.bf16.msra.mxu0 %v4004
        %4024 = vmatprep.subr.bf16.mxu0 %v4003
        %4025 = vmatpush1.bf16.msra.mxu0 %v4002
        %4026 = vmatprep.subr.bf16.mxu0 %v4001
        %4027 = vmatpush1.bf16.msra.mxu0 %v4000
        %4028 = vmatprep.subr.bf16.mxu0 %v3999
        %4029 = vmatpush1.bf16.msra.mxu0 %v3998
        %4030 = vmatprep.subr.bf16.mxu0 %v3997
        %4031 = vmatpush1.bf16.msra.mxu0 %v3996
        %4032 = vmatprep.subr.bf16.mxu0 %v3995
        %4033 = vmatpush1.bf16.msra.mxu0 %v3994
        %4034 = vmatprep.subr.bf16.mxu0 %v3993
        %4035 = vmatpush1.bf16.msra.mxu0 %v3992
        %4036 = vmatprep.subr.bf16.mxu0 %v3991
        %4037 = vmatpush1.bf16.msra.mxu0 %v3990
        %4038 = vmatprep.subr.bf16.mxu0 0
        %4039 = vmatpush2.bf16.msra.mxu0 0
        %4040 = vmatprep.subr.bf16.mxu0 0
        %4041 = vmatpush2.bf16.msra.mxu0 0
        %4042 = vmatprep.subr.bf16.mxu0 0
        %4043 = vmatpush2.bf16.msra.mxu0 0
        %4044 = vmatprep.subr.bf16.mxu0 0
        %4045 = vmatpush2.bf16.msra.mxu0 0
        %4046 = vmatprep.subr.bf16.mxu0 0
        %4047 = vmatpush2.bf16.msra.mxu0 0
        %4048 = vmatprep.subr.bf16.mxu0 0
        %4049 = vmatpush2.bf16.msra.mxu0 0
        %4050 = vmatprep.subr.bf16.mxu0 0
        %4051 = vmatpush2.bf16.msra.mxu0 0
        %4052 = vmatprep.subr.bf16.mxu0 0
        %4053 = vmatpush2.bf16.msra.mxu0 0
        %4054 = vmatprep.mubr.bf16.mxu0 0
        %4055 = vmatmul.mubr.bf16.gmra.mxu0 %v3912
        %v4056 = vpop.f32.mrf.mxu0
        %v4057 = vadd.f32 %v3935, %v4056
        %v4058 = vpop.f32.mrf.mxu0
        %v4059 = vadd.f32 %v3939, %v4058
        %v4060 = vpop.f32.mrf.mxu0
        %v4061 = vadd.f32 %v3935, %v4060
        %v4062 = vpop.f32.mrf.mxu0
        %v4063 = vadd.f32 %v3939, %v4062
        %4064 = vmatprep.mubr.bf16.mxu0 0
        %4065 = vmatmul.mubr.bf16.gmra.mxu0 %v3913
        %v4066 = vpop.f32.mrf.mxu0
        %v4067 = vadd.f32 %v3935, %v4066
        %v4068 = vpop.f32.mrf.mxu0
        %v4069 = vadd.f32 %v3939, %v4068
        %v4070 = vpop.f32.mrf.mxu0
        %v4071 = vadd.f32 %v3935, %v4070
        %v4072 = vpop.f32.mrf.mxu0
        %v4073 = vadd.f32 %v3939, %v4072
        %4074 = vdwg.mxu0
        %v4075 = vmax.f32 %v4057, 0.0
        %v4076 = vmax.f32 %v4059, 0.0
        %v4077 = vmax.f32 %v4061, 0.0
        %v4078 = vmax.f32 %v4063, 0.0
        %v4079 = vmax.f32 %v4067, 0.0
        %v4080 = vmax.f32 %v4069, 0.0
        %v4081 = vmax.f32 %v4071, 0.0
        %v4082 = vmax.f32 %v4073, 0.0
        %v4083 = vpack.c.bf16 %v4077, %v4075
        %v4084 = vpack.c.bf16 %v4078, %v4076
        %v4085 = vpack.c.bf16 %v4081, %v4079
        %v4086 = vpack.c.bf16 %v4082, %v4080
        %v4087 = vld [vmem:[%s18] sm:$0xff]
        %v4088 = vld [vmem:[%s18 + $0x8] sm:$0xff]
        %v4089 = vld [vmem:[%s18 + $0x10] sm:$0xff]
        %v4090 = vld [vmem:[%s18 + $0x18] sm:$0xff]
        %v4091 = vld [vmem:[%s18 + $0x20] sm:$0xff]
        %v4092 = vld [vmem:[%s18 + $0x28] sm:$0xff]
        %v4093 = vld [vmem:[%s18 + $0x30] sm:$0xff]
        %v4094 = vld [vmem:[%s18 + $0x38] sm:$0xff]
        %v4095 = vld [vmem:[%s18 + $0x40] sm:$0xff]
        %v4096 = vld [vmem:[%s18 + $0x48] sm:$0xff]
        %v4097 = vld [vmem:[%s18 + $0x50] sm:$0xff]
        %v4098 = vld [vmem:[%s18 + $0x58] sm:$0xff]
        %v4099 = vld [vmem:[%s18 + $0x60] sm:$0xff]
        %v4100 = vld [vmem:[%s18 + $0x68] sm:$0xff]
        %v4101 = vld [vmem:[%s18 + $0x70] sm:$0xff]
        %v4102 = vld [vmem:[%s18 + $0x78] sm:$0xff]
        %v4103 = vld [vmem:[%s18 + $0x80] sm:$0xff]
        %v4104 = vld [vmem:[%s18 + $0x88] sm:$0xff]
        %v4105 = vld [vmem:[%s18 + $0x90] sm:$0xff]
        %v4106 = vld [vmem:[%s18 + $0x98] sm:$0xff]
        %v4107 = vld [vmem:[%s18 + $0xa0] sm:$0xff]
        %v4108 = vld [vmem:[%s18 + $0xa8] sm:$0xff]
        %v4109 = vld [vmem:[%s18 + $0xb0] sm:$0xff]
        %v4110 = vld [vmem:[%s18 + $0xb8] sm:$0xff]
        %v4111 = vld [vmem:[%s18 + $0xc0] sm:$0xff]
        %v4112 = vld [vmem:[%s18 + $0xc8] sm:$0xff]
        %v4113 = vld [vmem:[%s18 + $0xd0] sm:$0xff]
        %v4114 = vld [vmem:[%s18 + $0xd8] sm:$0xff]
        %v4115 = vld [vmem:[%s18 + $0xe0] sm:$0xff]
        %v4116 = vld [vmem:[%s18 + $0xe8] sm:$0xff]
        %v4117 = vld [vmem:[%s18 + $0xf0] sm:$0xff]
        %v4118 = vld [vmem:[%s18 + $0xf8] sm:$0xff]
        %v4119 = vld [vmem:[%s18 + $0x100] sm:$0xff]
        %v4120 = vld [vmem:[%s18 + $0x108] sm:$0xff]
        %v4121 = vld [vmem:[%s18 + $0x110] sm:$0xff]
        %v4122 = vld [vmem:[%s18 + $0x118] sm:$0xff]
        %v4123 = vld [vmem:[%s18 + $0x120] sm:$0xff]
        %v4124 = vld [vmem:[%s18 + $0x128] sm:$0xff]
        %v4125 = vld [vmem:[%s18 + $0x130] sm:$0xff]
        %v4126 = vld [vmem:[%s18 + $0x138] sm:$0xff]
        %v4127 = vld [vmem:[%s18 + $0x140] sm:$0xff]
        %v4128 = vld [vmem:[%s18 + $0x148] sm:$0xff]
        %v4129 = vld [vmem:[%s18 + $0x150] sm:$0xff]
        %v4130 = vld [vmem:[%s18 + $0x158] sm:$0xff]
        %v4131 = vld [vmem:[%s18 + $0x160] sm:$0xff]
        %v4132 = vld [vmem:[%s18 + $0x168] sm:$0xff]
        %v4133 = vld [vmem:[%s18 + $0x170] sm:$0xff]
        %v4134 = vld [vmem:[%s18 + $0x178] sm:$0xff]
        %v4135 = vld [vmem:[%s18 + $0x180] sm:$0xff]
        %v4136 = vld [vmem:[%s18 + $0x188] sm:$0xff]
        %v4137 = vld [vmem:[%s18 + $0x190] sm:$0xff]
        %v4138 = vld [vmem:[%s18 + $0x198] sm:$0xff]
        %v4139 = vld [vmem:[%s18 + $0x1a0] sm:$0xff]
        %v4140 = vld [vmem:[%s18 + $0x1a8] sm:$0xff]
        %v4141 = vld [vmem:[%s18 + $0x1b0] sm:$0xff]
        %v4142 = vld [vmem:[%s18 + $0x1b8] sm:$0xff]
        %v4143 = vld [vmem:[%s18 + $0x1c0] sm:$0xff]
        %v4144 = vld [vmem:[%s18 + $0x1c8] sm:$0xff]
        %v4145 = vld [vmem:[%s18 + $0x1d0] sm:$0xff]
        %v4146 = vld [vmem:[%s18 + $0x1d8] sm:$0xff]
        %v4147 = vld [vmem:[%s18 + $0x1e0] sm:$0xff]
        %v4148 = vld [vmem:[%s18 + $0x1e8] sm:$0xff]
        %v4149 = vld [vmem:[%s18 + $0x1f0] sm:$0xff]
        %v4150 = vld [vmem:[%s18 + $0x1f8] sm:$0xff]
        %v4151 = vld [vmem:[#allocation15] sm:$0xf]
        %v4153 = vlaneseq
        %v4154 = vshrl.u32 %v4153, 7
        %v4155 = vsub.s32 0, %v4154
        %v4156 = vrot.slane %v4151, %v4155
        %v4157 = vlaneseq
        %v4158 = vshrl.u32 %v4157, 7
        %v4159 = vsub.s32 1, %v4158
        %v4160 = vrot.slane %v4151, %v4159
        %v4161 = vlaneseq
        %v4162 = vshrl.u32 %v4161, 7
        %v4163 = vsub.s32 2, %v4162
        %v4164 = vrot.slane %v4151, %v4163
        %v4165 = vlaneseq
        %v4166 = vshrl.u32 %v4165, 7
        %v4167 = vsub.s32 3, %v4166
        %v4168 = vrot.slane %v4151, %v4167
        %v4237 = vunpack.c.l.b16 %v4087
        %v4238 = vunpack.c.h.b16 %v4087
        %v4239 = vunpack.c.l.b16 %v4088
        %v4240 = vunpack.c.h.b16 %v4088
        %v4241 = vunpack.c.l.b16 %v4089
        %v4242 = vunpack.c.h.b16 %v4089
        %v4243 = vunpack.c.l.b16 %v4090
        %v4244 = vunpack.c.h.b16 %v4090
        %v4245 = vunpack.c.l.b16 %v4091
        %v4246 = vunpack.c.h.b16 %v4091
        %v4247 = vunpack.c.l.b16 %v4092
        %v4248 = vunpack.c.h.b16 %v4092
        %v4249 = vunpack.c.l.b16 %v4093
        %v4250 = vunpack.c.h.b16 %v4093
        %v4251 = vunpack.c.l.b16 %v4094
        %v4252 = vunpack.c.h.b16 %v4094
        %v4253 = vunpack.c.l.b16 %v4095
        %v4254 = vunpack.c.h.b16 %v4095
        %v4255 = vunpack.c.l.b16 %v4096
        %v4256 = vunpack.c.h.b16 %v4096
        %v4257 = vunpack.c.l.b16 %v4097
        %v4258 = vunpack.c.h.b16 %v4097
        %v4259 = vunpack.c.l.b16 %v4098
        %v4260 = vunpack.c.h.b16 %v4098
        %v4261 = vunpack.c.l.b16 %v4099
        %v4262 = vunpack.c.h.b16 %v4099
        %v4263 = vunpack.c.l.b16 %v4100
        %v4264 = vunpack.c.h.b16 %v4100
        %v4265 = vunpack.c.l.b16 %v4101
        %v4266 = vunpack.c.h.b16 %v4101
        %v4267 = vunpack.c.l.b16 %v4102
        %v4268 = vunpack.c.h.b16 %v4102
        %v4269 = vunpack.c.l.b16 %v4103
        %v4270 = vunpack.c.h.b16 %v4103
        %v4271 = vunpack.c.l.b16 %v4104
        %v4272 = vunpack.c.h.b16 %v4104
        %v4273 = vunpack.c.l.b16 %v4105
        %v4274 = vunpack.c.h.b16 %v4105
        %v4275 = vunpack.c.l.b16 %v4106
        %v4276 = vunpack.c.h.b16 %v4106
        %v4277 = vunpack.c.l.b16 %v4107
        %v4278 = vunpack.c.h.b16 %v4107
        %v4279 = vunpack.c.l.b16 %v4108
        %v4280 = vunpack.c.h.b16 %v4108
        %v4281 = vunpack.c.l.b16 %v4109
        %v4282 = vunpack.c.h.b16 %v4109
        %v4283 = vunpack.c.l.b16 %v4110
        %v4284 = vunpack.c.h.b16 %v4110
        %v4285 = vunpack.c.l.b16 %v4111
        %v4286 = vunpack.c.h.b16 %v4111
        %v4287 = vunpack.c.l.b16 %v4112
        %v4288 = vunpack.c.h.b16 %v4112
        %v4289 = vunpack.c.l.b16 %v4113
        %v4290 = vunpack.c.h.b16 %v4113
        %v4291 = vunpack.c.l.b16 %v4114
        %v4292 = vunpack.c.h.b16 %v4114
        %v4293 = vunpack.c.l.b16 %v4115
        %v4294 = vunpack.c.h.b16 %v4115
        %v4295 = vunpack.c.l.b16 %v4116
        %v4296 = vunpack.c.h.b16 %v4116
        %v4297 = vunpack.c.l.b16 %v4117
        %v4298 = vunpack.c.h.b16 %v4117
        %v4299 = vunpack.c.l.b16 %v4118
        %v4300 = vunpack.c.h.b16 %v4118
        %v4301 = vunpack.c.l.b16 %v4119
        %v4302 = vunpack.c.h.b16 %v4119
        %v4303 = vunpack.c.l.b16 %v4120
        %v4304 = vunpack.c.h.b16 %v4120
        %v4305 = vunpack.c.l.b16 %v4121
        %v4306 = vunpack.c.h.b16 %v4121
        %v4307 = vunpack.c.l.b16 %v4122
        %v4308 = vunpack.c.h.b16 %v4122
        %v4309 = vunpack.c.l.b16 %v4123
        %v4310 = vunpack.c.h.b16 %v4123
        %v4311 = vunpack.c.l.b16 %v4124
        %v4312 = vunpack.c.h.b16 %v4124
        %v4313 = vunpack.c.l.b16 %v4125
        %v4314 = vunpack.c.h.b16 %v4125
        %v4315 = vunpack.c.l.b16 %v4126
        %v4316 = vunpack.c.h.b16 %v4126
        %v4317 = vunpack.c.l.b16 %v4127
        %v4318 = vunpack.c.h.b16 %v4127
        %v4319 = vunpack.c.l.b16 %v4128
        %v4320 = vunpack.c.h.b16 %v4128
        %v4321 = vunpack.c.l.b16 %v4129
        %v4322 = vunpack.c.h.b16 %v4129
        %v4323 = vunpack.c.l.b16 %v4130
        %v4324 = vunpack.c.h.b16 %v4130
        %v4325 = vunpack.c.l.b16 %v4131
        %v4326 = vunpack.c.h.b16 %v4131
        %v4327 = vunpack.c.l.b16 %v4132
        %v4328 = vunpack.c.h.b16 %v4132
        %v4329 = vunpack.c.l.b16 %v4133
        %v4330 = vunpack.c.h.b16 %v4133
        %v4331 = vunpack.c.l.b16 %v4134
        %v4332 = vunpack.c.h.b16 %v4134
        %v4333 = vunpack.c.l.b16 %v4135
        %v4334 = vunpack.c.h.b16 %v4135
        %v4335 = vunpack.c.l.b16 %v4136
        %v4336 = vunpack.c.h.b16 %v4136
        %v4337 = vunpack.c.l.b16 %v4137
        %v4338 = vunpack.c.h.b16 %v4137
        %v4339 = vunpack.c.l.b16 %v4138
        %v4340 = vunpack.c.h.b16 %v4138
        %v4341 = vunpack.c.l.b16 %v4139
        %v4342 = vunpack.c.h.b16 %v4139
        %v4343 = vunpack.c.l.b16 %v4140
        %v4344 = vunpack.c.h.b16 %v4140
        %v4345 = vunpack.c.l.b16 %v4141
        %v4346 = vunpack.c.h.b16 %v4141
        %v4347 = vunpack.c.l.b16 %v4142
        %v4348 = vunpack.c.h.b16 %v4142
        %v4349 = vunpack.c.l.b16 %v4143
        %v4350 = vunpack.c.h.b16 %v4143
        %v4351 = vunpack.c.l.b16 %v4144
        %v4352 = vunpack.c.h.b16 %v4144
        %v4353 = vunpack.c.l.b16 %v4145
        %v4354 = vunpack.c.h.b16 %v4145
        %v4355 = vunpack.c.l.b16 %v4146
        %v4356 = vunpack.c.h.b16 %v4146
        %v4357 = vunpack.c.l.b16 %v4147
        %v4358 = vunpack.c.h.b16 %v4147
        %v4359 = vunpack.c.l.b16 %v4148
        %v4360 = vunpack.c.h.b16 %v4148
        %v4361 = vunpack.c.l.b16 %v4149
        %v4362 = vunpack.c.h.b16 %v4149
        %v4363 = vunpack.c.l.b16 %v4150
        %v4364 = vunpack.c.h.b16 %v4150
        %v4365 = vpack.c.b16 %v4241, %v4237
        %v4366 = vpack.c.b16 %v4242, %v4238
        %v4367 = vpack.c.b16 %v4243, %v4239
        %v4368 = vpack.c.b16 %v4244, %v4240
        %v4369 = vpack.c.b16 %v4249, %v4245
        %v4370 = vpack.c.b16 %v4250, %v4246
        %v4371 = vpack.c.b16 %v4251, %v4247
        %v4372 = vpack.c.b16 %v4252, %v4248
        %v4373 = vpack.c.b16 %v4257, %v4253
        %v4374 = vpack.c.b16 %v4258, %v4254
        %v4375 = vpack.c.b16 %v4259, %v4255
        %v4376 = vpack.c.b16 %v4260, %v4256
        %v4377 = vpack.c.b16 %v4265, %v4261
        %v4378 = vpack.c.b16 %v4266, %v4262
        %v4379 = vpack.c.b16 %v4267, %v4263
        %v4380 = vpack.c.b16 %v4268, %v4264
        %v4381 = vpack.c.b16 %v4273, %v4269
        %v4382 = vpack.c.b16 %v4274, %v4270
        %v4383 = vpack.c.b16 %v4275, %v4271
        %v4384 = vpack.c.b16 %v4276, %v4272
        %v4385 = vpack.c.b16 %v4281, %v4277
        %v4386 = vpack.c.b16 %v4282, %v4278
        %v4387 = vpack.c.b16 %v4283, %v4279
        %v4388 = vpack.c.b16 %v4284, %v4280
        %v4389 = vpack.c.b16 %v4289, %v4285
        %v4390 = vpack.c.b16 %v4290, %v4286
        %v4391 = vpack.c.b16 %v4291, %v4287
        %v4392 = vpack.c.b16 %v4292, %v4288
        %v4393 = vpack.c.b16 %v4297, %v4293
        %v4394 = vpack.c.b16 %v4298, %v4294
        %v4395 = vpack.c.b16 %v4299, %v4295
        %v4396 = vpack.c.b16 %v4300, %v4296
        %v4397 = vpack.c.b16 %v4305, %v4301
        %v4398 = vpack.c.b16 %v4306, %v4302
        %v4399 = vpack.c.b16 %v4307, %v4303
        %v4400 = vpack.c.b16 %v4308, %v4304
        %v4401 = vpack.c.b16 %v4313, %v4309
        %v4402 = vpack.c.b16 %v4314, %v4310
        %v4403 = vpack.c.b16 %v4315, %v4311
        %v4404 = vpack.c.b16 %v4316, %v4312
        %v4405 = vpack.c.b16 %v4321, %v4317
        %v4406 = vpack.c.b16 %v4322, %v4318
        %v4407 = vpack.c.b16 %v4323, %v4319
        %v4408 = vpack.c.b16 %v4324, %v4320
        %v4409 = vpack.c.b16 %v4329, %v4325
        %v4410 = vpack.c.b16 %v4330, %v4326
        %v4411 = vpack.c.b16 %v4331, %v4327
        %v4412 = vpack.c.b16 %v4332, %v4328
        %v4413 = vpack.c.b16 %v4337, %v4333
        %v4414 = vpack.c.b16 %v4338, %v4334
        %v4415 = vpack.c.b16 %v4339, %v4335
        %v4416 = vpack.c.b16 %v4340, %v4336
        %v4417 = vpack.c.b16 %v4345, %v4341
        %v4418 = vpack.c.b16 %v4346, %v4342
        %v4419 = vpack.c.b16 %v4347, %v4343
        %v4420 = vpack.c.b16 %v4348, %v4344
        %v4421 = vpack.c.b16 %v4353, %v4349
        %v4422 = vpack.c.b16 %v4354, %v4350
        %v4423 = vpack.c.b16 %v4355, %v4351
        %v4424 = vpack.c.b16 %v4356, %v4352
        %v4425 = vpack.c.b16 %v4361, %v4357
        %v4426 = vpack.c.b16 %v4362, %v4358
        %v4427 = vpack.c.b16 %v4363, %v4359
        %v4428 = vpack.c.b16 %v4364, %v4360
        %4493 = vmatprep.subr.bf16.mxu0 %v4394
        %4494 = vmatpush1.bf16.msra.mxu0 %v4393
        %4495 = vmatprep.subr.bf16.mxu0 %v4390
        %4496 = vmatpush1.bf16.msra.mxu0 %v4389
        %4497 = vmatprep.subr.bf16.mxu0 %v4386
        %4498 = vmatpush1.bf16.msra.mxu0 %v4385
        %4499 = vmatprep.subr.bf16.mxu0 %v4382
        %4500 = vmatpush1.bf16.msra.mxu0 %v4381
        %4501 = vmatprep.subr.bf16.mxu0 %v4378
        %4502 = vmatpush1.bf16.msra.mxu0 %v4377
        %4503 = vmatprep.subr.bf16.mxu0 %v4374
        %4504 = vmatpush1.bf16.msra.mxu0 %v4373
        %4505 = vmatprep.subr.bf16.mxu0 %v4370
        %4506 = vmatpush1.bf16.msra.mxu0 %v4369
        %4507 = vmatprep.subr.bf16.mxu0 %v4366
        %4508 = vmatpush1.bf16.msra.mxu0 %v4365
        %4509 = vmatprep.subr.bf16.mxu0 %v4426
        %4510 = vmatpush2.bf16.msra.mxu0 %v4425
        %4511 = vmatprep.subr.bf16.mxu0 %v4422
        %4512 = vmatpush2.bf16.msra.mxu0 %v4421
        %4513 = vmatprep.subr.bf16.mxu0 %v4418
        %4514 = vmatpush2.bf16.msra.mxu0 %v4417
        %4515 = vmatprep.subr.bf16.mxu0 %v4414
        %4516 = vmatpush2.bf16.msra.mxu0 %v4413
        %4517 = vmatprep.subr.bf16.mxu0 %v4410
        %4518 = vmatpush2.bf16.msra.mxu0 %v4409
        %4519 = vmatprep.subr.bf16.mxu0 %v4406
        %4520 = vmatpush2.bf16.msra.mxu0 %v4405
        %4521 = vmatprep.subr.bf16.mxu0 %v4402
        %4522 = vmatpush2.bf16.msra.mxu0 %v4401
        %4523 = vmatprep.subr.bf16.mxu0 %v4398
        %4524 = vmatpush2.bf16.msra.mxu0 %v4397
        %4525 = vmatprep.mubr.bf16.mxu0 %v4084
        %4526 = vmatmul.mubr.bf16.gmra.mxu0 %v4083
        %v4527 = vpop.f32.mrf.mxu0
        %v4528 = vadd.f32 %v4156, %v4527
        %v4529 = vpop.f32.mrf.mxu0
        %v4530 = vadd.f32 %v4160, %v4529
        %v4531 = vpop.f32.mrf.mxu0
        %v4532 = vadd.f32 %v4156, %v4531
        %v4533 = vpop.f32.mrf.mxu0
        %v4534 = vadd.f32 %v4160, %v4533
        %4535 = vmatprep.mubr.bf16.mxu0 %v4086
        %4536 = vmatmul.mubr.bf16.gmra.mxu0 %v4085
        %v4537 = vpop.f32.mrf.mxu0
        %v4538 = vadd.f32 %v4156, %v4537
        %v4539 = vpop.f32.mrf.mxu0
        %v4540 = vadd.f32 %v4160, %v4539
        %v4541 = vpop.f32.mrf.mxu0
        %v4542 = vadd.f32 %v4156, %v4541
        %v4543 = vpop.f32.mrf.mxu0
        %v4544 = vadd.f32 %v4160, %v4543
        %4545 = vdwg.mxu0
        %4546 = vmatprep.subr.bf16.mxu0 %v4396
        %4547 = vmatpush1.bf16.msra.mxu0 %v4395
        %4548 = vmatprep.subr.bf16.mxu0 %v4392
        %4549 = vmatpush1.bf16.msra.mxu0 %v4391
        %4550 = vmatprep.subr.bf16.mxu0 %v4388
        %4551 = vmatpush1.bf16.msra.mxu0 %v4387
        %4552 = vmatprep.subr.bf16.mxu0 %v4384
        %4553 = vmatpush1.bf16.msra.mxu0 %v4383
        %4554 = vmatprep.subr.bf16.mxu0 %v4380
        %4555 = vmatpush1.bf16.msra.mxu0 %v4379
        %4556 = vmatprep.subr.bf16.mxu0 %v4376
        %4557 = vmatpush1.bf16.msra.mxu0 %v4375
        %4558 = vmatprep.subr.bf16.mxu0 %v4372
        %4559 = vmatpush1.bf16.msra.mxu0 %v4371
        %4560 = vmatprep.subr.bf16.mxu0 %v4368
        %4561 = vmatpush1.bf16.msra.mxu0 %v4367
        %4562 = vmatprep.subr.bf16.mxu0 %v4428
        %4563 = vmatpush2.bf16.msra.mxu0 %v4427
        %4564 = vmatprep.subr.bf16.mxu0 %v4424
        %4565 = vmatpush2.bf16.msra.mxu0 %v4423
        %4566 = vmatprep.subr.bf16.mxu0 %v4420
        %4567 = vmatpush2.bf16.msra.mxu0 %v4419
        %4568 = vmatprep.subr.bf16.mxu0 %v4416
        %4569 = vmatpush2.bf16.msra.mxu0 %v4415
        %4570 = vmatprep.subr.bf16.mxu0 %v4412
        %4571 = vmatpush2.bf16.msra.mxu0 %v4411
        %4572 = vmatprep.subr.bf16.mxu0 %v4408
        %4573 = vmatpush2.bf16.msra.mxu0 %v4407
        %4574 = vmatprep.subr.bf16.mxu0 %v4404
        %4575 = vmatpush2.bf16.msra.mxu0 %v4403
        %4576 = vmatprep.subr.bf16.mxu0 %v4400
        %4577 = vmatpush2.bf16.msra.mxu0 %v4399
        %4578 = vmatprep.mubr.bf16.mxu0 %v4084
        %4579 = vmatmul.mubr.bf16.gmra.mxu0 %v4083
        %v4580 = vpop.f32.mrf.mxu0
        %v4581 = vadd.f32 %v4164, %v4580
        %v4582 = vpop.f32.mrf.mxu0
        %v4583 = vadd.f32 %v4168, %v4582
        %v4584 = vpop.f32.mrf.mxu0
        %v4585 = vadd.f32 %v4164, %v4584
        %v4586 = vpop.f32.mrf.mxu0
        %v4587 = vadd.f32 %v4168, %v4586
        %4588 = vmatprep.mubr.bf16.mxu0 %v4086
        %4589 = vmatmul.mubr.bf16.gmra.mxu0 %v4085
        %v4590 = vpop.f32.mrf.mxu0
        %v4591 = vadd.f32 %v4164, %v4590
        %v4592 = vpop.f32.mrf.mxu0
        %v4593 = vadd.f32 %v4168, %v4592
        %v4594 = vpop.f32.mrf.mxu0
        %v4595 = vadd.f32 %v4164, %v4594
        %v4596 = vpop.f32.mrf.mxu0
        %v4597 = vadd.f32 %v4168, %v4596
        %4598 = vdwg.mxu0
        %v4599 = vmax.f32 %v4528, 0.0
        %v4600 = vmax.f32 %v4530, 0.0
        %v4601 = vmax.f32 %v4581, 0.0
        %v4602 = vmax.f32 %v4583, 0.0
        %v4603 = vmax.f32 %v4532, 0.0
        %v4604 = vmax.f32 %v4534, 0.0
        %v4605 = vmax.f32 %v4585, 0.0
        %v4606 = vmax.f32 %v4587, 0.0
        %v4607 = vmax.f32 %v4538, 0.0
        %v4608 = vmax.f32 %v4540, 0.0
        %v4609 = vmax.f32 %v4591, 0.0
        %v4610 = vmax.f32 %v4593, 0.0
        %v4611 = vmax.f32 %v4542, 0.0
        %v4612 = vmax.f32 %v4544, 0.0
        %v4613 = vmax.f32 %v4595, 0.0
        %v4614 = vmax.f32 %v4597, 0.0
        %v4615 = vpack.c.bf16 %v4603, %v4599
        %v4616 = vpack.c.bf16 %v4604, %v4600
        %v4617 = vpack.c.bf16 %v4605, %v4601
        %v4618 = vpack.c.bf16 %v4606, %v4602
        %v4619 = vpack.c.bf16 %v4611, %v4607
        %v4620 = vpack.c.bf16 %v4612, %v4608
        %v4621 = vpack.c.bf16 %v4613, %v4609
        %v4622 = vpack.c.bf16 %v4614, %v4610
        %v4623 = vld [vmem:[#allocation16] sm:$0xff]
        %v4624 = vld [vmem:[#allocation16 + $0x8] sm:$0xff]
        %v4625 = vld [vmem:[#allocation16 + $0x10] sm:$0xff]
        %v4626 = vld [vmem:[#allocation16 + $0x18] sm:$0xf]
        %v4627 = vld [vmem:[#allocation16 + $0x1c] sm:$0xff]
        %v4628 = vld [vmem:[#allocation16 + $0x24] sm:$0xff]
        %v4629 = vld [vmem:[#allocation16 + $0x2c] sm:$0xff]
        %v4630 = vld [vmem:[#allocation16 + $0x34] sm:$0xf]
        %v4631 = vld [vmem:[#allocation16 + $0x38] sm:$0xff]
        %v4632 = vld [vmem:[#allocation16 + $0x40] sm:$0xff]
        %v4633 = vld [vmem:[#allocation16 + $0x48] sm:$0xff]
        %v4634 = vld [vmem:[#allocation16 + $0x50] sm:$0xf]
        %v4635 = vld [vmem:[#allocation16 + $0x54] sm:$0xff]
        %v4636 = vld [vmem:[#allocation16 + $0x5c] sm:$0xff]
        %v4637 = vld [vmem:[#allocation16 + $0x64] sm:$0xff]
        %v4638 = vld [vmem:[#allocation16 + $0x6c] sm:$0xf]
        %v4639 = vld [vmem:[#allocation16 + $0x70] sm:$0xff]
        %v4640 = vld [vmem:[#allocation16 + $0x78] sm:$0xff]
        %v4641 = vld [vmem:[#allocation16 + $0x80] sm:$0xff]
        %v4642 = vld [vmem:[#allocation16 + $0x88] sm:$0xf]
        %v4643 = vld [vmem:[#allocation16 + $0x8c] sm:$0xff]
        %v4644 = vld [vmem:[#allocation16 + $0x94] sm:$0xff]
        %v4645 = vld [vmem:[#allocation16 + $0x9c] sm:$0xff]
        %v4646 = vld [vmem:[#allocation16 + $0xa4] sm:$0xf]
        %v4647 = vld [vmem:[#allocation16 + $0xa8] sm:$0xff]
        %v4648 = vld [vmem:[#allocation16 + $0xb0] sm:$0xff]
        %v4649 = vld [vmem:[#allocation16 + $0xb8] sm:$0xff]
        %v4650 = vld [vmem:[#allocation16 + $0xc0] sm:$0xf]
        %v4651 = vld [vmem:[#allocation16 + $0xc4] sm:$0xff]
        %v4652 = vld [vmem:[#allocation16 + $0xcc] sm:$0xff]
        %v4653 = vld [vmem:[#allocation16 + $0xd4] sm:$0xff]
        %v4654 = vld [vmem:[#allocation16 + $0xdc] sm:$0xf]
        %v4655 = vld [vmem:[#allocation16 + $0xe0] sm:$0xff]
        %v4656 = vld [vmem:[#allocation16 + $0xe8] sm:$0xff]
        %v4657 = vld [vmem:[#allocation16 + $0xf0] sm:$0xff]
        %v4658 = vld [vmem:[#allocation16 + $0xf8] sm:$0xf]
        %v4659 = vld [vmem:[#allocation16 + $0xfc] sm:$0xff]
        %v4660 = vld [vmem:[#allocation16 + $0x104] sm:$0xff]
        %v4661 = vld [vmem:[#allocation16 + $0x10c] sm:$0xff]
        %v4662 = vld [vmem:[#allocation16 + $0x114] sm:$0xf]
        %v4663 = vld [vmem:[#allocation16 + $0x118] sm:$0xff]
        %v4664 = vld [vmem:[#allocation16 + $0x120] sm:$0xff]
        %v4665 = vld [vmem:[#allocation16 + $0x128] sm:$0xff]
        %v4666 = vld [vmem:[#allocation16 + $0x130] sm:$0xf]
        %v4667 = vld [vmem:[#allocation16 + $0x134] sm:$0xff]
        %v4668 = vld [vmem:[#allocation16 + $0x13c] sm:$0xff]
        %v4669 = vld [vmem:[#allocation16 + $0x144] sm:$0xff]
        %v4670 = vld [vmem:[#allocation16 + $0x14c] sm:$0xf]
        %v4671 = vld [vmem:[#allocation16 + $0x150] sm:$0xff]
        %v4672 = vld [vmem:[#allocation16 + $0x158] sm:$0xff]
        %v4673 = vld [vmem:[#allocation16 + $0x160] sm:$0xff]
        %v4674 = vld [vmem:[#allocation16 + $0x168] sm:$0xf]
        %v4675 = vld [vmem:[#allocation16 + $0x16c] sm:$0xff]
        %v4676 = vld [vmem:[#allocation16 + $0x174] sm:$0xff]
        %v4677 = vld [vmem:[#allocation16 + $0x17c] sm:$0xff]
        %v4678 = vld [vmem:[#allocation16 + $0x184] sm:$0xf]
        %v4679 = vld [vmem:[#allocation16 + $0x188] sm:$0xff]
        %v4680 = vld [vmem:[#allocation16 + $0x190] sm:$0xff]
        %v4681 = vld [vmem:[#allocation16 + $0x198] sm:$0xff]
        %v4682 = vld [vmem:[#allocation16 + $0x1a0] sm:$0xf]
        %v4683 = vld [vmem:[#allocation16 + $0x1a4] sm:$0xff]
        %v4684 = vld [vmem:[#allocation16 + $0x1ac] sm:$0xff]
        %v4685 = vld [vmem:[#allocation16 + $0x1b4] sm:$0xff]
        %v4686 = vld [vmem:[#allocation16 + $0x1bc] sm:$0xf]
        %v4687 = vld [vmem:[#allocation16 + $0x1c0] sm:$0xff]
        %v4688 = vld [vmem:[#allocation16 + $0x1c8] sm:$0xff]
        %v4689 = vld [vmem:[#allocation16 + $0x1d0] sm:$0xff]
        %v4690 = vld [vmem:[#allocation16 + $0x1d8] sm:$0xf]
        %v4691 = vld [vmem:[#allocation16 + $0x1dc] sm:$0xff]
        %v4692 = vld [vmem:[#allocation16 + $0x1e4] sm:$0xff]
        %v4693 = vld [vmem:[#allocation16 + $0x1ec] sm:$0xff]
        %v4694 = vld [vmem:[#allocation16 + $0x1f4] sm:$0xf]
        %v4695 = vld [vmem:[#allocation16 + $0x1f8] sm:$0xff]
        %v4696 = vld [vmem:[#allocation16 + $0x200] sm:$0xff]
        %v4697 = vld [vmem:[#allocation16 + $0x208] sm:$0xff]
        %v4698 = vld [vmem:[#allocation16 + $0x210] sm:$0xf]
        %v4699 = vld [vmem:[#allocation16 + $0x214] sm:$0xff]
        %v4700 = vld [vmem:[#allocation16 + $0x21c] sm:$0xff]
        %v4701 = vld [vmem:[#allocation16 + $0x224] sm:$0xff]
        %v4702 = vld [vmem:[#allocation16 + $0x22c] sm:$0xf]
        %v4703 = vld [vmem:[#allocation16 + $0x230] sm:$0xff]
        %v4704 = vld [vmem:[#allocation16 + $0x238] sm:$0xff]
        %v4705 = vld [vmem:[#allocation16 + $0x240] sm:$0xff]
        %v4706 = vld [vmem:[#allocation16 + $0x248] sm:$0xf]
        %v4707 = vld [vmem:[#allocation16 + $0x24c] sm:$0xff]
        %v4708 = vld [vmem:[#allocation16 + $0x254] sm:$0xff]
        %v4709 = vld [vmem:[#allocation16 + $0x25c] sm:$0xff]
        %v4710 = vld [vmem:[#allocation16 + $0x264] sm:$0xf]
        %v4711 = vld [vmem:[#allocation16 + $0x268] sm:$0xff]
        %v4712 = vld [vmem:[#allocation16 + $0x270] sm:$0xff]
        %v4713 = vld [vmem:[#allocation16 + $0x278] sm:$0xff]
        %v4714 = vld [vmem:[#allocation16 + $0x280] sm:$0xf]
        %v4715 = vld [vmem:[#allocation16 + $0x284] sm:$0xff]
        %v4716 = vld [vmem:[#allocation16 + $0x28c] sm:$0xff]
        %v4717 = vld [vmem:[#allocation16 + $0x294] sm:$0xff]
        %v4718 = vld [vmem:[#allocation16 + $0x29c] sm:$0xf]
        %v4719 = vld [vmem:[#allocation16 + $0x2a0] sm:$0xff]
        %v4720 = vld [vmem:[#allocation16 + $0x2a8] sm:$0xff]
        %v4721 = vld [vmem:[#allocation16 + $0x2b0] sm:$0xff]
        %v4722 = vld [vmem:[#allocation16 + $0x2b8] sm:$0xf]
        %v4723 = vld [vmem:[#allocation16 + $0x2bc] sm:$0xff]
        %v4724 = vld [vmem:[#allocation16 + $0x2c4] sm:$0xff]
        %v4725 = vld [vmem:[#allocation16 + $0x2cc] sm:$0xff]
        %v4726 = vld [vmem:[#allocation16 + $0x2d4] sm:$0xf]
        %v4727 = vld [vmem:[#allocation16 + $0x2d8] sm:$0xff]
        %v4728 = vld [vmem:[#allocation16 + $0x2e0] sm:$0xff]
        %v4729 = vld [vmem:[#allocation16 + $0x2e8] sm:$0xff]
        %v4730 = vld [vmem:[#allocation16 + $0x2f0] sm:$0xf]
        %v4731 = vld [vmem:[#allocation16 + $0x2f4] sm:$0xff]
        %v4732 = vld [vmem:[#allocation16 + $0x2fc] sm:$0xff]
        %v4733 = vld [vmem:[#allocation16 + $0x304] sm:$0xff]
        %v4734 = vld [vmem:[#allocation16 + $0x30c] sm:$0xf]
        %v4735 = vld [vmem:[#allocation16 + $0x310] sm:$0xff]
        %v4736 = vld [vmem:[#allocation16 + $0x318] sm:$0xff]
        %v4737 = vld [vmem:[#allocation16 + $0x320] sm:$0xff]
        %v4738 = vld [vmem:[#allocation16 + $0x328] sm:$0xf]
        %v4739 = vld [vmem:[#allocation16 + $0x32c] sm:$0xff]
        %v4740 = vld [vmem:[#allocation16 + $0x334] sm:$0xff]
        %v4741 = vld [vmem:[#allocation16 + $0x33c] sm:$0xff]
        %v4742 = vld [vmem:[#allocation16 + $0x344] sm:$0xf]
        %v4743 = vld [vmem:[#allocation16 + $0x348] sm:$0xff]
        %v4744 = vld [vmem:[#allocation16 + $0x350] sm:$0xff]
        %v4745 = vld [vmem:[#allocation16 + $0x358] sm:$0xff]
        %v4746 = vld [vmem:[#allocation16 + $0x360] sm:$0xf]
        %v4747 = vld [vmem:[#allocation16 + $0x364] sm:$0xff]
        %v4748 = vld [vmem:[#allocation16 + $0x36c] sm:$0xff]
        %v4749 = vld [vmem:[#allocation16 + $0x374] sm:$0xff]
        %v4750 = vld [vmem:[#allocation16 + $0x37c] sm:$0xf]
        %v4751 = vld [vmem:[#allocation16 + $0x380] sm:$0xff]
        %v4752 = vld [vmem:[#allocation16 + $0x388] sm:$0xff]
        %v4753 = vld [vmem:[#allocation16 + $0x390] sm:$0xff]
        %v4754 = vld [vmem:[#allocation16 + $0x398] sm:$0xf]
        %v4755 = vld [vmem:[#allocation16 + $0x39c] sm:$0xff]
        %v4756 = vld [vmem:[#allocation16 + $0x3a4] sm:$0xff]
        %v4757 = vld [vmem:[#allocation16 + $0x3ac] sm:$0xff]
        %v4758 = vld [vmem:[#allocation16 + $0x3b4] sm:$0xf]
        %v4759 = vld [vmem:[#allocation16 + $0x3b8] sm:$0xff]
        %v4760 = vld [vmem:[#allocation16 + $0x3c0] sm:$0xff]
        %v4761 = vld [vmem:[#allocation16 + $0x3c8] sm:$0xff]
        %v4762 = vld [vmem:[#allocation16 + $0x3d0] sm:$0xf]
        %v4763 = vld [vmem:[#allocation16 + $0x3d4] sm:$0xff]
        %v4764 = vld [vmem:[#allocation16 + $0x3dc] sm:$0xff]
        %v4765 = vld [vmem:[#allocation16 + $0x3e4] sm:$0xff]
        %v4766 = vld [vmem:[#allocation16 + $0x3ec] sm:$0xf]
        %v4767 = vld [vmem:[#allocation16 + $0x3f0] sm:$0xff]
        %v4768 = vld [vmem:[#allocation16 + $0x3f8] sm:$0xff]
        %v4769 = vld [vmem:[#allocation16 + $0x400] sm:$0xff]
        %v4770 = vld [vmem:[#allocation16 + $0x408] sm:$0xf]
        %v4771 = vld [vmem:[#allocation16 + $0x40c] sm:$0xff]
        %v4772 = vld [vmem:[#allocation16 + $0x414] sm:$0xff]
        %v4773 = vld [vmem:[#allocation16 + $0x41c] sm:$0xff]
        %v4774 = vld [vmem:[#allocation16 + $0x424] sm:$0xf]
        %v4775 = vld [vmem:[#allocation16 + $0x428] sm:$0xff]
        %v4776 = vld [vmem:[#allocation16 + $0x430] sm:$0xff]
        %v4777 = vld [vmem:[#allocation16 + $0x438] sm:$0xff]
        %v4778 = vld [vmem:[#allocation16 + $0x440] sm:$0xf]
        %v4779 = vld [vmem:[#allocation16 + $0x444] sm:$0xff]
        %v4780 = vld [vmem:[#allocation16 + $0x44c] sm:$0xff]
        %v4781 = vld [vmem:[#allocation16 + $0x454] sm:$0xff]
        %v4782 = vld [vmem:[#allocation16 + $0x45c] sm:$0xf]
        %v4783 = vld [vmem:[#allocation16 + $0x460] sm:$0xff]
        %v4784 = vld [vmem:[#allocation16 + $0x468] sm:$0xff]
        %v4785 = vld [vmem:[#allocation16 + $0x470] sm:$0xff]
        %v4786 = vld [vmem:[#allocation16 + $0x478] sm:$0xf]
        %v4787 = vld [vmem:[#allocation16 + $0x47c] sm:$0xff]
        %v4788 = vld [vmem:[#allocation16 + $0x484] sm:$0xff]
        %v4789 = vld [vmem:[#allocation16 + $0x48c] sm:$0xff]
        %v4790 = vld [vmem:[#allocation16 + $0x494] sm:$0xf]
        %v4791 = vld [vmem:[#allocation16 + $0x498] sm:$0xff]
        %v4792 = vld [vmem:[#allocation16 + $0x4a0] sm:$0xff]
        %v4793 = vld [vmem:[#allocation16 + $0x4a8] sm:$0xff]
        %v4794 = vld [vmem:[#allocation16 + $0x4b0] sm:$0xf]
        %v4795 = vld [vmem:[#allocation16 + $0x4b4] sm:$0xff]
        %v4796 = vld [vmem:[#allocation16 + $0x4bc] sm:$0xff]
        %v4797 = vld [vmem:[#allocation16 + $0x4c4] sm:$0xff]
        %v4798 = vld [vmem:[#allocation16 + $0x4cc] sm:$0xf]
        %v4799 = vld [vmem:[#allocation16 + $0x4d0] sm:$0xff]
        %v4800 = vld [vmem:[#allocation16 + $0x4d8] sm:$0xff]
        %v4801 = vld [vmem:[#allocation16 + $0x4e0] sm:$0xff]
        %v4802 = vld [vmem:[#allocation16 + $0x4e8] sm:$0xf]
        %v4803 = vld [vmem:[#allocation16 + $0x4ec] sm:$0xff]
        %v4804 = vld [vmem:[#allocation16 + $0x4f4] sm:$0xff]
        %v4805 = vld [vmem:[#allocation16 + $0x4fc] sm:$0xff]
        %v4806 = vld [vmem:[#allocation16 + $0x504] sm:$0xf]
        %v4807 = vld [vmem:[#allocation16 + $0x508] sm:$0xff]
        %v4808 = vld [vmem:[#allocation16 + $0x510] sm:$0xff]
        %v4809 = vld [vmem:[#allocation16 + $0x518] sm:$0xff]
        %v4810 = vld [vmem:[#allocation16 + $0x520] sm:$0xf]
        %v4811 = vld [vmem:[#allocation16 + $0x524] sm:$0xff]
        %v4812 = vld [vmem:[#allocation16 + $0x52c] sm:$0xff]
        %v4813 = vld [vmem:[#allocation16 + $0x534] sm:$0xff]
        %v4814 = vld [vmem:[#allocation16 + $0x53c] sm:$0xf]
        %v4815 = vld [vmem:[#allocation16 + $0x540] sm:$0xff]
        %v4816 = vld [vmem:[#allocation16 + $0x548] sm:$0xff]
        %v4817 = vld [vmem:[#allocation16 + $0x550] sm:$0xff]
        %v4818 = vld [vmem:[#allocation16 + $0x558] sm:$0xf]
        %v4819 = vld [vmem:[#allocation16 + $0x55c] sm:$0xff]
        %v4820 = vld [vmem:[#allocation16 + $0x564] sm:$0xff]
        %v4821 = vld [vmem:[#allocation16 + $0x56c] sm:$0xff]
        %v4822 = vld [vmem:[#allocation16 + $0x574] sm:$0xf]
        %v4823 = vld [vmem:[#allocation16 + $0x578] sm:$0xff]
        %v4824 = vld [vmem:[#allocation16 + $0x580] sm:$0xff]
        %v4825 = vld [vmem:[#allocation16 + $0x588] sm:$0xff]
        %v4826 = vld [vmem:[#allocation16 + $0x590] sm:$0xf]
        %v4827 = vld [vmem:[#allocation16 + $0x594] sm:$0xff]
        %v4828 = vld [vmem:[#allocation16 + $0x59c] sm:$0xff]
        %v4829 = vld [vmem:[#allocation16 + $0x5a4] sm:$0xff]
        %v4830 = vld [vmem:[#allocation16 + $0x5ac] sm:$0xf]
        %v4831 = vld [vmem:[#allocation16 + $0x5b0] sm:$0xff]
        %v4832 = vld [vmem:[#allocation16 + $0x5b8] sm:$0xff]
        %v4833 = vld [vmem:[#allocation16 + $0x5c0] sm:$0xff]
        %v4834 = vld [vmem:[#allocation16 + $0x5c8] sm:$0xf]
        %v4835 = vld [vmem:[#allocation16 + $0x5cc] sm:$0xff]
        %v4836 = vld [vmem:[#allocation16 + $0x5d4] sm:$0xff]
        %v4837 = vld [vmem:[#allocation16 + $0x5dc] sm:$0xff]
        %v4838 = vld [vmem:[#allocation16 + $0x5e4] sm:$0xf]
        %v4839 = vld [vmem:[#allocation16 + $0x5e8] sm:$0xff]
        %v4840 = vld [vmem:[#allocation16 + $0x5f0] sm:$0xff]
        %v4841 = vld [vmem:[#allocation16 + $0x5f8] sm:$0xff]
        %v4842 = vld [vmem:[#allocation16 + $0x600] sm:$0xf]
        %v4843 = vld [vmem:[#allocation16 + $0x604] sm:$0xff]
        %v4844 = vld [vmem:[#allocation16 + $0x60c] sm:$0xff]
        %v4845 = vld [vmem:[#allocation16 + $0x614] sm:$0xff]
        %v4846 = vld [vmem:[#allocation16 + $0x61c] sm:$0xf]
        %v4847 = vld [vmem:[#allocation16 + $0x620] sm:$0xff]
        %v4848 = vld [vmem:[#allocation16 + $0x628] sm:$0xff]
        %v4849 = vld [vmem:[#allocation16 + $0x630] sm:$0xff]
        %v4850 = vld [vmem:[#allocation16 + $0x638] sm:$0xf]
        %v4851 = vld [vmem:[#allocation16 + $0x63c] sm:$0xff]
        %v4852 = vld [vmem:[#allocation16 + $0x644] sm:$0xff]
        %v4853 = vld [vmem:[#allocation16 + $0x64c] sm:$0xff]
        %v4854 = vld [vmem:[#allocation16 + $0x654] sm:$0xf]
        %v4855 = vld [vmem:[#allocation16 + $0x658] sm:$0xff]
        %v4856 = vld [vmem:[#allocation16 + $0x660] sm:$0xff]
        %v4857 = vld [vmem:[#allocation16 + $0x668] sm:$0xff]
        %v4858 = vld [vmem:[#allocation16 + $0x670] sm:$0xf]
        %v4859 = vld [vmem:[#allocation16 + $0x674] sm:$0xff]
        %v4860 = vld [vmem:[#allocation16 + $0x67c] sm:$0xff]
        %v4861 = vld [vmem:[#allocation16 + $0x684] sm:$0xff]
        %v4862 = vld [vmem:[#allocation16 + $0x68c] sm:$0xf]
        %v4863 = vld [vmem:[#allocation16 + $0x690] sm:$0xff]
        %v4864 = vld [vmem:[#allocation16 + $0x698] sm:$0xff]
        %v4865 = vld [vmem:[#allocation16 + $0x6a0] sm:$0xff]
        %v4866 = vld [vmem:[#allocation16 + $0x6a8] sm:$0xf]
        %v4867 = vld [vmem:[#allocation16 + $0x6ac] sm:$0xff]
        %v4868 = vld [vmem:[#allocation16 + $0x6b4] sm:$0xff]
        %v4869 = vld [vmem:[#allocation16 + $0x6bc] sm:$0xff]
        %v4870 = vld [vmem:[#allocation16 + $0x6c4] sm:$0xf]
        %v4871 = vld [vmem:[#allocation16 + $0x6c8] sm:$0xff]
        %v4872 = vld [vmem:[#allocation16 + $0x6d0] sm:$0xff]
        %v4873 = vld [vmem:[#allocation16 + $0x6d8] sm:$0xff]
        %v4874 = vld [vmem:[#allocation16 + $0x6e0] sm:$0xf]
        %v4875 = vld [vmem:[#allocation16 + $0x6e4] sm:$0xff]
        %v4876 = vld [vmem:[#allocation16 + $0x6ec] sm:$0xff]
        %v4877 = vld [vmem:[#allocation16 + $0x6f4] sm:$0xff]
        %v4878 = vld [vmem:[#allocation16 + $0x6fc] sm:$0xf]
        %v4879 = vld [vmem:[#allocation18] sm:$0xff]
        %v4881 = vlaneseq
        %v4882 = vshrl.u32 %v4881, 7
        %v4883 = vsub.s32 0, %v4882
        %v4884 = vrot.slane %v4879, %v4883
        %v4885 = vlaneseq
        %v4886 = vshrl.u32 %v4885, 7
        %v4887 = vsub.s32 1, %v4886
        %v4888 = vrot.slane %v4879, %v4887
        %v4889 = vlaneseq
        %v4890 = vshrl.u32 %v4889, 7
        %v4891 = vsub.s32 2, %v4890
        %v4892 = vrot.slane %v4879, %v4891
        %v4893 = vlaneseq
        %v4894 = vshrl.u32 %v4893, 7
        %v4895 = vsub.s32 3, %v4894
        %v4896 = vrot.slane %v4879, %v4895
        %v4897 = vlaneseq
        %v4898 = vshrl.u32 %v4897, 7
        %v4899 = vsub.s32 4, %v4898
        %v4900 = vrot.slane %v4879, %v4899
        %v4901 = vlaneseq
        %v4902 = vshrl.u32 %v4901, 7
        %v4903 = vsub.s32 5, %v4902
        %v4904 = vrot.slane %v4879, %v4903
        %v4905 = vlaneseq
        %v4906 = vshrl.u32 %v4905, 7
        %v4907 = vsub.s32 6, %v4906
        %v4908 = vrot.slane %v4879, %v4907
        %v5172 = vunpack.c.l.b16 %v4623
        %v5173 = vunpack.c.h.b16 %v4623
        %v5174 = vunpack.c.l.b16 %v4624
        %v5175 = vunpack.c.h.b16 %v4624
        %v5176 = vunpack.c.l.b16 %v4625
        %v5177 = vunpack.c.h.b16 %v4625
        %v5178 = vunpack.c.l.b16 %v4626
        %v5179 = vunpack.c.l.b16 %v4627
        %v5180 = vunpack.c.h.b16 %v4627
        %v5181 = vunpack.c.l.b16 %v4628
        %v5182 = vunpack.c.h.b16 %v4628
        %v5183 = vunpack.c.l.b16 %v4629
        %v5184 = vunpack.c.h.b16 %v4629
        %v5185 = vunpack.c.l.b16 %v4630
        %v5186 = vunpack.c.l.b16 %v4631
        %v5187 = vunpack.c.h.b16 %v4631
        %v5188 = vunpack.c.l.b16 %v4632
        %v5189 = vunpack.c.h.b16 %v4632
        %v5190 = vunpack.c.l.b16 %v4633
        %v5191 = vunpack.c.h.b16 %v4633
        %v5192 = vunpack.c.l.b16 %v4634
        %v5193 = vunpack.c.l.b16 %v4635
        %v5194 = vunpack.c.h.b16 %v4635
        %v5195 = vunpack.c.l.b16 %v4636
        %v5196 = vunpack.c.h.b16 %v4636
        %v5197 = vunpack.c.l.b16 %v4637
        %v5198 = vunpack.c.h.b16 %v4637
        %v5199 = vunpack.c.l.b16 %v4638
        %v5200 = vunpack.c.l.b16 %v4639
        %v5201 = vunpack.c.h.b16 %v4639
        %v5202 = vunpack.c.l.b16 %v4640
        %v5203 = vunpack.c.h.b16 %v4640
        %v5204 = vunpack.c.l.b16 %v4641
        %v5205 = vunpack.c.h.b16 %v4641
        %v5206 = vunpack.c.l.b16 %v4642
        %v5207 = vunpack.c.l.b16 %v4643
        %v5208 = vunpack.c.h.b16 %v4643
        %v5209 = vunpack.c.l.b16 %v4644
        %v5210 = vunpack.c.h.b16 %v4644
        %v5211 = vunpack.c.l.b16 %v4645
        %v5212 = vunpack.c.h.b16 %v4645
        %v5213 = vunpack.c.l.b16 %v4646
        %v5214 = vunpack.c.l.b16 %v4647
        %v5215 = vunpack.c.h.b16 %v4647
        %v5216 = vunpack.c.l.b16 %v4648
        %v5217 = vunpack.c.h.b16 %v4648
        %v5218 = vunpack.c.l.b16 %v4649
        %v5219 = vunpack.c.h.b16 %v4649
        %v5220 = vunpack.c.l.b16 %v4650
        %v5221 = vunpack.c.l.b16 %v4651
        %v5222 = vunpack.c.h.b16 %v4651
        %v5223 = vunpack.c.l.b16 %v4652
        %v5224 = vunpack.c.h.b16 %v4652
        %v5225 = vunpack.c.l.b16 %v4653
        %v5226 = vunpack.c.h.b16 %v4653
        %v5227 = vunpack.c.l.b16 %v4654
        %v5228 = vunpack.c.l.b16 %v4655
        %v5229 = vunpack.c.h.b16 %v4655
        %v5230 = vunpack.c.l.b16 %v4656
        %v5231 = vunpack.c.h.b16 %v4656
        %v5232 = vunpack.c.l.b16 %v4657
        %v5233 = vunpack.c.h.b16 %v4657
        %v5234 = vunpack.c.l.b16 %v4658
        %v5235 = vunpack.c.l.b16 %v4659
        %v5236 = vunpack.c.h.b16 %v4659
        %v5237 = vunpack.c.l.b16 %v4660
        %v5238 = vunpack.c.h.b16 %v4660
        %v5239 = vunpack.c.l.b16 %v4661
        %v5240 = vunpack.c.h.b16 %v4661
        %v5241 = vunpack.c.l.b16 %v4662
        %v5242 = vunpack.c.l.b16 %v4663
        %v5243 = vunpack.c.h.b16 %v4663
        %v5244 = vunpack.c.l.b16 %v4664
        %v5245 = vunpack.c.h.b16 %v4664
        %v5246 = vunpack.c.l.b16 %v4665
        %v5247 = vunpack.c.h.b16 %v4665
        %v5248 = vunpack.c.l.b16 %v4666
        %v5249 = vunpack.c.l.b16 %v4667
        %v5250 = vunpack.c.h.b16 %v4667
        %v5251 = vunpack.c.l.b16 %v4668
        %v5252 = vunpack.c.h.b16 %v4668
        %v5253 = vunpack.c.l.b16 %v4669
        %v5254 = vunpack.c.h.b16 %v4669
        %v5255 = vunpack.c.l.b16 %v4670
        %v5256 = vunpack.c.l.b16 %v4671
        %v5257 = vunpack.c.h.b16 %v4671
        %v5258 = vunpack.c.l.b16 %v4672
        %v5259 = vunpack.c.h.b16 %v4672
        %v5260 = vunpack.c.l.b16 %v4673
        %v5261 = vunpack.c.h.b16 %v4673
        %v5262 = vunpack.c.l.b16 %v4674
        %v5263 = vunpack.c.l.b16 %v4675
        %v5264 = vunpack.c.h.b16 %v4675
        %v5265 = vunpack.c.l.b16 %v4676
        %v5266 = vunpack.c.h.b16 %v4676
        %v5267 = vunpack.c.l.b16 %v4677
        %v5268 = vunpack.c.h.b16 %v4677
        %v5269 = vunpack.c.l.b16 %v4678
        %v5270 = vunpack.c.l.b16 %v4679
        %v5271 = vunpack.c.h.b16 %v4679
        %v5272 = vunpack.c.l.b16 %v4680
        %v5273 = vunpack.c.h.b16 %v4680
        %v5274 = vunpack.c.l.b16 %v4681
        %v5275 = vunpack.c.h.b16 %v4681
        %v5276 = vunpack.c.l.b16 %v4682
        %v5277 = vunpack.c.l.b16 %v4683
        %v5278 = vunpack.c.h.b16 %v4683
        %v5279 = vunpack.c.l.b16 %v4684
        %v5280 = vunpack.c.h.b16 %v4684
        %v5281 = vunpack.c.l.b16 %v4685
        %v5282 = vunpack.c.h.b16 %v4685
        %v5283 = vunpack.c.l.b16 %v4686
        %v5284 = vunpack.c.l.b16 %v4687
        %v5285 = vunpack.c.h.b16 %v4687
        %v5286 = vunpack.c.l.b16 %v4688
        %v5287 = vunpack.c.h.b16 %v4688
        %v5288 = vunpack.c.l.b16 %v4689
        %v5289 = vunpack.c.h.b16 %v4689
        %v5290 = vunpack.c.l.b16 %v4690
        %v5291 = vunpack.c.l.b16 %v4691
        %v5292 = vunpack.c.h.b16 %v4691
        %v5293 = vunpack.c.l.b16 %v4692
        %v5294 = vunpack.c.h.b16 %v4692
        %v5295 = vunpack.c.l.b16 %v4693
        %v5296 = vunpack.c.h.b16 %v4693
        %v5297 = vunpack.c.l.b16 %v4694
        %v5298 = vunpack.c.l.b16 %v4695
        %v5299 = vunpack.c.h.b16 %v4695
        %v5300 = vunpack.c.l.b16 %v4696
        %v5301 = vunpack.c.h.b16 %v4696
        %v5302 = vunpack.c.l.b16 %v4697
        %v5303 = vunpack.c.h.b16 %v4697
        %v5304 = vunpack.c.l.b16 %v4698
        %v5305 = vunpack.c.l.b16 %v4699
        %v5306 = vunpack.c.h.b16 %v4699
        %v5307 = vunpack.c.l.b16 %v4700
        %v5308 = vunpack.c.h.b16 %v4700
        %v5309 = vunpack.c.l.b16 %v4701
        %v5310 = vunpack.c.h.b16 %v4701
        %v5311 = vunpack.c.l.b16 %v4702
        %v5312 = vunpack.c.l.b16 %v4703
        %v5313 = vunpack.c.h.b16 %v4703
        %v5314 = vunpack.c.l.b16 %v4704
        %v5315 = vunpack.c.h.b16 %v4704
        %v5316 = vunpack.c.l.b16 %v4705
        %v5317 = vunpack.c.h.b16 %v4705
        %v5318 = vunpack.c.l.b16 %v4706
        %v5319 = vunpack.c.l.b16 %v4707
        %v5320 = vunpack.c.h.b16 %v4707
        %v5321 = vunpack.c.l.b16 %v4708
        %v5322 = vunpack.c.h.b16 %v4708
        %v5323 = vunpack.c.l.b16 %v4709
        %v5324 = vunpack.c.h.b16 %v4709
        %v5325 = vunpack.c.l.b16 %v4710
        %v5326 = vunpack.c.l.b16 %v4711
        %v5327 = vunpack.c.h.b16 %v4711
        %v5328 = vunpack.c.l.b16 %v4712
        %v5329 = vunpack.c.h.b16 %v4712
        %v5330 = vunpack.c.l.b16 %v4713
        %v5331 = vunpack.c.h.b16 %v4713
        %v5332 = vunpack.c.l.b16 %v4714
        %v5333 = vunpack.c.l.b16 %v4715
        %v5334 = vunpack.c.h.b16 %v4715
        %v5335 = vunpack.c.l.b16 %v4716
        %v5336 = vunpack.c.h.b16 %v4716
        %v5337 = vunpack.c.l.b16 %v4717
        %v5338 = vunpack.c.h.b16 %v4717
        %v5339 = vunpack.c.l.b16 %v4718
        %v5340 = vunpack.c.l.b16 %v4719
        %v5341 = vunpack.c.h.b16 %v4719
        %v5342 = vunpack.c.l.b16 %v4720
        %v5343 = vunpack.c.h.b16 %v4720
        %v5344 = vunpack.c.l.b16 %v4721
        %v5345 = vunpack.c.h.b16 %v4721
        %v5346 = vunpack.c.l.b16 %v4722
        %v5347 = vunpack.c.l.b16 %v4723
        %v5348 = vunpack.c.h.b16 %v4723
        %v5349 = vunpack.c.l.b16 %v4724
        %v5350 = vunpack.c.h.b16 %v4724
        %v5351 = vunpack.c.l.b16 %v4725
        %v5352 = vunpack.c.h.b16 %v4725
        %v5353 = vunpack.c.l.b16 %v4726
        %v5354 = vunpack.c.l.b16 %v4727
        %v5355 = vunpack.c.h.b16 %v4727
        %v5356 = vunpack.c.l.b16 %v4728
        %v5357 = vunpack.c.h.b16 %v4728
        %v5358 = vunpack.c.l.b16 %v4729
        %v5359 = vunpack.c.h.b16 %v4729
        %v5360 = vunpack.c.l.b16 %v4730
        %v5361 = vunpack.c.l.b16 %v4731
        %v5362 = vunpack.c.h.b16 %v4731
        %v5363 = vunpack.c.l.b16 %v4732
        %v5364 = vunpack.c.h.b16 %v4732
        %v5365 = vunpack.c.l.b16 %v4733
        %v5366 = vunpack.c.h.b16 %v4733
        %v5367 = vunpack.c.l.b16 %v4734
        %v5368 = vunpack.c.l.b16 %v4735
        %v5369 = vunpack.c.h.b16 %v4735
        %v5370 = vunpack.c.l.b16 %v4736
        %v5371 = vunpack.c.h.b16 %v4736
        %v5372 = vunpack.c.l.b16 %v4737
        %v5373 = vunpack.c.h.b16 %v4737
        %v5374 = vunpack.c.l.b16 %v4738
        %v5375 = vunpack.c.l.b16 %v4739
        %v5376 = vunpack.c.h.b16 %v4739
        %v5377 = vunpack.c.l.b16 %v4740
        %v5378 = vunpack.c.h.b16 %v4740
        %v5379 = vunpack.c.l.b16 %v4741
        %v5380 = vunpack.c.h.b16 %v4741
        %v5381 = vunpack.c.l.b16 %v4742
        %v5382 = vunpack.c.l.b16 %v4743
        %v5383 = vunpack.c.h.b16 %v4743
        %v5384 = vunpack.c.l.b16 %v4744
        %v5385 = vunpack.c.h.b16 %v4744
        %v5386 = vunpack.c.l.b16 %v4745
        %v5387 = vunpack.c.h.b16 %v4745
        %v5388 = vunpack.c.l.b16 %v4746
        %v5389 = vunpack.c.l.b16 %v4747
        %v5390 = vunpack.c.h.b16 %v4747
        %v5391 = vunpack.c.l.b16 %v4748
        %v5392 = vunpack.c.h.b16 %v4748
        %v5393 = vunpack.c.l.b16 %v4749
        %v5394 = vunpack.c.h.b16 %v4749
        %v5395 = vunpack.c.l.b16 %v4750
        %v5396 = vunpack.c.l.b16 %v4751
        %v5397 = vunpack.c.h.b16 %v4751
        %v5398 = vunpack.c.l.b16 %v4752
        %v5399 = vunpack.c.h.b16 %v4752
        %v5400 = vunpack.c.l.b16 %v4753
        %v5401 = vunpack.c.h.b16 %v4753
        %v5402 = vunpack.c.l.b16 %v4754
        %v5403 = vunpack.c.l.b16 %v4755
        %v5404 = vunpack.c.h.b16 %v4755
        %v5405 = vunpack.c.l.b16 %v4756
        %v5406 = vunpack.c.h.b16 %v4756
        %v5407 = vunpack.c.l.b16 %v4757
        %v5408 = vunpack.c.h.b16 %v4757
        %v5409 = vunpack.c.l.b16 %v4758
        %v5410 = vunpack.c.l.b16 %v4759
        %v5411 = vunpack.c.h.b16 %v4759
        %v5412 = vunpack.c.l.b16 %v4760
        %v5413 = vunpack.c.h.b16 %v4760
        %v5414 = vunpack.c.l.b16 %v4761
        %v5415 = vunpack.c.h.b16 %v4761
        %v5416 = vunpack.c.l.b16 %v4762
        %v5417 = vunpack.c.l.b16 %v4763
        %v5418 = vunpack.c.h.b16 %v4763
        %v5419 = vunpack.c.l.b16 %v4764
        %v5420 = vunpack.c.h.b16 %v4764
        %v5421 = vunpack.c.l.b16 %v4765
        %v5422 = vunpack.c.h.b16 %v4765
        %v5423 = vunpack.c.l.b16 %v4766
        %v5424 = vunpack.c.l.b16 %v4767
        %v5425 = vunpack.c.h.b16 %v4767
        %v5426 = vunpack.c.l.b16 %v4768
        %v5427 = vunpack.c.h.b16 %v4768
        %v5428 = vunpack.c.l.b16 %v4769
        %v5429 = vunpack.c.h.b16 %v4769
        %v5430 = vunpack.c.l.b16 %v4770
        %v5431 = vunpack.c.l.b16 %v4771
        %v5432 = vunpack.c.h.b16 %v4771
        %v5433 = vunpack.c.l.b16 %v4772
        %v5434 = vunpack.c.h.b16 %v4772
        %v5435 = vunpack.c.l.b16 %v4773
        %v5436 = vunpack.c.h.b16 %v4773
        %v5437 = vunpack.c.l.b16 %v4774
        %v5438 = vunpack.c.l.b16 %v4775
        %v5439 = vunpack.c.h.b16 %v4775
        %v5440 = vunpack.c.l.b16 %v4776
        %v5441 = vunpack.c.h.b16 %v4776
        %v5442 = vunpack.c.l.b16 %v4777
        %v5443 = vunpack.c.h.b16 %v4777
        %v5444 = vunpack.c.l.b16 %v4778
        %v5445 = vunpack.c.l.b16 %v4779
        %v5446 = vunpack.c.h.b16 %v4779
        %v5447 = vunpack.c.l.b16 %v4780
        %v5448 = vunpack.c.h.b16 %v4780
        %v5449 = vunpack.c.l.b16 %v4781
        %v5450 = vunpack.c.h.b16 %v4781
        %v5451 = vunpack.c.l.b16 %v4782
        %v5452 = vunpack.c.l.b16 %v4783
        %v5453 = vunpack.c.h.b16 %v4783
        %v5454 = vunpack.c.l.b16 %v4784
        %v5455 = vunpack.c.h.b16 %v4784
        %v5456 = vunpack.c.l.b16 %v4785
        %v5457 = vunpack.c.h.b16 %v4785
        %v5458 = vunpack.c.l.b16 %v4786
        %v5459 = vunpack.c.l.b16 %v4787
        %v5460 = vunpack.c.h.b16 %v4787
        %v5461 = vunpack.c.l.b16 %v4788
        %v5462 = vunpack.c.h.b16 %v4788
        %v5463 = vunpack.c.l.b16 %v4789
        %v5464 = vunpack.c.h.b16 %v4789
        %v5465 = vunpack.c.l.b16 %v4790
        %v5466 = vunpack.c.l.b16 %v4791
        %v5467 = vunpack.c.h.b16 %v4791
        %v5468 = vunpack.c.l.b16 %v4792
        %v5469 = vunpack.c.h.b16 %v4792
        %v5470 = vunpack.c.l.b16 %v4793
        %v5471 = vunpack.c.h.b16 %v4793
        %v5472 = vunpack.c.l.b16 %v4794
        %v5473 = vunpack.c.l.b16 %v4795
        %v5474 = vunpack.c.h.b16 %v4795
        %v5475 = vunpack.c.l.b16 %v4796
        %v5476 = vunpack.c.h.b16 %v4796
        %v5477 = vunpack.c.l.b16 %v4797
        %v5478 = vunpack.c.h.b16 %v4797
        %v5479 = vunpack.c.l.b16 %v4798
        %v5480 = vunpack.c.l.b16 %v4799
        %v5481 = vunpack.c.h.b16 %v4799
        %v5482 = vunpack.c.l.b16 %v4800
        %v5483 = vunpack.c.h.b16 %v4800
        %v5484 = vunpack.c.l.b16 %v4801
        %v5485 = vunpack.c.h.b16 %v4801
        %v5486 = vunpack.c.l.b16 %v4802
        %v5487 = vunpack.c.l.b16 %v4803
        %v5488 = vunpack.c.h.b16 %v4803
        %v5489 = vunpack.c.l.b16 %v4804
        %v5490 = vunpack.c.h.b16 %v4804
        %v5491 = vunpack.c.l.b16 %v4805
        %v5492 = vunpack.c.h.b16 %v4805
        %v5493 = vunpack.c.l.b16 %v4806
        %v5494 = vunpack.c.l.b16 %v4807
        %v5495 = vunpack.c.h.b16 %v4807
        %v5496 = vunpack.c.l.b16 %v4808
        %v5497 = vunpack.c.h.b16 %v4808
        %v5498 = vunpack.c.l.b16 %v4809
        %v5499 = vunpack.c.h.b16 %v4809
        %v5500 = vunpack.c.l.b16 %v4810
        %v5501 = vunpack.c.l.b16 %v4811
        %v5502 = vunpack.c.h.b16 %v4811
        %v5503 = vunpack.c.l.b16 %v4812
        %v5504 = vunpack.c.h.b16 %v4812
        %v5505 = vunpack.c.l.b16 %v4813
        %v5506 = vunpack.c.h.b16 %v4813
        %v5507 = vunpack.c.l.b16 %v4814
        %v5508 = vunpack.c.l.b16 %v4815
        %v5509 = vunpack.c.h.b16 %v4815
        %v5510 = vunpack.c.l.b16 %v4816
        %v5511 = vunpack.c.h.b16 %v4816
        %v5512 = vunpack.c.l.b16 %v4817
        %v5513 = vunpack.c.h.b16 %v4817
        %v5514 = vunpack.c.l.b16 %v4818
        %v5515 = vunpack.c.l.b16 %v4819
        %v5516 = vunpack.c.h.b16 %v4819
        %v5517 = vunpack.c.l.b16 %v4820
        %v5518 = vunpack.c.h.b16 %v4820
        %v5519 = vunpack.c.l.b16 %v4821
        %v5520 = vunpack.c.h.b16 %v4821
        %v5521 = vunpack.c.l.b16 %v4822
        %v5522 = vunpack.c.l.b16 %v4823
        %v5523 = vunpack.c.h.b16 %v4823
        %v5524 = vunpack.c.l.b16 %v4824
        %v5525 = vunpack.c.h.b16 %v4824
        %v5526 = vunpack.c.l.b16 %v4825
        %v5527 = vunpack.c.h.b16 %v4825
        %v5528 = vunpack.c.l.b16 %v4826
        %v5529 = vunpack.c.l.b16 %v4827
        %v5530 = vunpack.c.h.b16 %v4827
        %v5531 = vunpack.c.l.b16 %v4828
        %v5532 = vunpack.c.h.b16 %v4828
        %v5533 = vunpack.c.l.b16 %v4829
        %v5534 = vunpack.c.h.b16 %v4829
        %v5535 = vunpack.c.l.b16 %v4830
        %v5536 = vunpack.c.l.b16 %v4831
        %v5537 = vunpack.c.h.b16 %v4831
        %v5538 = vunpack.c.l.b16 %v4832
        %v5539 = vunpack.c.h.b16 %v4832
        %v5540 = vunpack.c.l.b16 %v4833
        %v5541 = vunpack.c.h.b16 %v4833
        %v5542 = vunpack.c.l.b16 %v4834
        %v5543 = vunpack.c.l.b16 %v4835
        %v5544 = vunpack.c.h.b16 %v4835
        %v5545 = vunpack.c.l.b16 %v4836
        %v5546 = vunpack.c.h.b16 %v4836
        %v5547 = vunpack.c.l.b16 %v4837
        %v5548 = vunpack.c.h.b16 %v4837
        %v5549 = vunpack.c.l.b16 %v4838
        %v5550 = vunpack.c.l.b16 %v4839
        %v5551 = vunpack.c.h.b16 %v4839
        %v5552 = vunpack.c.l.b16 %v4840
        %v5553 = vunpack.c.h.b16 %v4840
        %v5554 = vunpack.c.l.b16 %v4841
        %v5555 = vunpack.c.h.b16 %v4841
        %v5556 = vunpack.c.l.b16 %v4842
        %v5557 = vunpack.c.l.b16 %v4843
        %v5558 = vunpack.c.h.b16 %v4843
        %v5559 = vunpack.c.l.b16 %v4844
        %v5560 = vunpack.c.h.b16 %v4844
        %v5561 = vunpack.c.l.b16 %v4845
        %v5562 = vunpack.c.h.b16 %v4845
        %v5563 = vunpack.c.l.b16 %v4846
        %v5564 = vunpack.c.l.b16 %v4847
        %v5565 = vunpack.c.h.b16 %v4847
        %v5566 = vunpack.c.l.b16 %v4848
        %v5567 = vunpack.c.h.b16 %v4848
        %v5568 = vunpack.c.l.b16 %v4849
        %v5569 = vunpack.c.h.b16 %v4849
        %v5570 = vunpack.c.l.b16 %v4850
        %v5571 = vunpack.c.l.b16 %v4851
        %v5572 = vunpack.c.h.b16 %v4851
        %v5573 = vunpack.c.l.b16 %v4852
        %v5574 = vunpack.c.h.b16 %v4852
        %v5575 = vunpack.c.l.b16 %v4853
        %v5576 = vunpack.c.h.b16 %v4853
        %v5577 = vunpack.c.l.b16 %v4854
        %v5578 = vunpack.c.l.b16 %v4855
        %v5579 = vunpack.c.h.b16 %v4855
        %v5580 = vunpack.c.l.b16 %v4856
        %v5581 = vunpack.c.h.b16 %v4856
        %v5582 = vunpack.c.l.b16 %v4857
        %v5583 = vunpack.c.h.b16 %v4857
        %v5584 = vunpack.c.l.b16 %v4858
        %v5585 = vunpack.c.l.b16 %v4859
        %v5586 = vunpack.c.h.b16 %v4859
        %v5587 = vunpack.c.l.b16 %v4860
        %v5588 = vunpack.c.h.b16 %v4860
        %v5589 = vunpack.c.l.b16 %v4861
        %v5590 = vunpack.c.h.b16 %v4861
        %v5591 = vunpack.c.l.b16 %v4862
        %v5592 = vunpack.c.l.b16 %v4863
        %v5593 = vunpack.c.h.b16 %v4863
        %v5594 = vunpack.c.l.b16 %v4864
        %v5595 = vunpack.c.h.b16 %v4864
        %v5596 = vunpack.c.l.b16 %v4865
        %v5597 = vunpack.c.h.b16 %v4865
        %v5598 = vunpack.c.l.b16 %v4866
        %v5599 = vunpack.c.l.b16 %v4867
        %v5600 = vunpack.c.h.b16 %v4867
        %v5601 = vunpack.c.l.b16 %v4868
        %v5602 = vunpack.c.h.b16 %v4868
        %v5603 = vunpack.c.l.b16 %v4869
        %v5604 = vunpack.c.h.b16 %v4869
        %v5605 = vunpack.c.l.b16 %v4870
        %v5606 = vunpack.c.l.b16 %v4871
        %v5607 = vunpack.c.h.b16 %v4871
        %v5608 = vunpack.c.l.b16 %v4872
        %v5609 = vunpack.c.h.b16 %v4872
        %v5610 = vunpack.c.l.b16 %v4873
        %v5611 = vunpack.c.h.b16 %v4873
        %v5612 = vunpack.c.l.b16 %v4874
        %v5613 = vunpack.c.l.b16 %v4875
        %v5614 = vunpack.c.h.b16 %v4875
        %v5615 = vunpack.c.l.b16 %v4876
        %v5616 = vunpack.c.h.b16 %v4876
        %v5617 = vunpack.c.l.b16 %v4877
        %v5618 = vunpack.c.h.b16 %v4877
        %v5619 = vunpack.c.l.b16 %v4878
        %v5620 = vpack.c.b16 %v5179, %v5172
        %v5621 = vpack.c.b16 %v5180, %v5173
        %v5622 = vpack.c.b16 %v5181, %v5174
        %v5623 = vpack.c.b16 %v5182, %v5175
        %v5624 = vpack.c.b16 %v5183, %v5176
        %v5625 = vpack.c.b16 %v5184, %v5177
        %v5626 = vpack.c.b16 %v5185, %v5178
        %v5627 = vpack.c.b16 %v5193, %v5186
        %v5628 = vpack.c.b16 %v5194, %v5187
        %v5629 = vpack.c.b16 %v5195, %v5188
        %v5630 = vpack.c.b16 %v5196, %v5189
        %v5631 = vpack.c.b16 %v5197, %v5190
        %v5632 = vpack.c.b16 %v5198, %v5191
        %v5633 = vpack.c.b16 %v5199, %v5192
        %v5634 = vpack.c.b16 %v5207, %v5200
        %v5635 = vpack.c.b16 %v5208, %v5201
        %v5636 = vpack.c.b16 %v5209, %v5202
        %v5637 = vpack.c.b16 %v5210, %v5203
        %v5638 = vpack.c.b16 %v5211, %v5204
        %v5639 = vpack.c.b16 %v5212, %v5205
        %v5640 = vpack.c.b16 %v5213, %v5206
        %v5641 = vpack.c.b16 %v5221, %v5214
        %v5642 = vpack.c.b16 %v5222, %v5215
        %v5643 = vpack.c.b16 %v5223, %v5216
        %v5644 = vpack.c.b16 %v5224, %v5217
        %v5645 = vpack.c.b16 %v5225, %v5218
        %v5646 = vpack.c.b16 %v5226, %v5219
        %v5647 = vpack.c.b16 %v5227, %v5220
        %v5648 = vpack.c.b16 %v5235, %v5228
        %v5649 = vpack.c.b16 %v5236, %v5229
        %v5650 = vpack.c.b16 %v5237, %v5230
        %v5651 = vpack.c.b16 %v5238, %v5231
        %v5652 = vpack.c.b16 %v5239, %v5232
        %v5653 = vpack.c.b16 %v5240, %v5233
        %v5654 = vpack.c.b16 %v5241, %v5234
        %v5655 = vpack.c.b16 %v5249, %v5242
        %v5656 = vpack.c.b16 %v5250, %v5243
        %v5657 = vpack.c.b16 %v5251, %v5244
        %v5658 = vpack.c.b16 %v5252, %v5245
        %v5659 = vpack.c.b16 %v5253, %v5246
        %v5660 = vpack.c.b16 %v5254, %v5247
        %v5661 = vpack.c.b16 %v5255, %v5248
        %v5662 = vpack.c.b16 %v5263, %v5256
        %v5663 = vpack.c.b16 %v5264, %v5257
        %v5664 = vpack.c.b16 %v5265, %v5258
        %v5665 = vpack.c.b16 %v5266, %v5259
        %v5666 = vpack.c.b16 %v5267, %v5260
        %v5667 = vpack.c.b16 %v5268, %v5261
        %v5668 = vpack.c.b16 %v5269, %v5262
        %v5669 = vpack.c.b16 %v5277, %v5270
        %v5670 = vpack.c.b16 %v5278, %v5271
        %v5671 = vpack.c.b16 %v5279, %v5272
        %v5672 = vpack.c.b16 %v5280, %v5273
        %v5673 = vpack.c.b16 %v5281, %v5274
        %v5674 = vpack.c.b16 %v5282, %v5275
        %v5675 = vpack.c.b16 %v5283, %v5276
        %v5676 = vpack.c.b16 %v5291, %v5284
        %v5677 = vpack.c.b16 %v5292, %v5285
        %v5678 = vpack.c.b16 %v5293, %v5286
        %v5679 = vpack.c.b16 %v5294, %v5287
        %v5680 = vpack.c.b16 %v5295, %v5288
        %v5681 = vpack.c.b16 %v5296, %v5289
        %v5682 = vpack.c.b16 %v5297, %v5290
        %v5683 = vpack.c.b16 %v5305, %v5298
        %v5684 = vpack.c.b16 %v5306, %v5299
        %v5685 = vpack.c.b16 %v5307, %v5300
        %v5686 = vpack.c.b16 %v5308, %v5301
        %v5687 = vpack.c.b16 %v5309, %v5302
        %v5688 = vpack.c.b16 %v5310, %v5303
        %v5689 = vpack.c.b16 %v5311, %v5304
        %v5690 = vpack.c.b16 %v5319, %v5312
        %v5691 = vpack.c.b16 %v5320, %v5313
        %v5692 = vpack.c.b16 %v5321, %v5314
        %v5693 = vpack.c.b16 %v5322, %v5315
        %v5694 = vpack.c.b16 %v5323, %v5316
        %v5695 = vpack.c.b16 %v5324, %v5317
        %v5696 = vpack.c.b16 %v5325, %v5318
        %v5697 = vpack.c.b16 %v5333, %v5326
        %v5698 = vpack.c.b16 %v5334, %v5327
        %v5699 = vpack.c.b16 %v5335, %v5328
        %v5700 = vpack.c.b16 %v5336, %v5329
        %v5701 = vpack.c.b16 %v5337, %v5330
        %v5702 = vpack.c.b16 %v5338, %v5331
        %v5703 = vpack.c.b16 %v5339, %v5332
        %v5704 = vpack.c.b16 %v5347, %v5340
        %v5705 = vpack.c.b16 %v5348, %v5341
        %v5706 = vpack.c.b16 %v5349, %v5342
        %v5707 = vpack.c.b16 %v5350, %v5343
        %v5708 = vpack.c.b16 %v5351, %v5344
        %v5709 = vpack.c.b16 %v5352, %v5345
        %v5710 = vpack.c.b16 %v5353, %v5346
        %v5711 = vpack.c.b16 %v5361, %v5354
        %v5712 = vpack.c.b16 %v5362, %v5355
        %v5713 = vpack.c.b16 %v5363, %v5356
        %v5714 = vpack.c.b16 %v5364, %v5357
        %v5715 = vpack.c.b16 %v5365, %v5358
        %v5716 = vpack.c.b16 %v5366, %v5359
        %v5717 = vpack.c.b16 %v5367, %v5360
        %v5718 = vpack.c.b16 %v5375, %v5368
        %v5719 = vpack.c.b16 %v5376, %v5369
        %v5720 = vpack.c.b16 %v5377, %v5370
        %v5721 = vpack.c.b16 %v5378, %v5371
        %v5722 = vpack.c.b16 %v5379, %v5372
        %v5723 = vpack.c.b16 %v5380, %v5373
        %v5724 = vpack.c.b16 %v5381, %v5374
        %v5725 = vpack.c.b16 %v5389, %v5382
        %v5726 = vpack.c.b16 %v5390, %v5383
        %v5727 = vpack.c.b16 %v5391, %v5384
        %v5728 = vpack.c.b16 %v5392, %v5385
        %v5729 = vpack.c.b16 %v5393, %v5386
        %v5730 = vpack.c.b16 %v5394, %v5387
        %v5731 = vpack.c.b16 %v5395, %v5388
        %v5732 = vpack.c.b16 %v5403, %v5396
        %v5733 = vpack.c.b16 %v5404, %v5397
        %v5734 = vpack.c.b16 %v5405, %v5398
        %v5735 = vpack.c.b16 %v5406, %v5399
        %v5736 = vpack.c.b16 %v5407, %v5400
        %v5737 = vpack.c.b16 %v5408, %v5401
        %v5738 = vpack.c.b16 %v5409, %v5402
        %v5739 = vpack.c.b16 %v5417, %v5410
        %v5740 = vpack.c.b16 %v5418, %v5411
        %v5741 = vpack.c.b16 %v5419, %v5412
        %v5742 = vpack.c.b16 %v5420, %v5413
        %v5743 = vpack.c.b16 %v5421, %v5414
        %v5744 = vpack.c.b16 %v5422, %v5415
        %v5745 = vpack.c.b16 %v5423, %v5416
        %v5746 = vpack.c.b16 %v5431, %v5424
        %v5747 = vpack.c.b16 %v5432, %v5425
        %v5748 = vpack.c.b16 %v5433, %v5426
        %v5749 = vpack.c.b16 %v5434, %v5427
        %v5750 = vpack.c.b16 %v5435, %v5428
        %v5751 = vpack.c.b16 %v5436, %v5429
        %v5752 = vpack.c.b16 %v5437, %v5430
        %v5753 = vpack.c.b16 %v5445, %v5438
        %v5754 = vpack.c.b16 %v5446, %v5439
        %v5755 = vpack.c.b16 %v5447, %v5440
        %v5756 = vpack.c.b16 %v5448, %v5441
        %v5757 = vpack.c.b16 %v5449, %v5442
        %v5758 = vpack.c.b16 %v5450, %v5443
        %v5759 = vpack.c.b16 %v5451, %v5444
        %v5760 = vpack.c.b16 %v5459, %v5452
        %v5761 = vpack.c.b16 %v5460, %v5453
        %v5762 = vpack.c.b16 %v5461, %v5454
        %v5763 = vpack.c.b16 %v5462, %v5455
        %v5764 = vpack.c.b16 %v5463, %v5456
        %v5765 = vpack.c.b16 %v5464, %v5457
        %v5766 = vpack.c.b16 %v5465, %v5458
        %v5767 = vpack.c.b16 %v5473, %v5466
        %v5768 = vpack.c.b16 %v5474, %v5467
        %v5769 = vpack.c.b16 %v5475, %v5468
        %v5770 = vpack.c.b16 %v5476, %v5469
        %v5771 = vpack.c.b16 %v5477, %v5470
        %v5772 = vpack.c.b16 %v5478, %v5471
        %v5773 = vpack.c.b16 %v5479, %v5472
        %v5774 = vpack.c.b16 %v5487, %v5480
        %v5775 = vpack.c.b16 %v5488, %v5481
        %v5776 = vpack.c.b16 %v5489, %v5482
        %v5777 = vpack.c.b16 %v5490, %v5483
        %v5778 = vpack.c.b16 %v5491, %v5484
        %v5779 = vpack.c.b16 %v5492, %v5485
        %v5780 = vpack.c.b16 %v5493, %v5486
        %v5781 = vpack.c.b16 %v5501, %v5494
        %v5782 = vpack.c.b16 %v5502, %v5495
        %v5783 = vpack.c.b16 %v5503, %v5496
        %v5784 = vpack.c.b16 %v5504, %v5497
        %v5785 = vpack.c.b16 %v5505, %v5498
        %v5786 = vpack.c.b16 %v5506, %v5499
        %v5787 = vpack.c.b16 %v5507, %v5500
        %v5788 = vpack.c.b16 %v5515, %v5508
        %v5789 = vpack.c.b16 %v5516, %v5509
        %v5790 = vpack.c.b16 %v5517, %v5510
        %v5791 = vpack.c.b16 %v5518, %v5511
        %v5792 = vpack.c.b16 %v5519, %v5512
        %v5793 = vpack.c.b16 %v5520, %v5513
        %v5794 = vpack.c.b16 %v5521, %v5514
        %v5795 = vpack.c.b16 %v5529, %v5522
        %v5796 = vpack.c.b16 %v5530, %v5523
        %v5797 = vpack.c.b16 %v5531, %v5524
        %v5798 = vpack.c.b16 %v5532, %v5525
        %v5799 = vpack.c.b16 %v5533, %v5526
        %v5800 = vpack.c.b16 %v5534, %v5527
        %v5801 = vpack.c.b16 %v5535, %v5528
        %v5802 = vpack.c.b16 %v5543, %v5536
        %v5803 = vpack.c.b16 %v5544, %v5537
        %v5804 = vpack.c.b16 %v5545, %v5538
        %v5805 = vpack.c.b16 %v5546, %v5539
        %v5806 = vpack.c.b16 %v5547, %v5540
        %v5807 = vpack.c.b16 %v5548, %v5541
        %v5808 = vpack.c.b16 %v5549, %v5542
        %v5809 = vpack.c.b16 %v5557, %v5550
        %v5810 = vpack.c.b16 %v5558, %v5551
        %v5811 = vpack.c.b16 %v5559, %v5552
        %v5812 = vpack.c.b16 %v5560, %v5553
        %v5813 = vpack.c.b16 %v5561, %v5554
        %v5814 = vpack.c.b16 %v5562, %v5555
        %v5815 = vpack.c.b16 %v5563, %v5556
        %v5816 = vpack.c.b16 %v5571, %v5564
        %v5817 = vpack.c.b16 %v5572, %v5565
        %v5818 = vpack.c.b16 %v5573, %v5566
        %v5819 = vpack.c.b16 %v5574, %v5567
        %v5820 = vpack.c.b16 %v5575, %v5568
        %v5821 = vpack.c.b16 %v5576, %v5569
        %v5822 = vpack.c.b16 %v5577, %v5570
        %v5823 = vpack.c.b16 %v5585, %v5578
        %v5824 = vpack.c.b16 %v5586, %v5579
        %v5825 = vpack.c.b16 %v5587, %v5580
        %v5826 = vpack.c.b16 %v5588, %v5581
        %v5827 = vpack.c.b16 %v5589, %v5582
        %v5828 = vpack.c.b16 %v5590, %v5583
        %v5829 = vpack.c.b16 %v5591, %v5584
        %v5830 = vpack.c.b16 %v5599, %v5592
        %v5831 = vpack.c.b16 %v5600, %v5593
        %v5832 = vpack.c.b16 %v5601, %v5594
        %v5833 = vpack.c.b16 %v5602, %v5595
        %v5834 = vpack.c.b16 %v5603, %v5596
        %v5835 = vpack.c.b16 %v5604, %v5597
        %v5836 = vpack.c.b16 %v5605, %v5598
        %v5837 = vpack.c.b16 %v5613, %v5606
        %v5838 = vpack.c.b16 %v5614, %v5607
        %v5839 = vpack.c.b16 %v5615, %v5608
        %v5840 = vpack.c.b16 %v5616, %v5609
        %v5841 = vpack.c.b16 %v5617, %v5610
        %v5842 = vpack.c.b16 %v5618, %v5611
        %v5843 = vpack.c.b16 %v5619, %v5612
        %6068 = vmatprep.subr.bf16.mxu0 %v5670
        %6069 = vmatpush1.bf16.msra.mxu0 %v5669
        %6070 = vmatprep.subr.bf16.mxu0 %v5663
        %6071 = vmatpush1.bf16.msra.mxu0 %v5662
        %6072 = vmatprep.subr.bf16.mxu0 %v5656
        %6073 = vmatpush1.bf16.msra.mxu0 %v5655
        %6074 = vmatprep.subr.bf16.mxu0 %v5649
        %6075 = vmatpush1.bf16.msra.mxu0 %v5648
        %6076 = vmatprep.subr.bf16.mxu0 %v5642
        %6077 = vmatpush1.bf16.msra.mxu0 %v5641
        %6078 = vmatprep.subr.bf16.mxu0 %v5635
        %6079 = vmatpush1.bf16.msra.mxu0 %v5634
        %6080 = vmatprep.subr.bf16.mxu0 %v5628
        %6081 = vmatpush1.bf16.msra.mxu0 %v5627
        %6082 = vmatprep.subr.bf16.mxu0 %v5621
        %6083 = vmatpush1.bf16.msra.mxu0 %v5620
        %6084 = vmatprep.subr.bf16.mxu0 %v5726
        %6085 = vmatpush2.bf16.msra.mxu0 %v5725
        %6086 = vmatprep.subr.bf16.mxu0 %v5719
        %6087 = vmatpush2.bf16.msra.mxu0 %v5718
        %6088 = vmatprep.subr.bf16.mxu0 %v5712
        %6089 = vmatpush2.bf16.msra.mxu0 %v5711
        %6090 = vmatprep.subr.bf16.mxu0 %v5705
        %6091 = vmatpush2.bf16.msra.mxu0 %v5704
        %6092 = vmatprep.subr.bf16.mxu0 %v5698
        %6093 = vmatpush2.bf16.msra.mxu0 %v5697
        %6094 = vmatprep.subr.bf16.mxu0 %v5691
        %6095 = vmatpush2.bf16.msra.mxu0 %v5690
        %6096 = vmatprep.subr.bf16.mxu0 %v5684
        %6097 = vmatpush2.bf16.msra.mxu0 %v5683
        %6098 = vmatprep.subr.bf16.mxu0 %v5677
        %6099 = vmatpush2.bf16.msra.mxu0 %v5676
        %6100 = vmatprep.mubr.bf16.mxu0 %v4616
        %6101 = vmatmul.mubr.bf16.gmra.mxu0 %v4615
        %v6102 = vpop.f32.mrf.mxu0
        %v6103 = vadd.f32 %v4884, %v6102
        %v6104 = vpop.f32.mrf.mxu0
        %v6105 = vadd.f32 %v4888, %v6104
        %v6106 = vpop.f32.mrf.mxu0
        %v6107 = vadd.f32 %v4884, %v6106
        %v6108 = vpop.f32.mrf.mxu0
        %v6109 = vadd.f32 %v4888, %v6108
        %6110 = vmatprep.mubr.bf16.mxu0 %v4620
        %6111 = vmatmul.mubr.bf16.gmra.mxu0 %v4619
        %v6112 = vpop.f32.mrf.mxu0
        %v6113 = vadd.f32 %v4884, %v6112
        %v6114 = vpop.f32.mrf.mxu0
        %v6115 = vadd.f32 %v4888, %v6114
        %v6116 = vpop.f32.mrf.mxu0
        %v6117 = vadd.f32 %v4884, %v6116
        %v6118 = vpop.f32.mrf.mxu0
        %v6119 = vadd.f32 %v4888, %v6118
        %6120 = vdwg.mxu0
        %6121 = vmatprep.subr.bf16.mxu0 %v5782
        %6122 = vmatpush1.bf16.msra.mxu0 %v5781
        %6123 = vmatprep.subr.bf16.mxu0 %v5775
        %6124 = vmatpush1.bf16.msra.mxu0 %v5774
        %6125 = vmatprep.subr.bf16.mxu0 %v5768
        %6126 = vmatpush1.bf16.msra.mxu0 %v5767
        %6127 = vmatprep.subr.bf16.mxu0 %v5761
        %6128 = vmatpush1.bf16.msra.mxu0 %v5760
        %6129 = vmatprep.subr.bf16.mxu0 %v5754
        %6130 = vmatpush1.bf16.msra.mxu0 %v5753
        %6131 = vmatprep.subr.bf16.mxu0 %v5747
        %6132 = vmatpush1.bf16.msra.mxu0 %v5746
        %6133 = vmatprep.subr.bf16.mxu0 %v5740
        %6134 = vmatpush1.bf16.msra.mxu0 %v5739
        %6135 = vmatprep.subr.bf16.mxu0 %v5733
        %6136 = vmatpush1.bf16.msra.mxu0 %v5732
        %6137 = vmatprep.subr.bf16.mxu0 %v5838
        %6138 = vmatpush2.bf16.msra.mxu0 %v5837
        %6139 = vmatprep.subr.bf16.mxu0 %v5831
        %6140 = vmatpush2.bf16.msra.mxu0 %v5830
        %6141 = vmatprep.subr.bf16.mxu0 %v5824
        %6142 = vmatpush2.bf16.msra.mxu0 %v5823
        %6143 = vmatprep.subr.bf16.mxu0 %v5817
        %6144 = vmatpush2.bf16.msra.mxu0 %v5816
        %6145 = vmatprep.subr.bf16.mxu0 %v5810
        %6146 = vmatpush2.bf16.msra.mxu0 %v5809
        %6147 = vmatprep.subr.bf16.mxu0 %v5803
        %6148 = vmatpush2.bf16.msra.mxu0 %v5802
        %6149 = vmatprep.subr.bf16.mxu0 %v5796
        %6150 = vmatpush2.bf16.msra.mxu0 %v5795
        %6151 = vmatprep.subr.bf16.mxu0 %v5789
        %6152 = vmatpush2.bf16.msra.mxu0 %v5788
        %6153 = vmatprep.mubr.bf16.mxu0 %v4618
        %6154 = vmatmul.mubr.bf16.gmra.mxu0 %v4617
        %v6155 = vpop.f32.mrf.mxu0
        %v6156 = vadd.f32 %v6103, %v6155
        %v6157 = vpop.f32.mrf.mxu0
        %v6158 = vadd.f32 %v6105, %v6157
        %v6159 = vpop.f32.mrf.mxu0
        %v6160 = vadd.f32 %v6107, %v6159
        %v6161 = vpop.f32.mrf.mxu0
        %v6162 = vadd.f32 %v6109, %v6161
        %6163 = vmatprep.mubr.bf16.mxu0 %v4622
        %6164 = vmatmul.mubr.bf16.gmra.mxu0 %v4621
        %v6165 = vpop.f32.mrf.mxu0
        %v6166 = vadd.f32 %v6113, %v6165
        %v6167 = vpop.f32.mrf.mxu0
        %v6168 = vadd.f32 %v6115, %v6167
        %v6169 = vpop.f32.mrf.mxu0
        %v6170 = vadd.f32 %v6117, %v6169
        %v6171 = vpop.f32.mrf.mxu0
        %v6172 = vadd.f32 %v6119, %v6171
        %6173 = vdwg.mxu0
        %6174 = vmatprep.subr.bf16.mxu0 %v5672
        %6175 = vmatpush1.bf16.msra.mxu0 %v5671
        %6176 = vmatprep.subr.bf16.mxu0 %v5665
        %6177 = vmatpush1.bf16.msra.mxu0 %v5664
        %6178 = vmatprep.subr.bf16.mxu0 %v5658
        %6179 = vmatpush1.bf16.msra.mxu0 %v5657
        %6180 = vmatprep.subr.bf16.mxu0 %v5651
        %6181 = vmatpush1.bf16.msra.mxu0 %v5650
        %6182 = vmatprep.subr.bf16.mxu0 %v5644
        %6183 = vmatpush1.bf16.msra.mxu0 %v5643
        %6184 = vmatprep.subr.bf16.mxu0 %v5637
        %6185 = vmatpush1.bf16.msra.mxu0 %v5636
        %6186 = vmatprep.subr.bf16.mxu0 %v5630
        %6187 = vmatpush1.bf16.msra.mxu0 %v5629
        %6188 = vmatprep.subr.bf16.mxu0 %v5623
        %6189 = vmatpush1.bf16.msra.mxu0 %v5622
        %6190 = vmatprep.subr.bf16.mxu0 %v5728
        %6191 = vmatpush2.bf16.msra.mxu0 %v5727
        %6192 = vmatprep.subr.bf16.mxu0 %v5721
        %6193 = vmatpush2.bf16.msra.mxu0 %v5720
        %6194 = vmatprep.subr.bf16.mxu0 %v5714
        %6195 = vmatpush2.bf16.msra.mxu0 %v5713
        %6196 = vmatprep.subr.bf16.mxu0 %v5707
        %6197 = vmatpush2.bf16.msra.mxu0 %v5706
        %6198 = vmatprep.subr.bf16.mxu0 %v5700
        %6199 = vmatpush2.bf16.msra.mxu0 %v5699
        %6200 = vmatprep.subr.bf16.mxu0 %v5693
        %6201 = vmatpush2.bf16.msra.mxu0 %v5692
        %6202 = vmatprep.subr.bf16.mxu0 %v5686
        %6203 = vmatpush2.bf16.msra.mxu0 %v5685
        %6204 = vmatprep.subr.bf16.mxu0 %v5679
        %6205 = vmatpush2.bf16.msra.mxu0 %v5678
        %6206 = vmatprep.mubr.bf16.mxu0 %v4616
        %6207 = vmatmul.mubr.bf16.gmra.mxu0 %v4615
        %v6208 = vpop.f32.mrf.mxu0
        %v6209 = vadd.f32 %v4892, %v6208
        %v6210 = vpop.f32.mrf.mxu0
        %v6211 = vadd.f32 %v4896, %v6210
        %v6212 = vpop.f32.mrf.mxu0
        %v6213 = vadd.f32 %v4892, %v6212
        %v6214 = vpop.f32.mrf.mxu0
        %v6215 = vadd.f32 %v4896, %v6214
        %6216 = vmatprep.mubr.bf16.mxu0 %v4620
        %6217 = vmatmul.mubr.bf16.gmra.mxu0 %v4619
        %v6218 = vpop.f32.mrf.mxu0
        %v6219 = vadd.f32 %v4892, %v6218
        %v6220 = vpop.f32.mrf.mxu0
        %v6221 = vadd.f32 %v4896, %v6220
        %v6222 = vpop.f32.mrf.mxu0
        %v6223 = vadd.f32 %v4892, %v6222
        %v6224 = vpop.f32.mrf.mxu0
        %v6225 = vadd.f32 %v4896, %v6224
        %6226 = vdwg.mxu0
        %6227 = vmatprep.subr.bf16.mxu0 %v5784
        %6228 = vmatpush1.bf16.msra.mxu0 %v5783
        %6229 = vmatprep.subr.bf16.mxu0 %v5777
        %6230 = vmatpush1.bf16.msra.mxu0 %v5776
        %6231 = vmatprep.subr.bf16.mxu0 %v5770
        %6232 = vmatpush1.bf16.msra.mxu0 %v5769
        %6233 = vmatprep.subr.bf16.mxu0 %v5763
        %6234 = vmatpush1.bf16.msra.mxu0 %v5762
        %6235 = vmatprep.subr.bf16.mxu0 %v5756
        %6236 = vmatpush1.bf16.msra.mxu0 %v5755
        %6237 = vmatprep.subr.bf16.mxu0 %v5749
        %6238 = vmatpush1.bf16.msra.mxu0 %v5748
        %6239 = vmatprep.subr.bf16.mxu0 %v5742
        %6240 = vmatpush1.bf16.msra.mxu0 %v5741
        %6241 = vmatprep.subr.bf16.mxu0 %v5735
        %6242 = vmatpush1.bf16.msra.mxu0 %v5734
        %6243 = vmatprep.subr.bf16.mxu0 %v5840
        %6244 = vmatpush2.bf16.msra.mxu0 %v5839
        %6245 = vmatprep.subr.bf16.mxu0 %v5833
        %6246 = vmatpush2.bf16.msra.mxu0 %v5832
        %6247 = vmatprep.subr.bf16.mxu0 %v5826
        %6248 = vmatpush2.bf16.msra.mxu0 %v5825
        %6249 = vmatprep.subr.bf16.mxu0 %v5819
        %6250 = vmatpush2.bf16.msra.mxu0 %v5818
        %6251 = vmatprep.subr.bf16.mxu0 %v5812
        %6252 = vmatpush2.bf16.msra.mxu0 %v5811
        %6253 = vmatprep.subr.bf16.mxu0 %v5805
        %6254 = vmatpush2.bf16.msra.mxu0 %v5804
        %6255 = vmatprep.subr.bf16.mxu0 %v5798
        %6256 = vmatpush2.bf16.msra.mxu0 %v5797
        %6257 = vmatprep.subr.bf16.mxu0 %v5791
        %6258 = vmatpush2.bf16.msra.mxu0 %v5790
        %6259 = vmatprep.mubr.bf16.mxu0 %v4618
        %6260 = vmatmul.mubr.bf16.gmra.mxu0 %v4617
        %v6261 = vpop.f32.mrf.mxu0
        %v6262 = vadd.f32 %v6209, %v6261
        %v6263 = vpop.f32.mrf.mxu0
        %v6264 = vadd.f32 %v6211, %v6263
        %v6265 = vpop.f32.mrf.mxu0
        %v6266 = vadd.f32 %v6213, %v6265
        %v6267 = vpop.f32.mrf.mxu0
        %v6268 = vadd.f32 %v6215, %v6267
        %6269 = vmatprep.mubr.bf16.mxu0 %v4622
        %6270 = vmatmul.mubr.bf16.gmra.mxu0 %v4621
        %v6271 = vpop.f32.mrf.mxu0
        %v6272 = vadd.f32 %v6219, %v6271
        %v6273 = vpop.f32.mrf.mxu0
        %v6274 = vadd.f32 %v6221, %v6273
        %v6275 = vpop.f32.mrf.mxu0
        %v6276 = vadd.f32 %v6223, %v6275
        %v6277 = vpop.f32.mrf.mxu0
        %v6278 = vadd.f32 %v6225, %v6277
        %6279 = vdwg.mxu0
        %6280 = vmatprep.subr.bf16.mxu0 %v5674
        %6281 = vmatpush1.bf16.msra.mxu0 %v5673
        %6282 = vmatprep.subr.bf16.mxu0 %v5667
        %6283 = vmatpush1.bf16.msra.mxu0 %v5666
        %6284 = vmatprep.subr.bf16.mxu0 %v5660
        %6285 = vmatpush1.bf16.msra.mxu0 %v5659
        %6286 = vmatprep.subr.bf16.mxu0 %v5653
        %6287 = vmatpush1.bf16.msra.mxu0 %v5652
        %6288 = vmatprep.subr.bf16.mxu0 %v5646
        %6289 = vmatpush1.bf16.msra.mxu0 %v5645
        %6290 = vmatprep.subr.bf16.mxu0 %v5639
        %6291 = vmatpush1.bf16.msra.mxu0 %v5638
        %6292 = vmatprep.subr.bf16.mxu0 %v5632
        %6293 = vmatpush1.bf16.msra.mxu0 %v5631
        %6294 = vmatprep.subr.bf16.mxu0 %v5625
        %6295 = vmatpush1.bf16.msra.mxu0 %v5624
        %6296 = vmatprep.subr.bf16.mxu0 %v5730
        %6297 = vmatpush2.bf16.msra.mxu0 %v5729
        %6298 = vmatprep.subr.bf16.mxu0 %v5723
        %6299 = vmatpush2.bf16.msra.mxu0 %v5722
        %6300 = vmatprep.subr.bf16.mxu0 %v5716
        %6301 = vmatpush2.bf16.msra.mxu0 %v5715
        %6302 = vmatprep.subr.bf16.mxu0 %v5709
        %6303 = vmatpush2.bf16.msra.mxu0 %v5708
        %6304 = vmatprep.subr.bf16.mxu0 %v5702
        %6305 = vmatpush2.bf16.msra.mxu0 %v5701
        %6306 = vmatprep.subr.bf16.mxu0 %v5695
        %6307 = vmatpush2.bf16.msra.mxu0 %v5694
        %6308 = vmatprep.subr.bf16.mxu0 %v5688
        %6309 = vmatpush2.bf16.msra.mxu0 %v5687
        %6310 = vmatprep.subr.bf16.mxu0 %v5681
        %6311 = vmatpush2.bf16.msra.mxu0 %v5680
        %6312 = vmatprep.mubr.bf16.mxu0 %v4616
        %6313 = vmatmul.mubr.bf16.gmra.mxu0 %v4615
        %v6314 = vpop.f32.mrf.mxu0
        %v6315 = vadd.f32 %v4900, %v6314
        %v6316 = vpop.f32.mrf.mxu0
        %v6317 = vadd.f32 %v4904, %v6316
        %v6318 = vpop.f32.mrf.mxu0
        %v6319 = vadd.f32 %v4900, %v6318
        %v6320 = vpop.f32.mrf.mxu0
        %v6321 = vadd.f32 %v4904, %v6320
        %6322 = vmatprep.mubr.bf16.mxu0 %v4620
        %6323 = vmatmul.mubr.bf16.gmra.mxu0 %v4619
        %v6324 = vpop.f32.mrf.mxu0
        %v6325 = vadd.f32 %v4900, %v6324
        %v6326 = vpop.f32.mrf.mxu0
        %v6327 = vadd.f32 %v4904, %v6326
        %v6328 = vpop.f32.mrf.mxu0
        %v6329 = vadd.f32 %v4900, %v6328
        %v6330 = vpop.f32.mrf.mxu0
        %v6331 = vadd.f32 %v4904, %v6330
        %6332 = vdwg.mxu0
        %6333 = vmatprep.subr.bf16.mxu0 %v5786
        %6334 = vmatpush1.bf16.msra.mxu0 %v5785
        %6335 = vmatprep.subr.bf16.mxu0 %v5779
        %6336 = vmatpush1.bf16.msra.mxu0 %v5778
        %6337 = vmatprep.subr.bf16.mxu0 %v5772
        %6338 = vmatpush1.bf16.msra.mxu0 %v5771
        %6339 = vmatprep.subr.bf16.mxu0 %v5765
        %6340 = vmatpush1.bf16.msra.mxu0 %v5764
        %6341 = vmatprep.subr.bf16.mxu0 %v5758
        %6342 = vmatpush1.bf16.msra.mxu0 %v5757
        %6343 = vmatprep.subr.bf16.mxu0 %v5751
        %6344 = vmatpush1.bf16.msra.mxu0 %v5750
        %6345 = vmatprep.subr.bf16.mxu0 %v5744
        %6346 = vmatpush1.bf16.msra.mxu0 %v5743
        %6347 = vmatprep.subr.bf16.mxu0 %v5737
        %6348 = vmatpush1.bf16.msra.mxu0 %v5736
        %6349 = vmatprep.subr.bf16.mxu0 %v5842
        %6350 = vmatpush2.bf16.msra.mxu0 %v5841
        %6351 = vmatprep.subr.bf16.mxu0 %v5835
        %6352 = vmatpush2.bf16.msra.mxu0 %v5834
        %6353 = vmatprep.subr.bf16.mxu0 %v5828
        %6354 = vmatpush2.bf16.msra.mxu0 %v5827
        %6355 = vmatprep.subr.bf16.mxu0 %v5821
        %6356 = vmatpush2.bf16.msra.mxu0 %v5820
        %6357 = vmatprep.subr.bf16.mxu0 %v5814
        %6358 = vmatpush2.bf16.msra.mxu0 %v5813
        %6359 = vmatprep.subr.bf16.mxu0 %v5807
        %6360 = vmatpush2.bf16.msra.mxu0 %v5806
        %6361 = vmatprep.subr.bf16.mxu0 %v5800
        %6362 = vmatpush2.bf16.msra.mxu0 %v5799
        %6363 = vmatprep.subr.bf16.mxu0 %v5793
        %6364 = vmatpush2.bf16.msra.mxu0 %v5792
        %6365 = vmatprep.mubr.bf16.mxu0 %v4618
        %6366 = vmatmul.mubr.bf16.gmra.mxu0 %v4617
        %v6367 = vpop.f32.mrf.mxu0
        %v6368 = vadd.f32 %v6315, %v6367
        %v6369 = vpop.f32.mrf.mxu0
        %v6370 = vadd.f32 %v6317, %v6369
        %v6371 = vpop.f32.mrf.mxu0
        %v6372 = vadd.f32 %v6319, %v6371
        %v6373 = vpop.f32.mrf.mxu0
        %v6374 = vadd.f32 %v6321, %v6373
        %6375 = vmatprep.mubr.bf16.mxu0 %v4622
        %6376 = vmatmul.mubr.bf16.gmra.mxu0 %v4621
        %v6377 = vpop.f32.mrf.mxu0
        %v6378 = vadd.f32 %v6325, %v6377
        %v6379 = vpop.f32.mrf.mxu0
        %v6380 = vadd.f32 %v6327, %v6379
        %v6381 = vpop.f32.mrf.mxu0
        %v6382 = vadd.f32 %v6329, %v6381
        %v6383 = vpop.f32.mrf.mxu0
        %v6384 = vadd.f32 %v6331, %v6383
        %6385 = vdwg.mxu0
        %6386 = vmatprep.subr.bf16.mxu0 0
        %6387 = vmatpush1.bf16.msra.mxu0 %v5675
        %6388 = vmatprep.subr.bf16.mxu0 0
        %6389 = vmatpush1.bf16.msra.mxu0 %v5668
        %6390 = vmatprep.subr.bf16.mxu0 0
        %6391 = vmatpush1.bf16.msra.mxu0 %v5661
        %6392 = vmatprep.subr.bf16.mxu0 0
        %6393 = vmatpush1.bf16.msra.mxu0 %v5654
        %6394 = vmatprep.subr.bf16.mxu0 0
        %6395 = vmatpush1.bf16.msra.mxu0 %v5647
        %6396 = vmatprep.subr.bf16.mxu0 0
        %6397 = vmatpush1.bf16.msra.mxu0 %v5640
        %6398 = vmatprep.subr.bf16.mxu0 0
        %6399 = vmatpush1.bf16.msra.mxu0 %v5633
        %6400 = vmatprep.subr.bf16.mxu0 0
        %6401 = vmatpush1.bf16.msra.mxu0 %v5626
        %6402 = vmatprep.subr.bf16.mxu0 0
        %6403 = vmatpush2.bf16.msra.mxu0 %v5731
        %6404 = vmatprep.subr.bf16.mxu0 0
        %6405 = vmatpush2.bf16.msra.mxu0 %v5724
        %6406 = vmatprep.subr.bf16.mxu0 0
        %6407 = vmatpush2.bf16.msra.mxu0 %v5717
        %6408 = vmatprep.subr.bf16.mxu0 0
        %6409 = vmatpush2.bf16.msra.mxu0 %v5710
        %6410 = vmatprep.subr.bf16.mxu0 0
        %6411 = vmatpush2.bf16.msra.mxu0 %v5703
        %6412 = vmatprep.subr.bf16.mxu0 0
        %6413 = vmatpush2.bf16.msra.mxu0 %v5696
        %6414 = vmatprep.subr.bf16.mxu0 0
        %6415 = vmatpush2.bf16.msra.mxu0 %v5689
        %6416 = vmatprep.subr.bf16.mxu0 0
        %6417 = vmatpush2.bf16.msra.mxu0 %v5682
        %6418 = vmatprep.mubr.bf16.mxu0 %v4616
        %6419 = vmatmul.mubr.bf16.gmra.mxu0 %v4615
        %v6420 = vpop.f32.mrf.mxu0
        %v6421 = vadd.f32 %v4908, %v6420
        %v6422 = vpop.f32.mrf.mxu0
        %v6423 = vpop.f32.mrf.mxu0
        %v6424 = vadd.f32 %v4908, %v6423
        %v6425 = vpop.f32.mrf.mxu0
        %6426 = vmatprep.mubr.bf16.mxu0 %v4620
        %6427 = vmatmul.mubr.bf16.gmra.mxu0 %v4619
        %v6428 = vpop.f32.mrf.mxu0
        %v6429 = vadd.f32 %v4908, %v6428
        %v6430 = vpop.f32.mrf.mxu0
        %v6431 = vpop.f32.mrf.mxu0
        %v6432 = vadd.f32 %v4908, %v6431
        %v6433 = vpop.f32.mrf.mxu0
        %6434 = vdwg.mxu0
        %6435 = vmatprep.subr.bf16.mxu0 0
        %6436 = vmatpush1.bf16.msra.mxu0 %v5787
        %6437 = vmatprep.subr.bf16.mxu0 0
        %6438 = vmatpush1.bf16.msra.mxu0 %v5780
        %6439 = vmatprep.subr.bf16.mxu0 0
        %6440 = vmatpush1.bf16.msra.mxu0 %v5773
        %6441 = vmatprep.subr.bf16.mxu0 0
        %6442 = vmatpush1.bf16.msra.mxu0 %v5766
        %6443 = vmatprep.subr.bf16.mxu0 0
        %6444 = vmatpush1.bf16.msra.mxu0 %v5759
        %6445 = vmatprep.subr.bf16.mxu0 0
        %6446 = vmatpush1.bf16.msra.mxu0 %v5752
        %6447 = vmatprep.subr.bf16.mxu0 0
        %6448 = vmatpush1.bf16.msra.mxu0 %v5745
        %6449 = vmatprep.subr.bf16.mxu0 0
        %6450 = vmatpush1.bf16.msra.mxu0 %v5738
        %6451 = vmatprep.subr.bf16.mxu0 0
        %6452 = vmatpush2.bf16.msra.mxu0 %v5843
        %6453 = vmatprep.subr.bf16.mxu0 0
        %6454 = vmatpush2.bf16.msra.mxu0 %v5836
        %6455 = vmatprep.subr.bf16.mxu0 0
        %6456 = vmatpush2.bf16.msra.mxu0 %v5829
        %6457 = vmatprep.subr.bf16.mxu0 0
        %6458 = vmatpush2.bf16.msra.mxu0 %v5822
        %6459 = vmatprep.subr.bf16.mxu0 0
        %6460 = vmatpush2.bf16.msra.mxu0 %v5815
        %6461 = vmatprep.subr.bf16.mxu0 0
        %6462 = vmatpush2.bf16.msra.mxu0 %v5808
        %6463 = vmatprep.subr.bf16.mxu0 0
        %6464 = vmatpush2.bf16.msra.mxu0 %v5801
        %6465 = vmatprep.subr.bf16.mxu0 0
        %6466 = vmatpush2.bf16.msra.mxu0 %v5794
        %6467 = vmatprep.mubr.bf16.mxu0 %v4618
        %6468 = vmatmul.mubr.bf16.gmra.mxu0 %v4617
        %v6469 = vpop.f32.mrf.mxu0
        %v6470 = vadd.f32 %v6421, %v6469
        %v6471 = vpop.f32.mrf.mxu0
        %v6472 = vpop.f32.mrf.mxu0
        %v6473 = vadd.f32 %v6424, %v6472
        %v6474 = vpop.f32.mrf.mxu0
        %6475 = vmatprep.mubr.bf16.mxu0 %v4622
        %6476 = vmatmul.mubr.bf16.gmra.mxu0 %v4621
        %v6477 = vpop.f32.mrf.mxu0
        %v6478 = vadd.f32 %v6429, %v6477
        %v6479 = vpop.f32.mrf.mxu0
        %v6480 = vpop.f32.mrf.mxu0
        %v6481 = vadd.f32 %v6432, %v6480
        %v6482 = vpop.f32.mrf.mxu0
        %6483 = vdwg.mxu0
        %v6484 = vxor.u32 %v6156, 2147483648
        %v6485 = vxor.u32 %v6158, 2147483648
        %v6486 = vxor.u32 %v6262, 2147483648
        %v6487 = vxor.u32 %v6264, 2147483648
        %v6488 = vxor.u32 %v6368, 2147483648
        %v6489 = vxor.u32 %v6370, 2147483648
        %v6490 = vxor.u32 %v6470, 2147483648
        %v6491 = vxor.u32 %v6160, 2147483648
        %v6492 = vxor.u32 %v6162, 2147483648
        %v6493 = vxor.u32 %v6266, 2147483648
        %v6494 = vxor.u32 %v6268, 2147483648
        %v6495 = vxor.u32 %v6372, 2147483648
        %v6496 = vxor.u32 %v6374, 2147483648
        %v6497 = vxor.u32 %v6473, 2147483648
        %v6498 = vxor.u32 %v6166, 2147483648
        %v6499 = vxor.u32 %v6168, 2147483648
        %v6500 = vxor.u32 %v6272, 2147483648
        %v6501 = vxor.u32 %v6274, 2147483648
        %v6502 = vxor.u32 %v6378, 2147483648
        %v6503 = vxor.u32 %v6380, 2147483648
        %v6504 = vxor.u32 %v6478, 2147483648
        %v6505 = vxor.u32 %v6170, 2147483648
        %v6506 = vxor.u32 %v6172, 2147483648
        %v6507 = vxor.u32 %v6276, 2147483648
        %v6508 = vxor.u32 %v6278, 2147483648
        %v6509 = vxor.u32 %v6382, 2147483648
        %v6510 = vxor.u32 %v6384, 2147483648
        %v6511 = vxor.u32 %v6481, 2147483648
        %v6512 = vmul.f32 %v6484, 1.442695
        %v6513 = vpow.pop %v6512
        %v6514 = vmul.f32 %v6485, 1.442695
        %v6515 = vpow.pop %v6514
        %v6516 = vmul.f32 %v6486, 1.442695
        %v6517 = vpow.pop %v6516
        %v6518 = vmul.f32 %v6487, 1.442695
        %v6519 = vpow.pop %v6518
        %v6520 = vmul.f32 %v6488, 1.442695
        %v6521 = vpow.pop %v6520
        %v6522 = vmul.f32 %v6489, 1.442695
        %v6523 = vpow.pop %v6522
        %v6524 = vmul.f32 %v6490, 1.442695
        %v6525 = vpow.pop %v6524
        %v6526 = vmul.f32 %v6491, 1.442695
        %v6527 = vpow.pop %v6526
        %v6528 = vmul.f32 %v6492, 1.442695
        %v6529 = vpow.pop %v6528
        %v6530 = vmul.f32 %v6493, 1.442695
        %v6531 = vpow.pop %v6530
        %v6532 = vmul.f32 %v6494, 1.442695
        %v6533 = vpow.pop %v6532
        %v6534 = vmul.f32 %v6495, 1.442695
        %v6535 = vpow.pop %v6534
        %v6536 = vmul.f32 %v6496, 1.442695
        %v6537 = vpow.pop %v6536
        %v6538 = vmul.f32 %v6497, 1.442695
        %v6539 = vpow.pop %v6538
        %v6540 = vmul.f32 %v6498, 1.442695
        %v6541 = vpow.pop %v6540
        %v6542 = vmul.f32 %v6499, 1.442695
        %v6543 = vpow.pop %v6542
        %v6544 = vmul.f32 %v6500, 1.442695
        %v6545 = vpow.pop %v6544
        %v6546 = vmul.f32 %v6501, 1.442695
        %v6547 = vpow.pop %v6546
        %v6548 = vmul.f32 %v6502, 1.442695
        %v6549 = vpow.pop %v6548
        %v6550 = vmul.f32 %v6503, 1.442695
        %v6551 = vpow.pop %v6550
        %v6552 = vmul.f32 %v6504, 1.442695
        %v6553 = vpow.pop %v6552
        %v6554 = vmul.f32 %v6505, 1.442695
        %v6555 = vpow.pop %v6554
        %v6556 = vmul.f32 %v6506, 1.442695
        %v6557 = vpow.pop %v6556
        %v6558 = vmul.f32 %v6507, 1.442695
        %v6559 = vpow.pop %v6558
        %v6560 = vmul.f32 %v6508, 1.442695
        %v6561 = vpow.pop %v6560
        %v6562 = vmul.f32 %v6509, 1.442695
        %v6563 = vpow.pop %v6562
        %v6564 = vmul.f32 %v6510, 1.442695
        %v6565 = vpow.pop %v6564
        %v6566 = vmul.f32 %v6511, 1.442695
        %v6567 = vpow.pop %v6566
        %v6568 = vadd.f32 %v6513, 1.0
        %v6569 = vadd.f32 %v6515, 1.0
        %v6570 = vadd.f32 %v6517, 1.0
        %v6571 = vadd.f32 %v6519, 1.0
        %v6572 = vadd.f32 %v6521, 1.0
        %v6573 = vadd.f32 %v6523, 1.0
        %v6574 = vadd.f32 %v6525, 1.0
        %v6575 = vadd.f32 %v6527, 1.0
        %v6576 = vadd.f32 %v6529, 1.0
        %v6577 = vadd.f32 %v6531, 1.0
        %v6578 = vadd.f32 %v6533, 1.0
        %v6579 = vadd.f32 %v6535, 1.0
        %v6580 = vadd.f32 %v6537, 1.0
        %v6581 = vadd.f32 %v6539, 1.0
        %v6582 = vadd.f32 %v6541, 1.0
        %v6583 = vadd.f32 %v6543, 1.0
        %v6584 = vadd.f32 %v6545, 1.0
        %v6585 = vadd.f32 %v6547, 1.0
        %v6586 = vadd.f32 %v6549, 1.0
        %v6587 = vadd.f32 %v6551, 1.0
        %v6588 = vadd.f32 %v6553, 1.0
        %v6589 = vadd.f32 %v6555, 1.0
        %v6590 = vadd.f32 %v6557, 1.0
        %v6591 = vadd.f32 %v6559, 1.0
        %v6592 = vadd.f32 %v6561, 1.0
        %v6593 = vadd.f32 %v6563, 1.0
        %v6594 = vadd.f32 %v6565, 1.0
        %v6595 = vadd.f32 %v6567, 1.0
        %v6596 = vrcp.pop %v6568
        %v6597 = vmul.f32 1.0, %v6596
        %v6598 = vrcp.pop %v6569
        %v6599 = vmul.f32 1.0, %v6598
        %v6600 = vrcp.pop %v6570
        %v6601 = vmul.f32 1.0, %v6600
        %v6602 = vrcp.pop %v6571
        %v6603 = vmul.f32 1.0, %v6602
        %v6604 = vrcp.pop %v6572
        %v6605 = vmul.f32 1.0, %v6604
        %v6606 = vrcp.pop %v6573
        %v6607 = vmul.f32 1.0, %v6606
        %v6608 = vrcp.pop %v6574
        %v6609 = vmul.f32 1.0, %v6608
        %v6610 = vrcp.pop %v6575
        %v6611 = vmul.f32 1.0, %v6610
        %v6612 = vrcp.pop %v6576
        %v6613 = vmul.f32 1.0, %v6612
        %v6614 = vrcp.pop %v6577
        %v6615 = vmul.f32 1.0, %v6614
        %v6616 = vrcp.pop %v6578
        %v6617 = vmul.f32 1.0, %v6616
        %v6618 = vrcp.pop %v6579
        %v6619 = vmul.f32 1.0, %v6618
        %v6620 = vrcp.pop %v6580
        %v6621 = vmul.f32 1.0, %v6620
        %v6622 = vrcp.pop %v6581
        %v6623 = vmul.f32 1.0, %v6622
        %v6624 = vrcp.pop %v6582
        %v6625 = vmul.f32 1.0, %v6624
        %v6626 = vrcp.pop %v6583
        %v6627 = vmul.f32 1.0, %v6626
        %v6628 = vrcp.pop %v6584
        %v6629 = vmul.f32 1.0, %v6628
        %v6630 = vrcp.pop %v6585
        %v6631 = vmul.f32 1.0, %v6630
        %v6632 = vrcp.pop %v6586
        %v6633 = vmul.f32 1.0, %v6632
        %v6634 = vrcp.pop %v6587
        %v6635 = vmul.f32 1.0, %v6634
        %v6636 = vrcp.pop %v6588
        %v6637 = vmul.f32 1.0, %v6636
        %v6638 = vrcp.pop %v6589
        %v6639 = vmul.f32 1.0, %v6638
        %v6640 = vrcp.pop %v6590
        %v6641 = vmul.f32 1.0, %v6640
        %v6642 = vrcp.pop %v6591
        %v6643 = vmul.f32 1.0, %v6642
        %v6644 = vrcp.pop %v6592
        %v6645 = vmul.f32 1.0, %v6644
        %v6646 = vrcp.pop %v6593
        %v6647 = vmul.f32 1.0, %v6646
        %v6648 = vrcp.pop %v6594
        %v6649 = vmul.f32 1.0, %v6648
        %v6650 = vrcp.pop %v6595
        %v6651 = vmul.f32 1.0, %v6650
        %6652 = vst [vmem:[%s893] sm:$0xff] %v6597
        %6653 = vst [vmem:[%s893 + $0x8] sm:$0xff] %v6599
        %6654 = vst [vmem:[%s893 + $0x10] sm:$0xff] %v6601
        %6655 = vst [vmem:[%s893 + $0x18] sm:$0xff] %v6603
        %6656 = vst [vmem:[%s893 + $0x20] sm:$0xff] %v6605
        %6657 = vst [vmem:[%s893 + $0x28] sm:$0xff] %v6607
        %6658 = vst [vmem:[%s893 + $0x30] sm:$0xff] %v6609
        %6659 = vst [vmem:[%s893 + $0x38] sm:$0xff] %v6611
        %6660 = vst [vmem:[%s893 + $0x40] sm:$0xff] %v6613
        %6661 = vst [vmem:[%s893 + $0x48] sm:$0xff] %v6615
        %6662 = vst [vmem:[%s893 + $0x50] sm:$0xff] %v6617
        %6663 = vst [vmem:[%s893 + $0x58] sm:$0xff] %v6619
        %6664 = vst [vmem:[%s893 + $0x60] sm:$0xff] %v6621
        %6665 = vst [vmem:[%s893 + $0x68] sm:$0xff] %v6623
        %6666 = vst [vmem:[%s893 + $0x70] sm:$0xff] %v6625
        %6667 = vst [vmem:[%s893 + $0x78] sm:$0xff] %v6627
        %6668 = vst [vmem:[%s893 + $0x80] sm:$0xff] %v6629
        %6669 = vst [vmem:[%s893 + $0x88] sm:$0xff] %v6631
        %6670 = vst [vmem:[%s893 + $0x90] sm:$0xff] %v6633
        %6671 = vst [vmem:[%s893 + $0x98] sm:$0xff] %v6635
        %6672 = vst [vmem:[%s893 + $0xa0] sm:$0xff] %v6637
        %6673 = vst [vmem:[%s893 + $0xa8] sm:$0xff] %v6639
        %6674 = vst [vmem:[%s893 + $0xb0] sm:$0xff] %v6641
        %6675 = vst [vmem:[%s893 + $0xb8] sm:$0xff] %v6643
        %6676 = vst [vmem:[%s893 + $0xc0] sm:$0xff] %v6645
        %6677 = vst [vmem:[%s893 + $0xc8] sm:$0xff] %v6647
        %6678 = vst [vmem:[%s893 + $0xd0] sm:$0xff] %v6649
        %6679 = vst [vmem:[%s893 + $0xd8] sm:$0xff] %v6651
        %6680 = vrot.lane.b32.xlu0 %v3735, 2
        %v6681 = vpop.permute.xlu0 %6680
        %6682 = vrot.lane.b32.xlu0 %v3736, 2
        %v6683 = vpop.permute.xlu0 %6682
        %6684 = vrot.lane.b32.xlu0 %v3737, 2
        %v6685 = vpop.permute.xlu0 %6684
        %6686 = vrot.lane.b32.xlu0 %v3738, 2
        %v6687 = vpop.permute.xlu0 %6686
        %vm6692 = vcmask 31744
        %v6693 = vsel %vm6692, %v3669, %v6681
        %v6694 = vsel %vm6692, %v3672, %v6683
        %v6695 = vsel %vm6692, %v3677, %v6685
        %v6696 = vsel %vm6692, %v3680, %v6687
        %vm6697 = vcmask 48128
        %6698 = vst.msk [vmem:[%s899] sm:$0xff] %vm6697, %v6693
        %6699 = vst.msk [vmem:[%s899 + $0x8] sm:$0xff] %vm6697, %v6694
        %6700 = vst.msk [vmem:[%s899 + $0x10] sm:$0xff] %vm6697, %v6695
        %6701 = vst.msk [vmem:[%s899 + $0x18] sm:$0xff] %vm6697, %v6696
        %s6702 = smul.u32 4, %s41
        %p6703 = scmp.lt.s32.totalorder %s6702, 7
        %s6704 = scalar_select %p6703, %s6702, 7
        %s6705 = smul.addr %s6704, 7
        %s6706 = smul.addr %s6705, 8
        %s6707 = scalar_lea.vmem %s22, %s6706
        %s6708 = smul.u32 4, %s41
        %p6709 = scmp.lt.s32.totalorder %s6708, 7
        %s6710 = scalar_select %p6709, %s6708, 7
        %s6711 = smul.addr %s6710, 8
        %s6712 = scalar_lea.vmem %s23, %s6711
        // Predicated region
        $region153: #{vae_forward.1} parent=107 // pred_check
          %p6713 = pneg %p531
        $region154: #{vae_forward.1} parent=107 // pred_check_branch
          %6715 = sbr.rel (%p6713) target = $region156
        $region155: #{vae_forward.1} parent=107 // pred_region
          %s6716 = smul.u32 4, %s41
        $region156: #{vae_forward.1} parent=107 // pred_fallthru
          _
        // Predicated region
        $region157: #{vae_forward.1} parent=107 // pred_check
          %p6717 = pneg %p557
        $region158: #{vae_forward.1} parent=107 // pred_check_branch
          %6719 = sbr.rel (%p6717) target = $region160
        $region159: #{vae_forward.1} parent=107 // pred_region
          %s6720 = smul.u32 4, %s41
        $region160: #{vae_forward.1} parent=107 // pred_fallthru
          _
      $region108: #{vae_forward.1} parent=5 // pred_fallthru
        _
      %p6721 = scmp.le.s32.totalorder 2, %s36
      // Predicated region
      $region161: #{vae_forward.1} parent=5 // pred_check
        %p6722 = pneg %p6721
      $region162: #{vae_forward.1} parent=5 // pred_check_branch
        %6724 = sbr.rel (%p6722) target = $region164
      $region163: #{vae_forward.1} parent=5 // pred_region
        %s6725 = ssub.s32 %s36, 2
        // Predicated region
        $region165: #{vae_forward.1} parent=163 // pred_check
          %p6726 = pneg %p537
        $region166: #{vae_forward.1} parent=163 // pred_check_branch
          %6728 = sbr.rel (%p6726) target = $region168
        $region167: #{vae_forward.1} parent=163 // pred_region
          %s6729 = smul.u32 4, %s42
          %p6730 = scmp.lt.s32.totalorder %s6729, 7
          %s6731 = scalar_select %p6730, %s6729, 7
          %s6732 = smul.addr %s6731, 7
          %s6733 = smul.addr %s6732, 8
          %s6734 = scalar_lea.vmem %s22, %s6733
        $region168: #{vae_forward.1} parent=163 // pred_fallthru
          _
        // Predicated region
        $region169: #{vae_forward.1} parent=163 // pred_check
          %p6735 = pneg %p563
        $region170: #{vae_forward.1} parent=163 // pred_check_branch
          %6737 = sbr.rel (%p6735) target = $region172
        $region171: #{vae_forward.1} parent=163 // pred_region
          %s6738 = smul.u32 4, %s42
          %p6739 = scmp.lt.s32.totalorder %s6738, 7
          %s6740 = scalar_select %p6739, %s6738, 7
          %s6741 = smul.addr %s6740, 8
          %s6742 = scalar_lea.vmem %s23, %s6741
        $region172: #{vae_forward.1} parent=163 // pred_fallthru
          _
      $region164: #{vae_forward.1} parent=5 // pred_fallthru
        _
    $region6: #{vae_forward.1} parent=1 // loop_footer
      %s40 = sadd.s32 1, %s36
    $region7: #{vae_forward.1} parent=1 // loop_footer_branch
      %35 = sbr.rel target = $region3
    $region8: #{vae_forward.1} parent=1 // loop_exit
      _
    %6743 = vsyncpa [#allocation3], 1
    %s6744 = scalar_lea.sflag [#allocation3], 1
    %6745 = vsyncpa %s6744, 1
    %6746 = vsyncpa [#allocation5], 1
    %6747 = vsyncpa [#allocation8], 1
    %6748 = vsyncpa [#allocation11], 1
    %6749 = vsyncpa [#allocation14], 1
    %6750 = vsyncpa [#allocation17], 1

</llo_original>
